<compile_context>
chip_gen: v6e
topology: v6e:2x2x1
jax: 0.10.0
libtpu: 0.0.40
codegen_flags: <defaults>
</compile_context>

<pallas_src>
import math
import jax
import jax.numpy as jnp
from jax.experimental import pallas as pl
from jax.experimental.pallas import tpu as pltpu

# ----------------------------- configuration --------------------------------
B, C, H, W = 2, 4, 16, 16          # input images (NCHW, like the PyTorch module)
PS = 4                             # patch size
N = (H // PS) * (W // PS)          # 16 patches
P = C * PS * PS                    # 64 flattened-patch features
D = 32                             # embed dim
S = N + 1                          # 17 tokens (patches + cls)
NH, HD = 4, 8                      # heads, head dim
MLP = 2 * D                        # 64 mlp hidden
DEPTH = 2                          # transformer blocks
NUM_CLASSES = 10
OUT_PAD = 128                      # lane-dense padded logits width
EPS = 1e-6                         # ViT backbones typically use 1e-6 (nn.LayerNorm default is 1e-5)
F32 = jnp.float32
BF16 = jnp.bfloat16

# packed-slab geometry (all in-kernel slices start at lane offset 0)
LW_ROWS = 160                      # wqkv 0:32 | wo 32:64 | w1 64:96 | w2 96:160
LV_ROWS = 8                        # ln1g,ln1b,ln2g,ln2b,bqkv,bo,b1,b2 (one row each)
EW_ROWS = P + D                    # 96: embed W rows 0:64 | head W rows 64:96
EV_ROWS = 24                       # pos_patch 0:16 | cls+pos 16 | eb 17 | hg 18 | hb 19 | hbias 20


# ----------------------------- in-kernel helpers -----------------------------
def _layernorm(x, g, b):
    # one-pass statistics: both reductions are independent (shorter XLU chain).
    inv_d = 1.0 / x.shape[-1]
    s1 = jnp.sum(x, axis=-1, keepdims=True)
    s2 = jnp.sum(x * x, axis=-1, keepdims=True)
    m = s1 * inv_d
    var = s2 * inv_d - m * m
    return (x - m) * jax.lax.rsqrt(var + EPS) * g + b


def _gelu(x):
    # tanh approximation (EUP tanh). PyTorch nn.GELU default is the exact erf form.
    # TODO(synk): switch to erf-based GELU if bit-level parity with nn.GELU is required.
    c = math.sqrt(2.0 / math.pi)
    return 0.5 * x * (1.0 + jnp.tanh(c * (x + 0.044715 * x * x * x)))


# ----------------------------- fused Pallas kernel ---------------------------
def vit_kernel(patch_ref, lw_ref, lv_ref, ew_ref, ev_ref, out_ref, tok_ref):
    # --- patch embedding (one image per grid step) ---
    patches = patch_ref[...]                                        # (N, P) f32
    emb = jnp.dot(patches.astype(BF16), ew_ref[0:P, 0:D],
                  preferred_element_type=F32)                       # (N, D)
    emb = emb + ev_ref[17:18, 0:D]                                  # embed bias
    # token layout: patch rows 0..N-1, cls token at row N (both stores 8-aligned)
    tok_ref[0:N, :] = emb + ev_ref[0:N, 0:D]                        # + patch pos
    tok_ref[N:S, :] = ev_ref[16:17, 0:D]                            # cls_token + cls pos (pre-added)
    x = tok_ref[...]                                                # (S, D) f32

    scale = 1.0 / math.sqrt(HD)
    for l in range(DEPTH):
        # static slab slices (lane offset 0, sublane offsets 8/16-aligned)
        wqkv = lw_ref[l, 0:D, 0:3 * D]                              # (32, 96) bf16
        wo = lw_ref[l, D:2 * D, 0:D]                                # (32, 32) bf16
        w1 = lw_ref[l, 2 * D:3 * D, 0:MLP]                          # (32, 64) bf16
        w2 = lw_ref[l, 3 * D:3 * D + MLP, 0:D]                      # (64, 32) bf16
        ln1g = lv_ref[l, 0:1, 0:D]
        ln1b = lv_ref[l, 1:2, 0:D]
        ln2g = lv_ref[l, 2:3, 0:D]
        ln2b = lv_ref[l, 3:4, 0:D]
        bqkv = lv_ref[l, 4:5, 0:3 * D]
        bo = lv_ref[l, 5:6, 0:D]
        b1 = lv_ref[l, 6:7, 0:MLP]
        b2 = lv_ref[l, 7:8, 0:D]

        # --- multi-head self attention: one fused QKV matmul, one fused W_o matmul ---
        h1 = _layernorm(x, ln1g, ln1b)
        qkv = jnp.dot(h1.astype(BF16), wqkv,
                      preferred_element_type=F32) + bqkv            # (S, 3D) f32
        heads = []
        for hh in range(NH):
            qh = qkv[:, hh * HD:(hh + 1) * HD]                      # (S, HD)
            kh = qkv[:, D + hh * HD:D + (hh + 1) * HD]
            vh = qkv[:, 2 * D + hh * HD:2 * D + (hh + 1) * HD]
            s = jnp.einsum('qd,kd->qk', qh.astype(BF16), kh.astype(BF16),
                           preferred_element_type=F32) * scale      # (S, S)
            s = s - jnp.max(s, axis=-1, keepdims=True)
            e = jnp.exp(s)
            a = e * pl.reciprocal(jnp.sum(e, axis=-1, keepdims=True), approx=True)
            heads.append(jnp.dot(a.astype(BF16), vh.astype(BF16),
                                 preferred_element_type=F32))       # (S, HD)
        attn = jnp.concatenate(heads, axis=-1)                      # (S, D)
        x = x + jnp.dot(attn.astype(BF16), wo,
                        preferred_element_type=F32) + bo

        # --- MLP ---
        h2 = _layernorm(x, ln2g, ln2b)
        m = jnp.dot(h2.astype(BF16), w1, preferred_element_type=F32) + b1
        m = _gelu(m)
        m = jnp.dot(m.astype(BF16), w2, preferred_element_type=F32) + b2
        x = x + m

    # --- classifier head on the cls token (row N); lane-dense (1, 128) padded store ---
    cls_feat = _layernorm(x[N:S, :], ev_ref[18:19, 0:D], ev_ref[19:20, 0:D])
    logits = jnp.dot(cls_feat.astype(BF16), ew_ref[P:P + D, :],
                     preferred_element_type=F32) + ev_ref[20:21, :]
    out_ref[...] = logits.astype(out_ref.dtype)


# ----------------------------- wrapper ---------------------------------------
def _const_spec(shape):
    n = len(shape)
    return pl.BlockSpec(shape, lambda b, _n=n: (0,) * _n)


def vit_pallas(patches, kp):
    args = [patches, kp["lw"], kp["lv"], kp["ew"], kp["ev"]]
    in_specs = [pl.BlockSpec((None, N, P), lambda b: (b, 0, 0))]
    in_specs += [_const_spec(a.shape) for a in args[1:]]
    out = pl.pallas_call(
        vit_kernel,
        out_shape=jax.ShapeDtypeStruct((B, 1, OUT_PAD), F32),
        grid=(B,),
        in_specs=in_specs,
        out_specs=pl.BlockSpec((None, 1, OUT_PAD), lambda b: (b, 0, 0)),
        scratch_shapes=[pltpu.VMEM((S, D), F32)],
        compiler_params=pltpu.CompilerParams(dimension_semantics=("parallel",)),
    )(*args)
    return out[:, 0, :NUM_CLASSES]


def extract_patches(x):
    # NCHW -> (B, N, C*ps*ps), matching flattened Conv2d(kernel=stride=ps) weights.
    b, c, h, w = x.shape
    x = x.reshape(b, c, h // PS, PS, w // PS, PS)
    x = x.transpose(0, 2, 4, 1, 3, 5)
    return x.reshape(b, (h // PS) * (w // PS), c * PS * PS)


@jax.jit
def vit_forward(x, kernel_params):
    patches = extract_patches(x)
    return vit_pallas(patches, kernel_params)


# ----------------------------- parameters ------------------------------------
def init_params(key):
    def nrm(k, shape):
        return (0.02 * jax.random.normal(k, shape)).astype(F32)

    keys = iter(jax.random.split(key, 64))
    params = {
        "embed": {
            "w": nrm(next(keys), (P, D)),
            "b": jnp.zeros((1, D), F32),
            "cls": nrm(next(keys), (1, D)),
            "pos": nrm(next(keys), (S, D)),          # row 0 = cls pos, rows 1: = patch pos
        },
        "blocks": [],
        "head": {
            "ln_g": jnp.ones((1, D), F32),
            "ln_b": jnp.zeros((1, D), F32),
            "w": nrm(next(keys), (D, NUM_CLASSES)),
            "b": jnp.zeros((1, NUM_CLASSES), F32),
        },
    }
    for _ in range(DEPTH):
        params["blocks"].append({
            "ln1_g": jnp.ones((1, D), F32), "ln1_b": jnp.zeros((1, D), F32),
            "wqkv": nrm(next(keys), (D, 3 * D)), "bqkv": jnp.zeros((1, 3 * D), F32),
            "wo": nrm(next(keys), (D, D)), "bo": jnp.zeros((1, D), F32),
            "ln2_g": jnp.ones((1, D), F32), "ln2_b": jnp.zeros((1, D), F32),
            "w1": nrm(next(keys), (D, MLP)), "b1": jnp.zeros((1, MLP), F32),
            "w2": nrm(next(keys), (MLP, D)), "b2": jnp.zeros((1, D), F32),
        })
    return params


def pack_params(params):
    """Host-side packing of all weights into 4 contiguous slabs.

    Layout note: wqkv is applied as x @ W with (D, 3D) layout; Q/K/V column
    blocks are head-major (head h occupies lanes h*HD:(h+1)*HD of each block),
    and W_o rows use the same head ordering. Porting real PyTorch (out,in)
    Linear checkpoints requires a transpose + head-order check.
    """
    ep, hp, blocks = params["embed"], params["head"], params["blocks"]

    # --- per-layer matrix slab (bf16): (DEPTH, 160, 128) ---
    lw = jnp.zeros((DEPTH, LW_ROWS, 128), F32)
    lv = jnp.zeros((DEPTH, LV_ROWS, 128), F32)
    for l, blk in enumerate(blocks):
        lw = lw.at[l, 0:D, 0:3 * D].set(blk["wqkv"])
        lw = lw.at[l, D:2 * D, 0:D].set(blk["wo"])
        lw = lw.at[l, 2 * D:3 * D, 0:MLP].set(blk["w1"])
        lw = lw.at[l, 3 * D:3 * D + MLP, 0:D].set(blk["w2"])
        lv = lv.at[l, 0:1, 0:D].set(blk["ln1_g"])
        lv = lv.at[l, 1:2, 0:D].set(blk["ln1_b"])
        lv = lv.at[l, 2:3, 0:D].set(blk["ln2_g"])
        lv = lv.at[l, 3:4, 0:D].set(blk["ln2_b"])
        lv = lv.at[l, 4:5, 0:3 * D].set(blk["bqkv"])
        lv = lv.at[l, 5:6, 0:D].set(blk["bo"])
        lv = lv.at[l, 6:7, 0:MLP].set(blk["b1"])
        lv = lv.at[l, 7:8, 0:D].set(blk["b2"])

    # --- embed/head matrix slab (bf16): (96, 128) ---
    ew = jnp.zeros((EW_ROWS, 128), F32)
    ew = ew.at[0:P, 0:D].set(ep["w"])
    ew = ew.at[P:P + D, 0:NUM_CLASSES].set(hp["w"])

    # --- embed/head vector slab (f32): (24, 128) ---
    ev = jnp.zeros((EV_ROWS, 128), F32)
    ev = ev.at[0:N, 0:D].set(ep["pos"][1:])               # patch pos (token rows 0..15)
    ev = ev.at[16:17, 0:D].set(ep["cls"] + ep["pos"][0:1])  # cls token + cls pos, pre-added
    ev = ev.at[17:18, 0:D].set(ep["b"])                   # embed bias
    ev = ev.at[18:19, 0:D].set(hp["ln_g"])                # head LN gamma
    ev = ev.at[19:20, 0:D].set(hp["ln_b"])                # head LN beta
    ev = ev.at[20:21, 0:NUM_CLASSES].set(hp["b"])         # head bias (lane-padded)

    return {
        "lw": lw.astype(BF16),
        "lv": lv,
        "ew": ew.astype(BF16),
        "ev": ev,
    }


# TODO(synk): use_WaveSF=True / prompt=True backbone variants are config-dependent
# sub-modules not defined in this file; only the standard ViT path is implemented.

if __name__ == "__main__":
    key = jax.random.PRNGKey(0)
    k_x, k_p = jax.random.split(key)
    x = jax.random.normal(k_x, (B, C, H, W), dtype=F32)
    kernel_params = pack_params(init_params(k_p))

    logits = vit_forward(x, kernel_params)
    jax.block_until_ready(logits)
    assert logits.shape == (B, NUM_CLASSES)
    assert bool(jnp.all(jnp.isfinite(logits)))
    print("KERNEL_OK")
</pallas_src>

<mosaic_0001>
module attributes {stable_mosaic.version = 11 : i64} {
  func.func @vit_kernel(%arg0: i32, %arg1: memref<1x16x64xf32, #tpu.memory_space<vmem>>, %arg2: memref<2x160x128xbf16, #tpu.memory_space<vmem>>, %arg3: memref<2x8x128xf32, #tpu.memory_space<vmem>>, %arg4: memref<96x128xbf16, #tpu.memory_space<vmem>>, %arg5: memref<24x128xf32, #tpu.memory_space<vmem>>, %arg6: memref<1x1x128xf32, #tpu.memory_space<vmem>>, %arg7: memref<17x32xf32, #tpu.memory_space<vmem>>) attributes {dimension_semantics = [#tpu.dimension_semantics<parallel>], iteration_bounds = array<i64: 2>, scalar_prefetch = 0 : i64, scratch_operands = 1 : i64, tpu.core_type = #tpu.core_type<tc>, window_params = [{transform_indices = @transform_0, window_bounds = array<i64: 1, 16, 64>}, {pipeline_mode = #tpu.pipeline_mode<synchronous>, transform_indices = @transform_1, window_bounds = array<i64: 2, 160, 128>}, {pipeline_mode = #tpu.pipeline_mode<synchronous>, transform_indices = @transform_2, window_bounds = array<i64: 2, 8, 128>}, {pipeline_mode = #tpu.pipeline_mode<synchronous>, transform_indices = @transform_3, window_bounds = array<i64: 96, 128>}, {pipeline_mode = #tpu.pipeline_mode<synchronous>, transform_indices = @transform_4, window_bounds = array<i64: 24, 128>}, {transform_indices = @transform_5, window_bounds = array<i64: 1, 1, 128>}]} {
    %c0 = arith.constant 0 : index
    %c0_0 = arith.constant 0 : index
    %c0_1 = arith.constant 0 : index
    %0 = vector.load %arg1[%c0, %c0_0, %c0_1] : memref<1x16x64xf32, #tpu.memory_space<vmem>>, vector<1x16x64xf32>
    %1 = vector.shape_cast %0 : vector<1x16x64xf32> to vector<16x64xf32>
    %2 = arith.truncf %1 : vector<16x64xf32> to vector<16x64xbf16>
    %c0_2 = arith.constant 0 : index
    %c0_3 = arith.constant 0 : index
    %3 = vector.load %arg4[%c0_2, %c0_3] : memref<96x128xbf16, #tpu.memory_space<vmem>>, vector<64x32xbf16>
    %cst = arith.constant dense<0.000000e+00> : vector<16x32xf32>
    %4 = tpu.matmul %2, %3, %cst {dimension_numbers = #tpu.dot_dimension_numbers<[1], [0], [0], [1], [0, 0, 1, 1], [], []>} : vector<16x64xbf16>, vector<64x32xbf16>, vector<16x32xf32> -> vector<16x32xf32>
    %c17 = arith.constant 17 : index
    %c0_4 = arith.constant 0 : index
    %5 = vector.load %arg5[%c17, %c0_4] : memref<24x128xf32, #tpu.memory_space<vmem>>, vector<1x32xf32>
    %6 = vector.broadcast %5 : vector<1x32xf32> to vector<16x32xf32>
    %7 = arith.addf %4, %6 : vector<16x32xf32>
    %c0_5 = arith.constant 0 : index
    %c0_6 = arith.constant 0 : index
    %8 = vector.load %arg5[%c0_5, %c0_6] : memref<24x128xf32, #tpu.memory_space<vmem>>, vector<16x32xf32>
    %9 = arith.addf %7, %8 : vector<16x32xf32>
    %c0_7 = arith.constant 0 : index
    %c0_8 = arith.constant 0 : index
    %10 = vector.load %arg7[%c0_7, %c0_8] : memref<17x32xf32, #tpu.memory_space<vmem>>, vector<16x32xf32>
    tpu.vector_store %arg7[%c0_7, %c0_8], %9 {strides = array<i32>} : memref<17x32xf32, #tpu.memory_space<vmem>>, vector<16x32xf32>,
    %c16 = arith.constant 16 : index
    %c0_9 = arith.constant 0 : index
    %11 = vector.load %arg5[%c16, %c0_9] : memref<24x128xf32, #tpu.memory_space<vmem>>, vector<1x32xf32>
    %c16_10 = arith.constant 16 : index
    %c0_11 = arith.constant 0 : index
    %12 = vector.load %arg7[%c16_10, %c0_11] : memref<17x32xf32, #tpu.memory_space<vmem>>, vector<1x32xf32>
    tpu.vector_store %arg7[%c16_10, %c0_11], %11 {strides = array<i32>} : memref<17x32xf32, #tpu.memory_space<vmem>>, vector<1x32xf32>,
    %c0_12 = arith.constant 0 : index
    %c0_13 = arith.constant 0 : index
    %13 = vector.load %arg7[%c0_12, %c0_13] : memref<17x32xf32, #tpu.memory_space<vmem>>, vector<17x32xf32>
    %c0_14 = arith.constant 0 : index
    %c0_15 = arith.constant 0 : index
    %c0_16 = arith.constant 0 : index
    %14 = vector.load %arg2[%c0_14, %c0_15, %c0_16] : memref<2x160x128xbf16, #tpu.memory_space<vmem>>, vector<1x32x96xbf16>
    %15 = vector.shape_cast %14 : vector<1x32x96xbf16> to vector<32x96xbf16>
    %c0_17 = arith.constant 0 : index
    %c32 = arith.constant 32 : index
    %c0_18 = arith.constant 0 : index
    %16 = vector.load %arg2[%c0_17, %c32, %c0_18] : memref<2x160x128xbf16, #tpu.memory_space<vmem>>, vector<1x32x32xbf16>
    %17 = vector.shape_cast %16 : vector<1x32x32xbf16> to vector<32x32xbf16>
    %c0_19 = arith.constant 0 : index
    %c64 = arith.constant 64 : index
    %c0_20 = arith.constant 0 : index
    %18 = vector.load %arg2[%c0_19, %c64, %c0_20] : memref<2x160x128xbf16, #tpu.memory_space<vmem>>, vector<1x32x64xbf16>
    %19 = vector.shape_cast %18 : vector<1x32x64xbf16> to vector<32x64xbf16>
    %c0_21 = arith.constant 0 : index
    %c96 = arith.constant 96 : index
    %c0_22 = arith.constant 0 : index
    %20 = vector.load %arg2[%c0_21, %c96, %c0_22] : memref<2x160x128xbf16, #tpu.memory_space<vmem>>, vector<1x64x32xbf16>
    %21 = vector.shape_cast %20 : vector<1x64x32xbf16> to vector<64x32xbf16>
    %c0_23 = arith.constant 0 : index
    %c0_24 = arith.constant 0 : index
    %c0_25 = arith.constant 0 : index
    %22 = vector.load %arg3[%c0_23, %c0_24, %c0_25] : memref<2x8x128xf32, #tpu.memory_space<vmem>>, vector<1x1x32xf32>
    %23 = vector.shape_cast %22 : vector<1x1x32xf32> to vector<1x32xf32>
    %c0_26 = arith.constant 0 : index
    %c1 = arith.constant 1 : index
    %c0_27 = arith.constant 0 : index
    %24 = vector.load %arg3[%c0_26, %c1, %c0_27] : memref<2x8x128xf32, #tpu.memory_space<vmem>>, vector<1x1x32xf32>
    %25 = vector.shape_cast %24 : vector<1x1x32xf32> to vector<1x32xf32>
    %c0_28 = arith.constant 0 : index
    %c2 = arith.constant 2 : index
    %c0_29 = arith.constant 0 : index
    %26 = vector.load %arg3[%c0_28, %c2, %c0_29] : memref<2x8x128xf32, #tpu.memory_space<vmem>>, vector<1x1x32xf32>
    %27 = vector.shape_cast %26 : vector<1x1x32xf32> to vector<1x32xf32>
    %c0_30 = arith.constant 0 : index
    %c3 = arith.constant 3 : index
    %c0_31 = arith.constant 0 : index
    %28 = vector.load %arg3[%c0_30, %c3, %c0_31] : memref<2x8x128xf32, #tpu.memory_space<vmem>>, vector<1x1x32xf32>
    %29 = vector.shape_cast %28 : vector<1x1x32xf32> to vector<1x32xf32>
    %c0_32 = arith.constant 0 : index
    %c4 = arith.constant 4 : index
    %c0_33 = arith.constant 0 : index
    %30 = vector.load %arg3[%c0_32, %c4, %c0_33] : memref<2x8x128xf32, #tpu.memory_space<vmem>>, vector<1x1x96xf32>
    %31 = vector.shape_cast %30 : vector<1x1x96xf32> to vector<1x96xf32>
    %c0_34 = arith.constant 0 : index
    %c5 = arith.constant 5 : index
    %c0_35 = arith.constant 0 : index
    %32 = vector.load %arg3[%c0_34, %c5, %c0_35] : memref<2x8x128xf32, #tpu.memory_space<vmem>>, vector<1x1x32xf32>
    %33 = vector.shape_cast %32 : vector<1x1x32xf32> to vector<1x32xf32>
    %c0_36 = arith.constant 0 : index
    %c6 = arith.constant 6 : index
    %c0_37 = arith.constant 0 : index
    %34 = vector.load %arg3[%c0_36, %c6, %c0_37] : memref<2x8x128xf32, #tpu.memory_space<vmem>>, vector<1x1x64xf32>
    %35 = vector.shape_cast %34 : vector<1x1x64xf32> to vector<1x64xf32>
    %c0_38 = arith.constant 0 : index
    %c7 = arith.constant 7 : index
    %c0_39 = arith.constant 0 : index
    %36 = vector.load %arg3[%c0_38, %c7, %c0_39] : memref<2x8x128xf32, #tpu.memory_space<vmem>>, vector<1x1x32xf32>
    %37 = vector.shape_cast %36 : vector<1x1x32xf32> to vector<1x32xf32>
    %cst_40 = arith.constant dense<0.000000e+00> : vector<17xf32>
    %38 = vector.multi_reduction <add>, %13, %cst_40 [1] : vector<17x32xf32> to vector<17xf32>
    %39 = vector.shape_cast %38 : vector<17xf32> to vector<17x1xf32>
    %40 = arith.mulf %13, %13 : vector<17x32xf32>
    %cst_41 = arith.constant dense<0.000000e+00> : vector<17xf32>
    %41 = vector.multi_reduction <add>, %40, %cst_41 [1] : vector<17x32xf32> to vector<17xf32>
    %42 = vector.shape_cast %41 : vector<17xf32> to vector<17x1xf32>
    %cst_42 = arith.constant 3.125000e-02 : f32
    %43 = vector.broadcast %cst_42 : f32 to vector<17x1xf32>
    %44 = arith.mulf %39, %43 : vector<17x1xf32>
    %cst_43 = arith.constant 3.125000e-02 : f32
    %45 = vector.broadcast %cst_43 : f32 to vector<17x1xf32>
    %46 = arith.mulf %42, %45 : vector<17x1xf32>
    %47 = arith.mulf %44, %44 : vector<17x1xf32>
    %48 = arith.subf %46, %47 : vector<17x1xf32>
    %49 = vector.broadcast %44 : vector<17x1xf32> to vector<17x32xf32>
    %50 = arith.subf %13, %49 : vector<17x32xf32>
    %cst_44 = arith.constant 9.99999997E-7 : f32
    %51 = vector.broadcast %cst_44 : f32 to vector<17x1xf32>
    %52 = arith.addf %48, %51 : vector<17x1xf32>
    %53 = math.rsqrt %52 : vector<17x1xf32>
    %54 = vector.broadcast %53 : vector<17x1xf32> to vector<17x32xf32>
    %55 = arith.mulf %50, %54 : vector<17x32xf32>
    %56 = vector.broadcast %23 : vector<1x32xf32> to vector<17x32xf32>
    %57 = arith.mulf %55, %56 : vector<17x32xf32>
    %58 = vector.broadcast %25 : vector<1x32xf32> to vector<17x32xf32>
    %59 = arith.addf %57, %58 : vector<17x32xf32>
    %60 = arith.truncf %59 : vector<17x32xf32> to vector<17x32xbf16>
    %cst_45 = arith.constant dense<0.000000e+00> : vector<17x96xf32>
    %61 = tpu.matmul %60, %15, %cst_45 {dimension_numbers = #tpu.dot_dimension_numbers<[1], [0], [0], [1], [0, 0, 1, 1], [], []>} : vector<17x32xbf16>, vector<32x96xbf16>, vector<17x96xf32> -> vector<17x96xf32>
    %62 = vector.broadcast %31 : vector<1x96xf32> to vector<17x96xf32>
    %63 = arith.addf %61, %62 : vector<17x96xf32>
    %64 = vector.extract_strided_slice %63 {offsets = [0, 0], sizes = [17, 8], strides = [1, 1]} : vector<17x96xf32> to vector<17x8xf32>
    %65 = vector.extract_strided_slice %63 {offsets = [0, 32], sizes = [17, 8], strides = [1, 1]} : vector<17x96xf32> to vector<17x8xf32>
    %66 = vector.extract_strided_slice %63 {offsets = [0, 64], sizes = [17, 8], strides = [1, 1]} : vector<17x96xf32> to vector<17x8xf32>
    %67 = arith.truncf %64 : vector<17x8xf32> to vector<17x8xbf16>
    %68 = arith.truncf %65 : vector<17x8xf32> to vector<17x8xbf16>
    "tpu.trace_start"() <{level = 10 : i32, message = "qd,kd->qk"}> : () -> ()
    %cst_46 = arith.constant dense<0.000000e+00> : vector<17x17xf32>
    %69 = tpu.matmul %67, %68, %cst_46 {dimension_numbers = #tpu.dot_dimension_numbers<[1], [1], [0], [0], [0, 0, 1, 0], [], []>} : vector<17x8xbf16>, vector<17x8xbf16>, vector<17x17xf32> -> vector<17x17xf32>
    "tpu.trace_stop"() : () -> ()
    %cst_47 = arith.constant 0.353553385 : f32
    %70 = vector.broadcast %cst_47 : f32 to vector<17x17xf32>
    %71 = arith.mulf %69, %70 : vector<17x17xf32>
    %cst_48 = arith.constant dense<0xFF800000> : vector<17xf32>
    %72 = vector.multi_reduction <maximumf>, %71, %cst_48 [1] : vector<17x17xf32> to vector<17xf32>
    %73 = vector.shape_cast %72 : vector<17xf32> to vector<17x1xf32>
    %74 = vector.broadcast %73 : vector<17x1xf32> to vector<17x17xf32>
    %75 = arith.subf %71, %74 : vector<17x17xf32>
    %76 = math.exp %75 : vector<17x17xf32>
    %cst_49 = arith.constant dense<0.000000e+00> : vector<17xf32>
    %77 = vector.multi_reduction <add>, %76, %cst_49 [1] : vector<17x17xf32> to vector<17xf32>
    %78 = vector.shape_cast %77 : vector<17xf32> to vector<17x1xf32>
    %79 = tpu.reciprocal %78 {approx = true} : vector<17x1xf32> -> vector<17x1xf32>
    %80 = vector.broadcast %79 : vector<17x1xf32> to vector<17x17xf32>
    %81 = arith.mulf %76, %80 : vector<17x17xf32>
    %82 = arith.truncf %81 : vector<17x17xf32> to vector<17x17xbf16>
    %83 = arith.truncf %66 : vector<17x8xf32> to vector<17x8xbf16>
    %cst_50 = arith.constant dense<0.000000e+00> : vector<17x8xf32>
    %84 = tpu.matmul %82, %83, %cst_50 {dimension_numbers = #tpu.dot_dimension_numbers<[1], [0], [0], [1], [0, 0, 1, 1], [], []>} : vector<17x17xbf16>, vector<17x8xbf16>, vector<17x8xf32> -> vector<17x8xf32>
    %85 = vector.extract_strided_slice %63 {offsets = [0, 8], sizes = [17, 8], strides = [1, 1]} : vector<17x96xf32> to vector<17x8xf32>
    %86 = vector.extract_strided_slice %63 {offsets = [0, 40], sizes = [17, 8], strides = [1, 1]} : vector<17x96xf32> to vector<17x8xf32>
    %87 = vector.extract_strided_slice %63 {offsets = [0, 72], sizes = [17, 8], strides = [1, 1]} : vector<17x96xf32> to vector<17x8xf32>
    %88 = arith.truncf %85 : vector<17x8xf32> to vector<17x8xbf16>
    %89 = arith.truncf %86 : vector<17x8xf32> to vector<17x8xbf16>
    "tpu.trace_start"() <{level = 10 : i32, message = "qd,kd->qk"}> : () -> ()
    %cst_51 = arith.constant dense<0.000000e+00> : vector<17x17xf32>
    %90 = tpu.matmul %88, %89, %cst_51 {dimension_numbers = #tpu.dot_dimension_numbers<[1], [1], [0], [0], [0, 0, 1, 0], [], []>} : vector<17x8xbf16>, vector<17x8xbf16>, vector<17x17xf32> -> vector<17x17xf32>
    "tpu.trace_stop"() : () -> ()
    %cst_52 = arith.constant 0.353553385 : f32
    %91 = vector.broadcast %cst_52 : f32 to vector<17x17xf32>
    %92 = arith.mulf %90, %91 : vector<17x17xf32>
    %cst_53 = arith.constant dense<0xFF800000> : vector<17xf32>
    %93 = vector.multi_reduction <maximumf>, %92, %cst_53 [1] : vector<17x17xf32> to vector<17xf32>
    %94 = vector.shape_cast %93 : vector<17xf32> to vector<17x1xf32>
    %95 = vector.broadcast %94 : vector<17x1xf32> to vector<17x17xf32>
    %96 = arith.subf %92, %95 : vector<17x17xf32>
    %97 = math.exp %96 : vector<17x17xf32>
    %cst_54 = arith.constant dense<0.000000e+00> : vector<17xf32>
    %98 = vector.multi_reduction <add>, %97, %cst_54 [1] : vector<17x17xf32> to vector<17xf32>
    %99 = vector.shape_cast %98 : vector<17xf32> to vector<17x1xf32>
    %100 = tpu.reciprocal %99 {approx = true} : vector<17x1xf32> -> vector<17x1xf32>
    %101 = vector.broadcast %100 : vector<17x1xf32> to vector<17x17xf32>
    %102 = arith.mulf %97, %101 : vector<17x17xf32>
    %103 = arith.truncf %102 : vector<17x17xf32> to vector<17x17xbf16>
    %104 = arith.truncf %87 : vector<17x8xf32> to vector<17x8xbf16>
    %cst_55 = arith.constant dense<0.000000e+00> : vector<17x8xf32>
    %105 = tpu.matmul %103, %104, %cst_55 {dimension_numbers = #tpu.dot_dimension_numbers<[1], [0], [0], [1], [0, 0, 1, 1], [], []>} : vector<17x17xbf16>, vector<17x8xbf16>, vector<17x8xf32> -> vector<17x8xf32>
    %106 = vector.extract_strided_slice %63 {offsets = [0, 16], sizes = [17, 8], strides = [1, 1]} : vector<17x96xf32> to vector<17x8xf32>
    %107 = vector.extract_strided_slice %63 {offsets = [0, 48], sizes = [17, 8], strides = [1, 1]} : vector<17x96xf32> to vector<17x8xf32>
    %108 = vector.extract_strided_slice %63 {offsets = [0, 80], sizes = [17, 8], strides = [1, 1]} : vector<17x96xf32> to vector<17x8xf32>
    %109 = arith.truncf %106 : vector<17x8xf32> to vector<17x8xbf16>
    %110 = arith.truncf %107 : vector<17x8xf32> to vector<17x8xbf16>
    "tpu.trace_start"() <{level = 10 : i32, message = "qd,kd->qk"}> : () -> ()
    %cst_56 = arith.constant dense<0.000000e+00> : vector<17x17xf32>
    %111 = tpu.matmul %109, %110, %cst_56 {dimension_numbers = #tpu.dot_dimension_numbers<[1], [1], [0], [0], [0, 0, 1, 0], [], []>} : vector<17x8xbf16>, vector<17x8xbf16>, vector<17x17xf32> -> vector<17x17xf32>
    "tpu.trace_stop"() : () -> ()
    %cst_57 = arith.constant 0.353553385 : f32
    %112 = vector.broadcast %cst_57 : f32 to vector<17x17xf32>
    %113 = arith.mulf %111, %112 : vector<17x17xf32>
    %cst_58 = arith.constant dense<0xFF800000> : vector<17xf32>
    %114 = vector.multi_reduction <maximumf>, %113, %cst_58 [1] : vector<17x17xf32> to vector<17xf32>
    %115 = vector.shape_cast %114 : vector<17xf32> to vector<17x1xf32>
    %116 = vector.broadcast %115 : vector<17x1xf32> to vector<17x17xf32>
    %117 = arith.subf %113, %116 : vector<17x17xf32>
    %118 = math.exp %117 : vector<17x17xf32>
    %cst_59 = arith.constant dense<0.000000e+00> : vector<17xf32>
    %119 = vector.multi_reduction <add>, %118, %cst_59 [1] : vector<17x17xf32> to vector<17xf32>
    %120 = vector.shape_cast %119 : vector<17xf32> to vector<17x1xf32>
    %121 = tpu.reciprocal %120 {approx = true} : vector<17x1xf32> -> vector<17x1xf32>
    %122 = vector.broadcast %121 : vector<17x1xf32> to vector<17x17xf32>
    %123 = arith.mulf %118, %122 : vector<17x17xf32>
    %124 = arith.truncf %123 : vector<17x17xf32> to vector<17x17xbf16>
    %125 = arith.truncf %108 : vector<17x8xf32> to vector<17x8xbf16>
    %cst_60 = arith.constant dense<0.000000e+00> : vector<17x8xf32>
    %126 = tpu.matmul %124, %125, %cst_60 {dimension_numbers = #tpu.dot_dimension_numbers<[1], [0], [0], [1], [0, 0, 1, 1], [], []>} : vector<17x17xbf16>, vector<17x8xbf16>, vector<17x8xf32> -> vector<17x8xf32>
    %127 = vector.extract_strided_slice %63 {offsets = [0, 24], sizes = [17, 8], strides = [1, 1]} : vector<17x96xf32> to vector<17x8xf32>
    %128 = vector.extract_strided_slice %63 {offsets = [0, 56], sizes = [17, 8], strides = [1, 1]} : vector<17x96xf32> to vector<17x8xf32>
    %129 = vector.extract_strided_slice %63 {offsets = [0, 88], sizes = [17, 8], strides = [1, 1]} : vector<17x96xf32> to vector<17x8xf32>
    %130 = arith.truncf %127 : vector<17x8xf32> to vector<17x8xbf16>
    %131 = arith.truncf %128 : vector<17x8xf32> to vector<17x8xbf16>
    "tpu.trace_start"() <{level = 10 : i32, message = "qd,kd->qk"}> : () -> ()
    %cst_61 = arith.constant dense<0.000000e+00> : vector<17x17xf32>
    %132 = tpu.matmul %130, %131, %cst_61 {dimension_numbers = #tpu.dot_dimension_numbers<[1], [1], [0], [0], [0, 0, 1, 0], [], []>} : vector<17x8xbf16>, vector<17x8xbf16>, vector<17x17xf32> -> vector<17x17xf32>
    "tpu.trace_stop"() : () -> ()
    %cst_62 = arith.constant 0.353553385 : f32
    %133 = vector.broadcast %cst_62 : f32 to vector<17x17xf32>
    %134 = arith.mulf %132, %133 : vector<17x17xf32>
    %cst_63 = arith.constant dense<0xFF800000> : vector<17xf32>
    %135 = vector.multi_reduction <maximumf>, %134, %cst_63 [1] : vector<17x17xf32> to vector<17xf32>
    %136 = vector.shape_cast %135 : vector<17xf32> to vector<17x1xf32>
    %137 = vector.broadcast %136 : vector<17x1xf32> to vector<17x17xf32>
    %138 = arith.subf %134, %137 : vector<17x17xf32>
    %139 = math.exp %138 : vector<17x17xf32>
    %cst_64 = arith.constant dense<0.000000e+00> : vector<17xf32>
    %140 = vector.multi_reduction <add>, %139, %cst_64 [1] : vector<17x17xf32> to vector<17xf32>
    %141 = vector.shape_cast %140 : vector<17xf32> to vector<17x1xf32>
    %142 = tpu.reciprocal %141 {approx = true} : vector<17x1xf32> -> vector<17x1xf32>
    %143 = vector.broadcast %142 : vector<17x1xf32> to vector<17x17xf32>
    %144 = arith.mulf %139, %143 : vector<17x17xf32>
    %145 = arith.truncf %144 : vector<17x17xf32> to vector<17x17xbf16>
    %146 = arith.truncf %129 : vector<17x8xf32> to vector<17x8xbf16>
    %cst_65 = arith.constant dense<0.000000e+00> : vector<17x8xf32>
    %147 = tpu.matmul %145, %146, %cst_65 {dimension_numbers = #tpu.dot_dimension_numbers<[1], [0], [0], [1], [0, 0, 1, 1], [], []>} : vector<17x17xbf16>, vector<17x8xbf16>, vector<17x8xf32> -> vector<17x8xf32>
    %148 = tpu.concatenate %84, %105, %126, %147 in 1 : vector<17x8xf32>, vector<17x8xf32>, vector<17x8xf32>, vector<17x8xf32> -> vector<17x32xf32>
    %149 = arith.truncf %148 : vector<17x32xf32> to vector<17x32xbf16>
    %cst_66 = arith.constant dense<0.000000e+00> : vector<17x32xf32>
    %150 = tpu.matmul %149, %17, %cst_66 {dimension_numbers = #tpu.dot_dimension_numbers<[1], [0], [0], [1], [0, 0, 1, 1], [], []>} : vector<17x32xbf16>, vector<32x32xbf16>, vector<17x32xf32> -> vector<17x32xf32>
    %151 = arith.addf %13, %150 : vector<17x32xf32>
    %152 = vector.broadcast %33 : vector<1x32xf32> to vector<17x32xf32>
    %153 = arith.addf %151, %152 : vector<17x32xf32>
    %cst_67 = arith.constant dense<0.000000e+00> : vector<17xf32>
    %154 = vector.multi_reduction <add>, %153, %cst_67 [1] : vector<17x32xf32> to vector<17xf32>
    %155 = vector.shape_cast %154 : vector<17xf32> to vector<17x1xf32>
    %156 = arith.mulf %153, %153 : vector<17x32xf32>
    %cst_68 = arith.constant dense<0.000000e+00> : vector<17xf32>
    %157 = vector.multi_reduction <add>, %156, %cst_68 [1] : vector<17x32xf32> to vector<17xf32>
    %158 = vector.shape_cast %157 : vector<17xf32> to vector<17x1xf32>
    %cst_69 = arith.constant 3.125000e-02 : f32
    %159 = vector.broadcast %cst_69 : f32 to vector<17x1xf32>
    %160 = arith.mulf %155, %159 : vector<17x1xf32>
    %cst_70 = arith.constant 3.125000e-02 : f32
    %161 = vector.broadcast %cst_70 : f32 to vector<17x1xf32>
    %162 = arith.mulf %158, %161 : vector<17x1xf32>
    %163 = arith.mulf %160, %160 : vector<17x1xf32>
    %164 = arith.subf %162, %163 : vector<17x1xf32>
    %165 = vector.broadcast %160 : vector<17x1xf32> to vector<17x32xf32>
    %166 = arith.subf %153, %165 : vector<17x32xf32>
    %cst_71 = arith.constant 9.99999997E-7 : f32
    %167 = vector.broadcast %cst_71 : f32 to vector<17x1xf32>
    %168 = arith.addf %164, %167 : vector<17x1xf32>
    %169 = math.rsqrt %168 : vector<17x1xf32>
    %170 = vector.broadcast %169 : vector<17x1xf32> to vector<17x32xf32>
    %171 = arith.mulf %166, %170 : vector<17x32xf32>
    %172 = vector.broadcast %27 : vector<1x32xf32> to vector<17x32xf32>
    %173 = arith.mulf %171, %172 : vector<17x32xf32>
    %174 = vector.broadcast %29 : vector<1x32xf32> to vector<17x32xf32>
    %175 = arith.addf %173, %174 : vector<17x32xf32>
    %176 = arith.truncf %175 : vector<17x32xf32> to vector<17x32xbf16>
    %cst_72 = arith.constant dense<0.000000e+00> : vector<17x64xf32>
    %177 = tpu.matmul %176, %19, %cst_72 {dimension_numbers = #tpu.dot_dimension_numbers<[1], [0], [0], [1], [0, 0, 1, 1], [], []>} : vector<17x32xbf16>, vector<32x64xbf16>, vector<17x64xf32> -> vector<17x64xf32>
    %178 = vector.broadcast %35 : vector<1x64xf32> to vector<17x64xf32>
    %179 = arith.addf %177, %178 : vector<17x64xf32>
    %cst_73 = arith.constant 5.000000e-01 : f32
    %180 = vector.broadcast %cst_73 : f32 to vector<17x64xf32>
    %181 = arith.mulf %180, %179 : vector<17x64xf32>
    %cst_74 = arith.constant 4.471500e-02 : f32
    %182 = vector.broadcast %cst_74 : f32 to vector<17x64xf32>
    %183 = arith.mulf %182, %179 : vector<17x64xf32>
    %184 = arith.mulf %183, %179 : vector<17x64xf32>
    %185 = arith.mulf %184, %179 : vector<17x64xf32>
    %186 = arith.addf %179, %185 : vector<17x64xf32>
    %cst_75 = arith.constant 0.797884583 : f32
    %187 = vector.broadcast %cst_75 : f32 to vector<17x64xf32>
    %188 = arith.mulf %187, %186 : vector<17x64xf32>
    %189 = math.tanh %188 : vector<17x64xf32>
    %cst_76 = arith.constant 1.000000e+00 : f32
    %190 = vector.broadcast %cst_76 : f32 to vector<17x64xf32>
    %191 = arith.addf %190, %189 : vector<17x64xf32>
    %192 = arith.mulf %181, %191 : vector<17x64xf32>
    %193 = arith.truncf %192 : vector<17x64xf32> to vector<17x64xbf16>
    %cst_77 = arith.constant dense<0.000000e+00> : vector<17x32xf32>
    %194 = tpu.matmul %193, %21, %cst_77 {dimension_numbers = #tpu.dot_dimension_numbers<[1], [0], [0], [1], [0, 0, 1, 1], [], []>} : vector<17x64xbf16>, vector<64x32xbf16>, vector<17x32xf32> -> vector<17x32xf32>
    %195 = vector.broadcast %37 : vector<1x32xf32> to vector<17x32xf32>
    %196 = arith.addf %194, %195 : vector<17x32xf32>
    %197 = arith.addf %153, %196 : vector<17x32xf32>
    %c1_78 = arith.constant 1 : index
    %c0_79 = arith.constant 0 : index
    %c0_80 = arith.constant 0 : index
    %198 = vector.load %arg2[%c1_78, %c0_79, %c0_80] : memref<2x160x128xbf16, #tpu.memory_space<vmem>>, vector<1x32x96xbf16>
    %199 = vector.shape_cast %198 : vector<1x32x96xbf16> to vector<32x96xbf16>
    %c1_81 = arith.constant 1 : index
    %c32_82 = arith.constant 32 : index
    %c0_83 = arith.constant 0 : index
    %200 = vector.load %arg2[%c1_81, %c32_82, %c0_83] : memref<2x160x128xbf16, #tpu.memory_space<vmem>>, vector<1x32x32xbf16>
    %201 = vector.shape_cast %200 : vector<1x32x32xbf16> to vector<32x32xbf16>
    %c1_84 = arith.constant 1 : index
    %c64_85 = arith.constant 64 : index
    %c0_86 = arith.constant 0 : index
    %202 = vector.load %arg2[%c1_84, %c64_85, %c0_86] : memref<2x160x128xbf16, #tpu.memory_space<vmem>>, vector<1x32x64xbf16>
    %203 = vector.shape_cast %202 : vector<1x32x64xbf16> to vector<32x64xbf16>
    %c1_87 = arith.constant 1 : index
    %c96_88 = arith.constant 96 : index
    %c0_89 = arith.constant 0 : index
    %204 = vector.load %arg2[%c1_87, %c96_88, %c0_89] : memref<2x160x128xbf16, #tpu.memory_space<vmem>>, vector<1x64x32xbf16>
    %205 = vector.shape_cast %204 : vector<1x64x32xbf16> to vector<64x32xbf16>
    %c1_90 = arith.constant 1 : index
    %c0_91 = arith.constant 0 : index
    %c0_92 = arith.constant 0 : index
    %206 = vector.load %arg3[%c1_90, %c0_91, %c0_92] : memref<2x8x128xf32, #tpu.memory_space<vmem>>, vector<1x1x32xf32>
    %207 = vector.shape_cast %206 : vector<1x1x32xf32> to vector<1x32xf32>
    %c1_93 = arith.constant 1 : index
    %c1_94 = arith.constant 1 : index
    %c0_95 = arith.constant 0 : index
    %208 = vector.load %arg3[%c1_93, %c1_94, %c0_95] : memref<2x8x128xf32, #tpu.memory_space<vmem>>, vector<1x1x32xf32>
    %209 = vector.shape_cast %208 : vector<1x1x32xf32> to vector<1x32xf32>
    %c1_96 = arith.constant 1 : index
    %c2_97 = arith.constant 2 : index
    %c0_98 = arith.constant 0 : index
    %210 = vector.load %arg3[%c1_96, %c2_97, %c0_98] : memref<2x8x128xf32, #tpu.memory_space<vmem>>, vector<1x1x32xf32>
    %211 = vector.shape_cast %210 : vector<1x1x32xf32> to vector<1x32xf32>
    %c1_99 = arith.constant 1 : index
    %c3_100 = arith.constant 3 : index
    %c0_101 = arith.constant 0 : index
    %212 = vector.load %arg3[%c1_99, %c3_100, %c0_101] : memref<2x8x128xf32, #tpu.memory_space<vmem>>, vector<1x1x32xf32>
    %213 = vector.shape_cast %212 : vector<1x1x32xf32> to vector<1x32xf32>
    %c1_102 = arith.constant 1 : index
    %c4_103 = arith.constant 4 : index
    %c0_104 = arith.constant 0 : index
    %214 = vector.load %arg3[%c1_102, %c4_103, %c0_104] : memref<2x8x128xf32, #tpu.memory_space<vmem>>, vector<1x1x96xf32>
    %215 = vector.shape_cast %214 : vector<1x1x96xf32> to vector<1x96xf32>
    %c1_105 = arith.constant 1 : index
    %c5_106 = arith.constant 5 : index
    %c0_107 = arith.constant 0 : index
    %216 = vector.load %arg3[%c1_105, %c5_106, %c0_107] : memref<2x8x128xf32, #tpu.memory_space<vmem>>, vector<1x1x32xf32>
    %217 = vector.shape_cast %216 : vector<1x1x32xf32> to vector<1x32xf32>
    %c1_108 = arith.constant 1 : index
    %c6_109 = arith.constant 6 : index
    %c0_110 = arith.constant 0 : index
    %218 = vector.load %arg3[%c1_108, %c6_109, %c0_110] : memref<2x8x128xf32, #tpu.memory_space<vmem>>, vector<1x1x64xf32>
    %219 = vector.shape_cast %218 : vector<1x1x64xf32> to vector<1x64xf32>
    %c1_111 = arith.constant 1 : index
    %c7_112 = arith.constant 7 : index
    %c0_113 = arith.constant 0 : index
    %220 = vector.load %arg3[%c1_111, %c7_112, %c0_113] : memref<2x8x128xf32, #tpu.memory_space<vmem>>, vector<1x1x32xf32>
    %221 = vector.shape_cast %220 : vector<1x1x32xf32> to vector<1x32xf32>
    %cst_114 = arith.constant dense<0.000000e+00> : vector<17xf32>
    %222 = vector.multi_reduction <add>, %197, %cst_114 [1] : vector<17x32xf32> to vector<17xf32>
    %223 = vector.shape_cast %222 : vector<17xf32> to vector<17x1xf32>
    %224 = arith.mulf %197, %197 : vector<17x32xf32>
    %cst_115 = arith.constant dense<0.000000e+00> : vector<17xf32>
    %225 = vector.multi_reduction <add>, %224, %cst_115 [1] : vector<17x32xf32> to vector<17xf32>
    %226 = vector.shape_cast %225 : vector<17xf32> to vector<17x1xf32>
    %cst_116 = arith.constant 3.125000e-02 : f32
    %227 = vector.broadcast %cst_116 : f32 to vector<17x1xf32>
    %228 = arith.mulf %223, %227 : vector<17x1xf32>
    %cst_117 = arith.constant 3.125000e-02 : f32
    %229 = vector.broadcast %cst_117 : f32 to vector<17x1xf32>
    %230 = arith.mulf %226, %229 : vector<17x1xf32>
    %231 = arith.mulf %228, %228 : vector<17x1xf32>
    %232 = arith.subf %230, %231 : vector<17x1xf32>
    %233 = vector.broadcast %228 : vector<17x1xf32> to vector<17x32xf32>
    %234 = arith.subf %197, %233 : vector<17x32xf32>
    %cst_118 = arith.constant 9.99999997E-7 : f32
    %235 = vector.broadcast %cst_118 : f32 to vector<17x1xf32>
    %236 = arith.addf %232, %235 : vector<17x1xf32>
    %237 = math.rsqrt %236 : vector<17x1xf32>
    %238 = vector.broadcast %237 : vector<17x1xf32> to vector<17x32xf32>
    %239 = arith.mulf %234, %238 : vector<17x32xf32>
    %240 = vector.broadcast %207 : vector<1x32xf32> to vector<17x32xf32>
    %241 = arith.mulf %239, %240 : vector<17x32xf32>
    %242 = vector.broadcast %209 : vector<1x32xf32> to vector<17x32xf32>
    %243 = arith.addf %241, %242 : vector<17x32xf32>
    %244 = arith.truncf %243 : vector<17x32xf32> to vector<17x32xbf16>
    %cst_119 = arith.constant dense<0.000000e+00> : vector<17x96xf32>
    %245 = tpu.matmul %244, %199, %cst_119 {dimension_numbers = #tpu.dot_dimension_numbers<[1], [0], [0], [1], [0, 0, 1, 1], [], []>} : vector<17x32xbf16>, vector<32x96xbf16>, vector<17x96xf32> -> vector<17x96xf32>
    %246 = vector.broadcast %215 : vector<1x96xf32> to vector<17x96xf32>
    %247 = arith.addf %245, %246 : vector<17x96xf32>
    %248 = vector.extract_strided_slice %247 {offsets = [0, 0], sizes = [17, 8], strides = [1, 1]} : vector<17x96xf32> to vector<17x8xf32>
    %249 = vector.extract_strided_slice %247 {offsets = [0, 32], sizes = [17, 8], strides = [1, 1]} : vector<17x96xf32> to vector<17x8xf32>
    %250 = vector.extract_strided_slice %247 {offsets = [0, 64], sizes = [17, 8], strides = [1, 1]} : vector<17x96xf32> to vector<17x8xf32>
    %251 = arith.truncf %248 : vector<17x8xf32> to vector<17x8xbf16>
    %252 = arith.truncf %249 : vector<17x8xf32> to vector<17x8xbf16>
    "tpu.trace_start"() <{level = 10 : i32, message = "qd,kd->qk"}> : () -> ()
    %cst_120 = arith.constant dense<0.000000e+00> : vector<17x17xf32>
    %253 = tpu.matmul %251, %252, %cst_120 {dimension_numbers = #tpu.dot_dimension_numbers<[1], [1], [0], [0], [0, 0, 1, 0], [], []>} : vector<17x8xbf16>, vector<17x8xbf16>, vector<17x17xf32> -> vector<17x17xf32>
    "tpu.trace_stop"() : () -> ()
    %cst_121 = arith.constant 0.353553385 : f32
    %254 = vector.broadcast %cst_121 : f32 to vector<17x17xf32>
    %255 = arith.mulf %253, %254 : vector<17x17xf32>
    %cst_122 = arith.constant dense<0xFF800000> : vector<17xf32>
    %256 = vector.multi_reduction <maximumf>, %255, %cst_122 [1] : vector<17x17xf32> to vector<17xf32>
    %257 = vector.shape_cast %256 : vector<17xf32> to vector<17x1xf32>
    %258 = vector.broadcast %257 : vector<17x1xf32> to vector<17x17xf32>
    %259 = arith.subf %255, %258 : vector<17x17xf32>
    %260 = math.exp %259 : vector<17x17xf32>
    %cst_123 = arith.constant dense<0.000000e+00> : vector<17xf32>
    %261 = vector.multi_reduction <add>, %260, %cst_123 [1] : vector<17x17xf32> to vector<17xf32>
    %262 = vector.shape_cast %261 : vector<17xf32> to vector<17x1xf32>
    %263 = tpu.reciprocal %262 {approx = true} : vector<17x1xf32> -> vector<17x1xf32>
    %264 = vector.broadcast %263 : vector<17x1xf32> to vector<17x17xf32>
    %265 = arith.mulf %260, %264 : vector<17x17xf32>
    %266 = arith.truncf %265 : vector<17x17xf32> to vector<17x17xbf16>
    %267 = arith.truncf %250 : vector<17x8xf32> to vector<17x8xbf16>
    %cst_124 = arith.constant dense<0.000000e+00> : vector<17x8xf32>
    %268 = tpu.matmul %266, %267, %cst_124 {dimension_numbers = #tpu.dot_dimension_numbers<[1], [0], [0], [1], [0, 0, 1, 1], [], []>} : vector<17x17xbf16>, vector<17x8xbf16>, vector<17x8xf32> -> vector<17x8xf32>
    %269 = vector.extract_strided_slice %247 {offsets = [0, 8], sizes = [17, 8], strides = [1, 1]} : vector<17x96xf32> to vector<17x8xf32>
    %270 = vector.extract_strided_slice %247 {offsets = [0, 40], sizes = [17, 8], strides = [1, 1]} : vector<17x96xf32> to vector<17x8xf32>
    %271 = vector.extract_strided_slice %247 {offsets = [0, 72], sizes = [17, 8], strides = [1, 1]} : vector<17x96xf32> to vector<17x8xf32>
    %272 = arith.truncf %269 : vector<17x8xf32> to vector<17x8xbf16>
    %273 = arith.truncf %270 : vector<17x8xf32> to vector<17x8xbf16>
    "tpu.trace_start"() <{level = 10 : i32, message = "qd,kd->qk"}> : () -> ()
    %cst_125 = arith.constant dense<0.000000e+00> : vector<17x17xf32>
    %274 = tpu.matmul %272, %273, %cst_125 {dimension_numbers = #tpu.dot_dimension_numbers<[1], [1], [0], [0], [0, 0, 1, 0], [], []>} : vector<17x8xbf16>, vector<17x8xbf16>, vector<17x17xf32> -> vector<17x17xf32>
    "tpu.trace_stop"() : () -> ()
    %cst_126 = arith.constant 0.353553385 : f32
    %275 = vector.broadcast %cst_126 : f32 to vector<17x17xf32>
    %276 = arith.mulf %274, %275 : vector<17x17xf32>
    %cst_127 = arith.constant dense<0xFF800000> : vector<17xf32>
    %277 = vector.multi_reduction <maximumf>, %276, %cst_127 [1] : vector<17x17xf32> to vector<17xf32>
    %278 = vector.shape_cast %277 : vector<17xf32> to vector<17x1xf32>
    %279 = vector.broadcast %278 : vector<17x1xf32> to vector<17x17xf32>
    %280 = arith.subf %276, %279 : vector<17x17xf32>
    %281 = math.exp %280 : vector<17x17xf32>
    %cst_128 = arith.constant dense<0.000000e+00> : vector<17xf32>
    %282 = vector.multi_reduction <add>, %281, %cst_128 [1] : vector<17x17xf32> to vector<17xf32>
    %283 = vector.shape_cast %282 : vector<17xf32> to vector<17x1xf32>
    %284 = tpu.reciprocal %283 {approx = true} : vector<17x1xf32> -> vector<17x1xf32>
    %285 = vector.broadcast %284 : vector<17x1xf32> to vector<17x17xf32>
    %286 = arith.mulf %281, %285 : vector<17x17xf32>
    %287 = arith.truncf %286 : vector<17x17xf32> to vector<17x17xbf16>
    %288 = arith.truncf %271 : vector<17x8xf32> to vector<17x8xbf16>
    %cst_129 = arith.constant dense<0.000000e+00> : vector<17x8xf32>
    %289 = tpu.matmul %287, %288, %cst_129 {dimension_numbers = #tpu.dot_dimension_numbers<[1], [0], [0], [1], [0, 0, 1, 1], [], []>} : vector<17x17xbf16>, vector<17x8xbf16>, vector<17x8xf32> -> vector<17x8xf32>
    %290 = vector.extract_strided_slice %247 {offsets = [0, 16], sizes = [17, 8], strides = [1, 1]} : vector<17x96xf32> to vector<17x8xf32>
    %291 = vector.extract_strided_slice %247 {offsets = [0, 48], sizes = [17, 8], strides = [1, 1]} : vector<17x96xf32> to vector<17x8xf32>
    %292 = vector.extract_strided_slice %247 {offsets = [0, 80], sizes = [17, 8], strides = [1, 1]} : vector<17x96xf32> to vector<17x8xf32>
    %293 = arith.truncf %290 : vector<17x8xf32> to vector<17x8xbf16>
    %294 = arith.truncf %291 : vector<17x8xf32> to vector<17x8xbf16>
    "tpu.trace_start"() <{level = 10 : i32, message = "qd,kd->qk"}> : () -> ()
    %cst_130 = arith.constant dense<0.000000e+00> : vector<17x17xf32>
    %295 = tpu.matmul %293, %294, %cst_130 {dimension_numbers = #tpu.dot_dimension_numbers<[1], [1], [0], [0], [0, 0, 1, 0], [], []>} : vector<17x8xbf16>, vector<17x8xbf16>, vector<17x17xf32> -> vector<17x17xf32>
    "tpu.trace_stop"() : () -> ()
    %cst_131 = arith.constant 0.353553385 : f32
    %296 = vector.broadcast %cst_131 : f32 to vector<17x17xf32>
    %297 = arith.mulf %295, %296 : vector<17x17xf32>
    %cst_132 = arith.constant dense<0xFF800000> : vector<17xf32>
    %298 = vector.multi_reduction <maximumf>, %297, %cst_132 [1] : vector<17x17xf32> to vector<17xf32>
    %299 = vector.shape_cast %298 : vector<17xf32> to vector<17x1xf32>
    %300 = vector.broadcast %299 : vector<17x1xf32> to vector<17x17xf32>
    %301 = arith.subf %297, %300 : vector<17x17xf32>
    %302 = math.exp %301 : vector<17x17xf32>
    %cst_133 = arith.constant dense<0.000000e+00> : vector<17xf32>
    %303 = vector.multi_reduction <add>, %302, %cst_133 [1] : vector<17x17xf32> to vector<17xf32>
    %304 = vector.shape_cast %303 : vector<17xf32> to vector<17x1xf32>
    %305 = tpu.reciprocal %304 {approx = true} : vector<17x1xf32> -> vector<17x1xf32>
    %306 = vector.broadcast %305 : vector<17x1xf32> to vector<17x17xf32>
    %307 = arith.mulf %302, %306 : vector<17x17xf32>
    %308 = arith.truncf %307 : vector<17x17xf32> to vector<17x17xbf16>
    %309 = arith.truncf %292 : vector<17x8xf32> to vector<17x8xbf16>
    %cst_134 = arith.constant dense<0.000000e+00> : vector<17x8xf32>
    %310 = tpu.matmul %308, %309, %cst_134 {dimension_numbers = #tpu.dot_dimension_numbers<[1], [0], [0], [1], [0, 0, 1, 1], [], []>} : vector<17x17xbf16>, vector<17x8xbf16>, vector<17x8xf32> -> vector<17x8xf32>
    %311 = vector.extract_strided_slice %247 {offsets = [0, 24], sizes = [17, 8], strides = [1, 1]} : vector<17x96xf32> to vector<17x8xf32>
    %312 = vector.extract_strided_slice %247 {offsets = [0, 56], sizes = [17, 8], strides = [1, 1]} : vector<17x96xf32> to vector<17x8xf32>
    %313 = vector.extract_strided_slice %247 {offsets = [0, 88], sizes = [17, 8], strides = [1, 1]} : vector<17x96xf32> to vector<17x8xf32>
    %314 = arith.truncf %311 : vector<17x8xf32> to vector<17x8xbf16>
    %315 = arith.truncf %312 : vector<17x8xf32> to vector<17x8xbf16>
    "tpu.trace_start"() <{level = 10 : i32, message = "qd,kd->qk"}> : () -> ()
    %cst_135 = arith.constant dense<0.000000e+00> : vector<17x17xf32>
    %316 = tpu.matmul %314, %315, %cst_135 {dimension_numbers = #tpu.dot_dimension_numbers<[1], [1], [0], [0], [0, 0, 1, 0], [], []>} : vector<17x8xbf16>, vector<17x8xbf16>, vector<17x17xf32> -> vector<17x17xf32>
    "tpu.trace_stop"() : () -> ()
    %cst_136 = arith.constant 0.353553385 : f32
    %317 = vector.broadcast %cst_136 : f32 to vector<17x17xf32>
    %318 = arith.mulf %316, %317 : vector<17x17xf32>
    %cst_137 = arith.constant dense<0xFF800000> : vector<17xf32>
    %319 = vector.multi_reduction <maximumf>, %318, %cst_137 [1] : vector<17x17xf32> to vector<17xf32>
    %320 = vector.shape_cast %319 : vector<17xf32> to vector<17x1xf32>
    %321 = vector.broadcast %320 : vector<17x1xf32> to vector<17x17xf32>
    %322 = arith.subf %318, %321 : vector<17x17xf32>
    %323 = math.exp %322 : vector<17x17xf32>
    %cst_138 = arith.constant dense<0.000000e+00> : vector<17xf32>
    %324 = vector.multi_reduction <add>, %323, %cst_138 [1] : vector<17x17xf32> to vector<17xf32>
    %325 = vector.shape_cast %324 : vector<17xf32> to vector<17x1xf32>
    %326 = tpu.reciprocal %325 {approx = true} : vector<17x1xf32> -> vector<17x1xf32>
    %327 = vector.broadcast %326 : vector<17x1xf32> to vector<17x17xf32>
    %328 = arith.mulf %323, %327 : vector<17x17xf32>
    %329 = arith.truncf %328 : vector<17x17xf32> to vector<17x17xbf16>
    %330 = arith.truncf %313 : vector<17x8xf32> to vector<17x8xbf16>
    %cst_139 = arith.constant dense<0.000000e+00> : vector<17x8xf32>
    %331 = tpu.matmul %329, %330, %cst_139 {dimension_numbers = #tpu.dot_dimension_numbers<[1], [0], [0], [1], [0, 0, 1, 1], [], []>} : vector<17x17xbf16>, vector<17x8xbf16>, vector<17x8xf32> -> vector<17x8xf32>
    %332 = tpu.concatenate %268, %289, %310, %331 in 1 : vector<17x8xf32>, vector<17x8xf32>, vector<17x8xf32>, vector<17x8xf32> -> vector<17x32xf32>
    %333 = arith.truncf %332 : vector<17x32xf32> to vector<17x32xbf16>
    %cst_140 = arith.constant dense<0.000000e+00> : vector<17x32xf32>
    %334 = tpu.matmul %333, %201, %cst_140 {dimension_numbers = #tpu.dot_dimension_numbers<[1], [0], [0], [1], [0, 0, 1, 1], [], []>} : vector<17x32xbf16>, vector<32x32xbf16>, vector<17x32xf32> -> vector<17x32xf32>
    %335 = arith.addf %197, %334 : vector<17x32xf32>
    %336 = vector.broadcast %217 : vector<1x32xf32> to vector<17x32xf32>
    %337 = arith.addf %335, %336 : vector<17x32xf32>
    %cst_141 = arith.constant dense<0.000000e+00> : vector<17xf32>
    %338 = vector.multi_reduction <add>, %337, %cst_141 [1] : vector<17x32xf32> to vector<17xf32>
    %339 = vector.shape_cast %338 : vector<17xf32> to vector<17x1xf32>
    %340 = arith.mulf %337, %337 : vector<17x32xf32>
    %cst_142 = arith.constant dense<0.000000e+00> : vector<17xf32>
    %341 = vector.multi_reduction <add>, %340, %cst_142 [1] : vector<17x32xf32> to vector<17xf32>
    %342 = vector.shape_cast %341 : vector<17xf32> to vector<17x1xf32>
    %cst_143 = arith.constant 3.125000e-02 : f32
    %343 = vector.broadcast %cst_143 : f32 to vector<17x1xf32>
    %344 = arith.mulf %339, %343 : vector<17x1xf32>
    %cst_144 = arith.constant 3.125000e-02 : f32
    %345 = vector.broadcast %cst_144 : f32 to vector<17x1xf32>
    %346 = arith.mulf %342, %345 : vector<17x1xf32>
    %347 = arith.mulf %344, %344 : vector<17x1xf32>
    %348 = arith.subf %346, %347 : vector<17x1xf32>
    %349 = vector.broadcast %344 : vector<17x1xf32> to vector<17x32xf32>
    %350 = arith.subf %337, %349 : vector<17x32xf32>
    %cst_145 = arith.constant 9.99999997E-7 : f32
    %351 = vector.broadcast %cst_145 : f32 to vector<17x1xf32>
    %352 = arith.addf %348, %351 : vector<17x1xf32>
    %353 = math.rsqrt %352 : vector<17x1xf32>
    %354 = vector.broadcast %353 : vector<17x1xf32> to vector<17x32xf32>
    %355 = arith.mulf %350, %354 : vector<17x32xf32>
    %356 = vector.broadcast %211 : vector<1x32xf32> to vector<17x32xf32>
    %357 = arith.mulf %355, %356 : vector<17x32xf32>
    %358 = vector.broadcast %213 : vector<1x32xf32> to vector<17x32xf32>
    %359 = arith.addf %357, %358 : vector<17x32xf32>
    %360 = arith.truncf %359 : vector<17x32xf32> to vector<17x32xbf16>
    %cst_146 = arith.constant dense<0.000000e+00> : vector<17x64xf32>
    %361 = tpu.matmul %360, %203, %cst_146 {dimension_numbers = #tpu.dot_dimension_numbers<[1], [0], [0], [1], [0, 0, 1, 1], [], []>} : vector<17x32xbf16>, vector<32x64xbf16>, vector<17x64xf32> -> vector<17x64xf32>
    %362 = vector.broadcast %219 : vector<1x64xf32> to vector<17x64xf32>
    %363 = arith.addf %361, %362 : vector<17x64xf32>
    %cst_147 = arith.constant 5.000000e-01 : f32
    %364 = vector.broadcast %cst_147 : f32 to vector<17x64xf32>
    %365 = arith.mulf %364, %363 : vector<17x64xf32>
    %cst_148 = arith.constant 4.471500e-02 : f32
    %366 = vector.broadcast %cst_148 : f32 to vector<17x64xf32>
    %367 = arith.mulf %366, %363 : vector<17x64xf32>
    %368 = arith.mulf %367, %363 : vector<17x64xf32>
    %369 = arith.mulf %368, %363 : vector<17x64xf32>
    %370 = arith.addf %363, %369 : vector<17x64xf32>
    %cst_149 = arith.constant 0.797884583 : f32
    %371 = vector.broadcast %cst_149 : f32 to vector<17x64xf32>
    %372 = arith.mulf %371, %370 : vector<17x64xf32>
    %373 = math.tanh %372 : vector<17x64xf32>
    %cst_150 = arith.constant 1.000000e+00 : f32
    %374 = vector.broadcast %cst_150 : f32 to vector<17x64xf32>
    %375 = arith.addf %374, %373 : vector<17x64xf32>
    %376 = arith.mulf %365, %375 : vector<17x64xf32>
    %377 = arith.truncf %376 : vector<17x64xf32> to vector<17x64xbf16>
    %cst_151 = arith.constant dense<0.000000e+00> : vector<17x32xf32>
    %378 = tpu.matmul %377, %205, %cst_151 {dimension_numbers = #tpu.dot_dimension_numbers<[1], [0], [0], [1], [0, 0, 1, 1], [], []>} : vector<17x64xbf16>, vector<64x32xbf16>, vector<17x32xf32> -> vector<17x32xf32>
    %379 = vector.broadcast %221 : vector<1x32xf32> to vector<17x32xf32>
    %380 = arith.addf %378, %379 : vector<17x32xf32>
    %381 = arith.addf %337, %380 : vector<17x32xf32>
    %382 = vector.extract_strided_slice %381 {offsets = [16, 0], sizes = [1, 32], strides = [1, 1]} : vector<17x32xf32> to vector<1x32xf32>
    %c18 = arith.constant 18 : index
    %c0_152 = arith.constant 0 : index
    %383 = vector.load %arg5[%c18, %c0_152] : memref<24x128xf32, #tpu.memory_space<vmem>>, vector<1x32xf32>
    %c19 = arith.constant 19 : index
    %c0_153 = arith.constant 0 : index
    %384 = vector.load %arg5[%c19, %c0_153] : memref<24x128xf32, #tpu.memory_space<vmem>>, vector<1x32xf32>
    %cst_154 = arith.constant dense<0.000000e+00> : vector<1xf32>
    %385 = vector.multi_reduction <add>, %382, %cst_154 [1] : vector<1x32xf32> to vector<1xf32>
    %386 = vector.shape_cast %385 : vector<1xf32> to vector<1x1xf32>
    %387 = arith.mulf %382, %382 : vector<1x32xf32>
    %cst_155 = arith.constant dense<0.000000e+00> : vector<1xf32>
    %388 = vector.multi_reduction <add>, %387, %cst_155 [1] : vector<1x32xf32> to vector<1xf32>
    %389 = vector.shape_cast %388 : vector<1xf32> to vector<1x1xf32>
    %cst_156 = arith.constant 3.125000e-02 : f32
    %390 = vector.broadcast %cst_156 : f32 to vector<1x1xf32>
    %391 = arith.mulf %386, %390 : vector<1x1xf32>
    %cst_157 = arith.constant 3.125000e-02 : f32
    %392 = vector.broadcast %cst_157 : f32 to vector<1x1xf32>
    %393 = arith.mulf %389, %392 : vector<1x1xf32>
    %394 = arith.mulf %391, %391 : vector<1x1xf32>
    %395 = arith.subf %393, %394 : vector<1x1xf32>
    %396 = vector.broadcast %391 : vector<1x1xf32> to vector<1x32xf32>
    %397 = arith.subf %382, %396 : vector<1x32xf32>
    %cst_158 = arith.constant 9.99999997E-7 : f32
    %398 = vector.broadcast %cst_158 : f32 to vector<1x1xf32>
    %399 = arith.addf %395, %398 : vector<1x1xf32>
    %400 = math.rsqrt %399 : vector<1x1xf32>
    %401 = vector.broadcast %400 : vector<1x1xf32> to vector<1x32xf32>
    %402 = arith.mulf %397, %401 : vector<1x32xf32>
    %403 = arith.mulf %402, %383 : vector<1x32xf32>
    %404 = arith.addf %403, %384 : vector<1x32xf32>
    %405 = arith.truncf %404 : vector<1x32xf32> to vector<1x32xbf16>
    %c64_159 = arith.constant 64 : index
    %c0_160 = arith.constant 0 : index
    %406 = vector.load %arg4[%c64_159, %c0_160] : memref<96x128xbf16, #tpu.memory_space<vmem>>, vector<32x128xbf16>
    %cst_161 = arith.constant dense<0.000000e+00> : vector<1x128xf32>
    %407 = tpu.matmul %405, %406, %cst_161 {dimension_numbers = #tpu.dot_dimension_numbers<[1], [0], [0], [1], [0, 0, 1, 1], [], []>} : vector<1x32xbf16>, vector<32x128xbf16>, vector<1x128xf32> -> vector<1x128xf32>
    %c20 = arith.constant 20 : index
    %c0_162 = arith.constant 0 : index
    %408 = vector.load %arg5[%c20, %c0_162] : memref<24x128xf32, #tpu.memory_space<vmem>>, vector<1x128xf32>
    %409 = arith.addf %407, %408 : vector<1x128xf32>
    %c0_163 = arith.constant 0 : index
    %c0_164 = arith.constant 0 : index
    %c0_165 = arith.constant 0 : index
    %410 = vector.load %arg6[%c0_163, %c0_164, %c0_165] : memref<1x1x128xf32, #tpu.memory_space<vmem>>, vector<1x1x128xf32>
    %411 = vector.shape_cast %410 : vector<1x1x128xf32> to vector<1x128xf32>
    %412 = vector.shape_cast %409 : vector<1x128xf32> to vector<1x1x128xf32>
    tpu.vector_store %arg6[%c0_163, %c0_164, %c0_165], %412 {strides = array<i32>} : memref<1x1x128xf32, #tpu.memory_space<vmem>>, vector<1x1x128xf32>,
    return
  }
  func.func @transform_0(%arg0: i32) -> (i32, i32, i32) {
    %c0_i32 = arith.constant 0 : i32
    %c0_i32_0 = arith.constant 0 : i32
    %c0_i32_1 = arith.constant 0 : i32
    return %arg0, %c0_i32, %c0_i32_0 : i32, i32, i32
  }
  func.func @transform_1(%arg0: i32) -> (i32, i32, i32) {
    %c0_i32 = arith.constant 0 : i32
    %c0_i32_0 = arith.constant 0 : i32
    %c0_i32_1 = arith.constant 0 : i32
    %c0_i32_2 = arith.constant 0 : i32
    return %c0_i32, %c0_i32_0, %c0_i32_1 : i32, i32, i32
  }
  func.func @transform_2(%arg0: i32) -> (i32, i32, i32) {
    %c0_i32 = arith.constant 0 : i32
    %c0_i32_0 = arith.constant 0 : i32
    %c0_i32_1 = arith.constant 0 : i32
    %c0_i32_2 = arith.constant 0 : i32
    return %c0_i32, %c0_i32_0, %c0_i32_1 : i32, i32, i32
  }
  func.func @transform_3(%arg0: i32) -> (i32, i32) {
    %c0_i32 = arith.constant 0 : i32
    %c0_i32_0 = arith.constant 0 : i32
    %c0_i32_1 = arith.constant 0 : i32
    return %c0_i32, %c0_i32_0 : i32, i32
  }
  func.func @transform_4(%arg0: i32) -> (i32, i32) {
    %c0_i32 = arith.constant 0 : i32
    %c0_i32_0 = arith.constant 0 : i32
    %c0_i32_1 = arith.constant 0 : i32
    return %c0_i32, %c0_i32_0 : i32, i32
  }
  func.func @transform_5(%arg0: i32) -> (i32, i32, i32) {
    %c0_i32 = arith.constant 0 : i32
    %c0_i32_0 = arith.constant 0 : i32
    %c0_i32_1 = arith.constant 0 : i32
    return %arg0, %c0_i32, %c0_i32_0 : i32, i32, i32
  }
}

</mosaic_0001>

<llo_original>
// kernel: vit_forward.1
$region0: #{vit_forward.1}
  #allocation0 [shape = 'u32[]', space=smem, size = 0x4, offset = 0x4, fixed_abs, tag = 'smem constant byte address 0x4 - core index']
  #allocation1 [shape = 'u32[144,128]{1,0:T(1,128)}', space=vmem, size = 0x12000, scoped, tag = 'internal scratch']
  #allocation2 [shape = 'f32[17,32]{1,0:T(8,128)}', space=vmem, size = 0x3000, scoped, tag = 'scratch operand']
  %s0 = inlined_call_operand.vmem [shape: f32[2,16,64], index: 0, kind: input, shape index: {}]
  %s1 = inlined_call_operand.vmem [shape: bf16[2,160,128], index: 1, kind: input, shape index: {}]
  %s2 = inlined_call_operand.vmem [shape: f32[2,8,128], index: 2, kind: input, shape index: {}]
  %s3 = inlined_call_operand.vmem [shape: bf16[96,128], index: 3, kind: input, shape index: {}]
  %s4 = inlined_call_operand.vmem [shape: f32[24,128], index: 4, kind: input, shape index: {}]
  %s5 = inlined_call_operand.hbm [shape: f32[2,1,128], index: 5, kind: output, shape index: {}]
  %s6 = sld [smem:[#allocation0]]
  $region53: #{vit_forward.1} parent=0
    _
  %s8 = ssub.s32 1, %s6
  %s9 = scalar_select 0, %s8, %s6
  $region1: #{vit_forward.1} parent=0
    #allocation3 [shape = 'u8[1024]{0}', space=vmem, size = 0x400, scoped, tag = 'output window, operand 0']
    #allocation4 [shape = 's32[2]{0}', space=sflag, size = 0x8, scoped, tag = 'scoped memory for vit_forward.1']
    %10 = vsyncpa [#allocation4], 0
    %s11 = scalar_lea.sflag [#allocation4], 1
    %12 = vsyncpa %s11, 0
    loop: start=0, step=1, limit=4
    $region2: #{vit_forward.1} parent=1 // loop_pre_header
      _
    $region3: #{vit_forward.1} parent=1 // loop_header
      %s14 = sphi 0, %s18
      %p15 = scmp.ge.s32.totalorder %s14, 4
      %s24 = sphi 0, %s26
      %s27 = sphi 0, %s24
      %s28 = sphi 0, %s27
      %s44 = sphi 0, %s28
      %s48 = sphi 0, %s48
      %s50 = sphi 0, %s48
      %s51 = sphi 0, %s50
      %s65 = sphi 0, %s51
      %s69 = sphi 0, %s69
      %s71 = sphi 0, %s69
      %s72 = sphi 0, %s71
      %s86 = sphi 0, %s72
      %s90 = sphi 0, %s90
      %s92 = sphi 0, %s90
      %s93 = sphi 0, %s92
      %s107 = sphi 0, %s93
      %s111 = sphi 0, %s111
      %s113 = sphi 0, %s111
      %s114 = sphi 0, %s113
      %s128 = sphi 0, %s114
      %s134 = sphi 0, %s136
      %s137 = sphi 0, %s134
      %s138 = sphi 0, %s137
      %s154 = sphi 0, %s138
    $region4: #{vit_forward.1} parent=1 // loop_header_branch
      %17 = sbr.rel (%p15) target = $region8
    $region5: #{vit_forward.1} parent=1 // loop_body
      %s19 = ssub.s32 %s14, 1
      %s20 = ssub.s32 %s14, 2
      %s21 = sadd.s32 %s14, 1
      %s22 = ssub.s32 %s14, %s21
      %p23 = scmp.eq.s32.totalorder %s22, 0
      %s25 = sadd.s32 %s24, 1
      %s26 = scalar_select %p23, %s24, %s25
      %p29 = pneg %p23
      %p30 = scmp.eq.s32.totalorder %s14, 1
      %p31 = por %p29, %p30
      %p32 = scmp.ne.s32.totalorder %s24, %s27
      %p33 = scmp.eq.s32.totalorder %s14, 0
      %p34 = por %p32, %p33
      %p35 = scmp.ne.s32.totalorder %s24, %s27
      %p36 = scmp.eq.s32.totalorder %s19, 1
      %p37 = por %p35, %p36
      %p38 = scmp.ne.s32.totalorder %s27, %s28
      %p39 = scmp.eq.s32.totalorder %s19, 0
      %p40 = por %p38, %p39
      %p41 = scmp.ne.s32.totalorder %s27, %s28
      %p42 = scmp.eq.s32.totalorder %s20, 1
      %p43 = por %p41, %p42
      %p45 = scmp.ne.s32.totalorder %s28, %s44
      %p46 = scmp.eq.s32.totalorder %s20, 0
      %p47 = por %p45, %p46
      %s49 = sadd.s32 %s48, 1
      %p52 = scmp.eq.s32.totalorder %s14, 1
      %p53 = scmp.ne.s32.totalorder %s48, %s50
      %p54 = scmp.eq.s32.totalorder %s14, 0
      %p55 = por %p53, %p54
      %p56 = scmp.ne.s32.totalorder %s48, %s50
      %p57 = scmp.eq.s32.totalorder %s19, 1
      %p58 = por %p56, %p57
      %p59 = scmp.ne.s32.totalorder %s50, %s51
      %p60 = scmp.eq.s32.totalorder %s19, 0
      %p61 = por %p59, %p60
      %p62 = scmp.ne.s32.totalorder %s50, %s51
      %p63 = scmp.eq.s32.totalorder %s20, 1
      %p64 = por %p62, %p63
      %p66 = scmp.ne.s32.totalorder %s51, %s65
      %p67 = scmp.eq.s32.totalorder %s20, 0
      %p68 = por %p66, %p67
      %s70 = sadd.s32 %s69, 1
      %p73 = scmp.eq.s32.totalorder %s14, 1
      %p74 = scmp.ne.s32.totalorder %s69, %s71
      %p75 = scmp.eq.s32.totalorder %s14, 0
      %p76 = por %p74, %p75
      %p77 = scmp.ne.s32.totalorder %s69, %s71
      %p78 = scmp.eq.s32.totalorder %s19, 1
      %p79 = por %p77, %p78
      %p80 = scmp.ne.s32.totalorder %s71, %s72
      %p81 = scmp.eq.s32.totalorder %s19, 0
      %p82 = por %p80, %p81
      %p83 = scmp.ne.s32.totalorder %s71, %s72
      %p84 = scmp.eq.s32.totalorder %s20, 1
      %p85 = por %p83, %p84
      %p87 = scmp.ne.s32.totalorder %s72, %s86
      %p88 = scmp.eq.s32.totalorder %s20, 0
      %p89 = por %p87, %p88
      %s91 = sadd.s32 %s90, 1
      %p94 = scmp.eq.s32.totalorder %s14, 1
      %p95 = scmp.ne.s32.totalorder %s90, %s92
      %p96 = scmp.eq.s32.totalorder %s14, 0
      %p97 = por %p95, %p96
      %p98 = scmp.ne.s32.totalorder %s90, %s92
      %p99 = scmp.eq.s32.totalorder %s19, 1
      %p100 = por %p98, %p99
      %p101 = scmp.ne.s32.totalorder %s92, %s93
      %p102 = scmp.eq.s32.totalorder %s19, 0
      %p103 = por %p101, %p102
      %p104 = scmp.ne.s32.totalorder %s92, %s93
      %p105 = scmp.eq.s32.totalorder %s20, 1
      %p106 = por %p104, %p105
      %p108 = scmp.ne.s32.totalorder %s93, %s107
      %p109 = scmp.eq.s32.totalorder %s20, 0
      %p110 = por %p108, %p109
      %s112 = sadd.s32 %s111, 1
      %p115 = scmp.eq.s32.totalorder %s14, 1
      %p116 = scmp.ne.s32.totalorder %s111, %s113
      %p117 = scmp.eq.s32.totalorder %s14, 0
      %p118 = por %p116, %p117
      %p119 = scmp.ne.s32.totalorder %s111, %s113
      %p120 = scmp.eq.s32.totalorder %s19, 1
      %p121 = por %p119, %p120
      %p122 = scmp.ne.s32.totalorder %s113, %s114
      %p123 = scmp.eq.s32.totalorder %s19, 0
      %p124 = por %p122, %p123
      %p125 = scmp.ne.s32.totalorder %s113, %s114
      %p126 = scmp.eq.s32.totalorder %s20, 1
      %p127 = por %p125, %p126
      %p129 = scmp.ne.s32.totalorder %s114, %s128
      %p130 = scmp.eq.s32.totalorder %s20, 0
      %p131 = por %p129, %p130
      %s132 = ssub.s32 %s14, %s21
      %p133 = scmp.eq.s32.totalorder %s132, 0
      %s135 = sadd.s32 %s134, 1
      %s136 = scalar_select %p133, %s134, %s135
      %p139 = pneg %p133
      %p140 = scmp.eq.s32.totalorder %s14, 1
      %p141 = por %p139, %p140
      %p142 = scmp.ne.s32.totalorder %s134, %s137
      %p143 = scmp.eq.s32.totalorder %s14, 0
      %p144 = por %p142, %p143
      %p145 = scmp.ne.s32.totalorder %s134, %s137
      %p146 = scmp.eq.s32.totalorder %s19, 1
      %p147 = por %p145, %p146
      %p148 = scmp.ne.s32.totalorder %s137, %s138
      %p149 = scmp.eq.s32.totalorder %s19, 0
      %p150 = por %p148, %p149
      %p151 = scmp.ne.s32.totalorder %s137, %s138
      %p152 = scmp.eq.s32.totalorder %s20, 1
      %p153 = por %p151, %p152
      %p155 = scmp.ne.s32.totalorder %s138, %s154
      %p156 = scmp.eq.s32.totalorder %s20, 0
      %p157 = por %p155, %p156
      %p158 = scmp.le.s32.totalorder 1, %s14
      %p159 = scmp.lt.s32.totalorder %s14, 3
      %p160 = pnand %p158, %p159
      %p161 = pneg %p160
      // Predicated region
      $region9: #{vit_forward.1} parent=5 // pred_check
        _
      $region10: #{vit_forward.1} parent=5 // pred_check_branch
        %163 = sbr.rel (%p160) target = $region12
      $region11: #{vit_forward.1} parent=5 // pred_region
        %s164 = ssub.s32 %s14, 1
        // Predicated region
        $region13: #{vit_forward.1} parent=11 // pred_check
          %p165 = pneg %p61
        $region14: #{vit_forward.1} parent=11 // pred_check_branch
          %167 = sbr.rel (%p165) target = $region16
        $region15: #{vit_forward.1} parent=11 // pred_region
          _
        $region16: #{vit_forward.1} parent=11 // pred_fallthru
          _
        // Predicated region
        $region17: #{vit_forward.1} parent=11 // pred_check
          %p168 = pneg %p82
        $region18: #{vit_forward.1} parent=11 // pred_check_branch
          %170 = sbr.rel (%p168) target = $region20
        $region19: #{vit_forward.1} parent=11 // pred_region
          _
        $region20: #{vit_forward.1} parent=11 // pred_fallthru
          _
        // Predicated region
        $region21: #{vit_forward.1} parent=11 // pred_check
          %p171 = pneg %p103
        $region22: #{vit_forward.1} parent=11 // pred_check_branch
          %173 = sbr.rel (%p171) target = $region24
        $region23: #{vit_forward.1} parent=11 // pred_region
          _
        $region24: #{vit_forward.1} parent=11 // pred_fallthru
          _
        // Predicated region
        $region25: #{vit_forward.1} parent=11 // pred_check
          %p174 = pneg %p124
        $region26: #{vit_forward.1} parent=11 // pred_check_branch
          %176 = sbr.rel (%p174) target = $region28
        $region27: #{vit_forward.1} parent=11 // pred_region
          _
        $region28: #{vit_forward.1} parent=11 // pred_fallthru
          _
      $region12: #{vit_forward.1} parent=5 // pred_fallthru
        _
      %p177 = scmp.lt.s32.totalorder %s14, 2
      // Predicated region
      $region29: #{vit_forward.1} parent=5 // pred_check
        %p178 = pneg %p177
      $region30: #{vit_forward.1} parent=5 // pred_check_branch
        %180 = sbr.rel (%p178) target = $region32
      $region31: #{vit_forward.1} parent=5 // pred_region
        // Predicated region
        $region33: #{vit_forward.1} parent=31 // pred_check
          %p181 = pneg %p34
        $region34: #{vit_forward.1} parent=31 // pred_check_branch
          %183 = sbr.rel (%p181) target = $region36
        $region35: #{vit_forward.1} parent=31 // pred_region
          %p184 = scmp.lt.s32.totalorder %s14, 1
          %s185 = scalar_select %p184, %s14, 1
          %s186 = smul.addr %s185, 2
          %s187 = smul.addr %s186, 8
          %s188 = scalar_lea.vmem %s0, %s187
        $region36: #{vit_forward.1} parent=31 // pred_fallthru
          _
      $region32: #{vit_forward.1} parent=5 // pred_fallthru
        _
      %p189 = scmp.le.s32.totalorder 1, %s14
      %p190 = scmp.lt.s32.totalorder %s14, 3
      %p191 = pnand %p189, %p190
      %p192 = pneg %p191
      // Predicated region
      $region37: #{vit_forward.1} parent=5 // pred_check
        _
      $region38: #{vit_forward.1} parent=5 // pred_check_branch
        %194 = sbr.rel (%p191) target = $region40
      $region39: #{vit_forward.1} parent=5 // pred_region
        %s195 = ssub.s32 %s14, 1
        %p196 = scmp.lt.s32.totalorder %s19, 1
        %s197 = scalar_select %p196, %s19, 1
        %s198 = smul.addr %s197, 2
        %s199 = smul.addr %s198, 8
        %s200 = scalar_lea.vmem %s0, %s199
        %p201 = pneg %p40
        %p202 = pneg %p37
        %p203 = pneg %p61
        %p204 = pneg %p58
        %p205 = pneg %p82
        %p206 = pneg %p79
        %p207 = pneg %p103
        %p208 = pneg %p100
        %p209 = pneg %p124
        %p210 = pneg %p121
        %p211 = pneg %p150
        %p212 = pneg %p147
        %s213 = sand.u32 %s137, 1
        %s214 = scalar_lea.sflag [#allocation4], %s213
        %s215 = sand.u32 %s137, 1
        %s216 = scalar_lea.vmem [#allocation3], %s215
        %p217 = scmp.lt.s32.totalorder %s19, 1
        %s218 = scalar_select %p217, %s19, 1
        %s219 = smul.addr %s218, 2
        %s220 = smul.addr %s219, 8
        %s221 = scalar_lea.vmem %s0, %s220
        %v223 = vld [vmem:[%s221] sm:$0xff]
        %v224 = vld [vmem:[%s221 + $0x8] sm:$0xff]
        %v225 = vpack.c.bf16 %v224, %v223
        %v226 = vld [vmem:[%s3] sm:$0xf]
        %v227 = vld [vmem:[%s3 + $0x4] sm:$0xf]
        %v228 = vld [vmem:[%s3 + $0x8] sm:$0xf]
        %v229 = vld [vmem:[%s3 + $0xc] sm:$0xf]
        %v230 = vld [vmem:[%s3 + $0x10] sm:$0xf]
        %v231 = vld [vmem:[%s3 + $0x14] sm:$0xf]
        %v232 = vld [vmem:[%s3 + $0x18] sm:$0xf]
        %v233 = vld [vmem:[%s3 + $0x1c] sm:$0xf]
        %v234 = vld [vmem:[%s4 + $0x11] sm:$0x1]
        %v235 = vlaneseq
        %v236 = vshrl.u32 %v235, 7
        %v237 = vsub.s32 0, %v236
        %v238 = vrot.slane %v234, %v237
        %v247 = vunpack.c.l.b16 %v226
        %v248 = vunpack.c.l.b16 %v227
        %v249 = vunpack.c.l.b16 %v228
        %v250 = vunpack.c.l.b16 %v229
        %v251 = vunpack.c.l.b16 %v230
        %v252 = vunpack.c.l.b16 %v231
        %v253 = vunpack.c.l.b16 %v232
        %v254 = vunpack.c.l.b16 %v233
        %v255 = vpack.c.b16 %v248, %v247
        %v256 = vpack.c.b16 %v250, %v249
        %v257 = vpack.c.b16 %v252, %v251
        %v258 = vpack.c.b16 %v254, %v253
        %vm263 = vcmask 523264
        %v265 = vsel %vm263, %v225, 0
        %267 = vmatprep.subr.bf16.mxu0 0
        %268 = vmatpush1.bf16.msra.mxu0 0
        %269 = vmatprep.subr.bf16.mxu0 0
        %270 = vmatpush1.bf16.msra.mxu0 0
        %271 = vmatprep.subr.bf16.mxu0 0
        %272 = vmatpush1.bf16.msra.mxu0 0
        %273 = vmatprep.subr.bf16.mxu0 0
        %274 = vmatpush1.bf16.msra.mxu0 0
        %275 = vmatprep.subr.bf16.mxu0 0
        %276 = vmatpush1.bf16.msra.mxu0 %v258
        %277 = vmatprep.subr.bf16.mxu0 0
        %278 = vmatpush1.bf16.msra.mxu0 %v257
        %279 = vmatprep.subr.bf16.mxu0 0
        %280 = vmatpush1.bf16.msra.mxu0 %v256
        %281 = vmatprep.subr.bf16.mxu0 0
        %282 = vmatpush1.bf16.msra.mxu0 %v255
        %283 = vmatprep.subr.bf16.mxu0 0
        %284 = vmatpush2.bf16.msra.mxu0 0
        %285 = vmatprep.subr.bf16.mxu0 0
        %286 = vmatpush2.bf16.msra.mxu0 0
        %287 = vmatprep.subr.bf16.mxu0 0
        %288 = vmatpush2.bf16.msra.mxu0 0
        %289 = vmatprep.subr.bf16.mxu0 0
        %290 = vmatpush2.bf16.msra.mxu0 0
        %291 = vmatprep.subr.bf16.mxu0 0
        %292 = vmatpush2.bf16.msra.mxu0 0
        %293 = vmatprep.subr.bf16.mxu0 0
        %294 = vmatpush2.bf16.msra.mxu0 0
        %295 = vmatprep.subr.bf16.mxu0 0
        %296 = vmatpush2.bf16.msra.mxu0 0
        %297 = vmatprep.subr.bf16.mxu0 0
        %298 = vmatpush2.bf16.msra.mxu0 0
        %299 = vmatprep.mubr.bf16.mxu0 0
        %300 = vmatmul.mubr.bf16.gmra.mxu0 %v265
        %v301 = vpop.f32.mrf.mxu0
        %v302 = vadd.f32 %v238, %v301
        %v303 = vpop.f32.mrf.mxu0
        %v304 = vpop.f32.mrf.mxu0
        %v305 = vadd.f32 %v238, %v304
        %v306 = vpop.f32.mrf.mxu0
        %307 = vdwg.mxu0
        %v308 = vld [vmem:[%s4] sm:$0xff]
        %v309 = vld [vmem:[%s4 + $0x8] sm:$0xff]
        %v310 = vadd.f32 %v302, %v308
        %v311 = vadd.f32 %v305, %v309
        %vm312 = vcmask 261120
        %313 = vst.msk [vmem:[#allocation2] sm:$0xff] %vm312, %v310
        %314 = vst.msk [vmem:[#allocation2 + $0x8] sm:$0xff] %vm312, %v311
        %v315 = vld [vmem:[%s4 + $0x10] sm:$0x1]
        %vm316 = vcmask 253952
        %317 = vst.msk [vmem:[#allocation2 + $0x10] sm:$0x1] %vm316, %v315
        %v318 = vld [vmem:[#allocation2] sm:$0xff]
        %v319 = vld [vmem:[#allocation2 + $0x8] sm:$0xff]
        %v320 = vld [vmem:[#allocation2 + $0x10] sm:$0x1]
        %v321 = vld [vmem:[%s1] sm:$0xf]
        %v322 = vld [vmem:[%s1 + $0x4] sm:$0xf]
        %v323 = vld [vmem:[%s1 + $0x8] sm:$0xf]
        %v324 = vld [vmem:[%s1 + $0xc] sm:$0xf]
        %v325 = vld [vmem:[%s1 + $0x10] sm:$0xf]
        %v326 = vld [vmem:[%s1 + $0x14] sm:$0xf]
        %v327 = vld [vmem:[%s1 + $0x18] sm:$0xf]
        %v328 = vld [vmem:[%s1 + $0x1c] sm:$0xf]
        %v329 = vld [vmem:[%s1 + $0x20] sm:$0xf]
        %v330 = vld [vmem:[%s1 + $0x24] sm:$0xf]
        %v331 = vld [vmem:[%s1 + $0x28] sm:$0xf]
        %v332 = vld [vmem:[%s1 + $0x2c] sm:$0xf]
        %v333 = vld [vmem:[%s1 + $0x30] sm:$0xf]
        %v334 = vld [vmem:[%s1 + $0x34] sm:$0xf]
        %v335 = vld [vmem:[%s1 + $0x38] sm:$0xf]
        %v336 = vld [vmem:[%s1 + $0x3c] sm:$0xf]
        %v337 = vld [vmem:[%s1 + $0x40] sm:$0xf]
        %v338 = vld [vmem:[%s1 + $0x44] sm:$0xf]
        %v339 = vld [vmem:[%s1 + $0x48] sm:$0xf]
        %v340 = vld [vmem:[%s1 + $0x4c] sm:$0xf]
        %v341 = vld [vmem:[%s2] sm:$0x1]
        %v342 = vld [vmem:[%s2 + $0x1] sm:$0x1]
        %v343 = vld [vmem:[%s2 + $0x2] sm:$0x1]
        %v344 = vld [vmem:[%s2 + $0x3] sm:$0x1]
        %v345 = vld [vmem:[%s2 + $0x4] sm:$0x1]
        %v346 = vld [vmem:[%s2 + $0x5] sm:$0x1]
        %v347 = vld [vmem:[%s2 + $0x6] sm:$0x1]
        %v348 = vld [vmem:[%s2 + $0x7] sm:$0x1]
        %v349 = vsel %vm312, %v318, 0.0
        %350 = vadd.xlane.f32.xlu0 %v349
        %v351 = vpop.xlane.xlu0 %350
        %v352 = vsel %vm312, %v319, 0.0
        %353 = vadd.xlane.f32.xlu0 %v352
        %v354 = vpop.xlane.xlu0 %353
        %v355 = vsel %vm316, %v320, 0.0
        %356 = vadd.xlane.f32.xlu0 %v355
        %v357 = vpop.xlane.xlu0 %356
        %v358 = vmul.f32 %v318, %v318
        %v359 = vmul.f32 %v319, %v319
        %v360 = vmul.f32 %v320, %v320
        %v361 = vsel %vm312, %v358, 0.0
        %362 = vadd.xlane.f32.xlu0 %v361
        %v363 = vpop.xlane.xlu0 %362
        %v364 = vsel %vm312, %v359, 0.0
        %365 = vadd.xlane.f32.xlu0 %v364
        %v366 = vpop.xlane.xlu0 %365
        %v367 = vsel %vm316, %v360, 0.0
        %368 = vadd.xlane.f32.xlu0 %v367
        %v369 = vpop.xlane.xlu0 %368
        %v370 = vmul.f32 %v351, 0.03125
        %v371 = vmul.f32 %v354, 0.03125
        %v372 = vmul.f32 %v357, 0.03125
        %v373 = vmul.f32 %v363, 0.03125
        %v374 = vmul.f32 %v366, 0.03125
        %v375 = vmul.f32 %v369, 0.03125
        %v376 = vmul.f32 %v370, %v370
        %v377 = vmul.f32 %v371, %v371
        %v378 = vmul.f32 %v372, %v372
        %v379 = vsub.f32 %v373, %v376
        %v380 = vsub.f32 %v374, %v377
        %v381 = vsub.f32 %v375, %v378
        %v382 = vsub.f32 %v318, %v370
        %v383 = vsub.f32 %v319, %v371
        %v384 = vsub.f32 %v320, %v372
        %v385 = vadd.f32 %v379, 1e-06
        %v386 = vadd.f32 %v380, 1e-06
        %v387 = vadd.f32 %v381, 1e-06
        %v388 = vrsqrt.pop %v385
        %v389 = vrsqrt.pop %v386
        %v390 = vrsqrt.pop %v387
        %v391 = vmul.f32 %v382, %v388
        %v392 = vmul.f32 %v383, %v389
        %v393 = vmul.f32 %v384, %v390
        %v394 = vlaneseq
        %v395 = vshrl.u32 %v394, 7
        %v396 = vsub.s32 0, %v395
        %v397 = vrot.slane %v341, %v396
        %v398 = vmul.f32 %v391, %v397
        %v399 = vmul.f32 %v392, %v397
        %v400 = vmul.f32 %v393, %v397
        %v401 = vlaneseq
        %v402 = vshrl.u32 %v401, 7
        %v403 = vsub.s32 0, %v402
        %v404 = vrot.slane %v342, %v403
        %v405 = vadd.f32 %v398, %v404
        %v406 = vadd.f32 %v399, %v404
        %v407 = vadd.f32 %v400, %v404
        %v408 = vpack.c.bf16 %v406, %v405
        %v409 = vpack.c.bf16 %v407, %v407
        %v410 = vlaneseq
        %v411 = vshrl.u32 %v410, 7
        %v412 = vsub.s32 0, %v411
        %v413 = vrot.slane %v345, %v412
        %v418 = vunpack.c.l.b16 %v321
        %v419 = vunpack.c.l.b16 %v322
        %v420 = vunpack.c.l.b16 %v323
        %v421 = vunpack.c.l.b16 %v324
        %v422 = vpack.c.b16 %v419, %v418
        %v423 = vpack.c.b16 %v421, %v420
        %v427 = vsel %vm312, %v408, 0
        %v430 = vsel %vm312, %v409, 0
        %432 = vmatprep.subr.bf16.mxu0 0
        %433 = vmatpush1.bf16.msra.mxu0 0
        %434 = vmatprep.subr.bf16.mxu0 0
        %435 = vmatpush1.bf16.msra.mxu0 0
        %436 = vmatprep.subr.bf16.mxu0 0
        %437 = vmatpush1.bf16.msra.mxu0 0
        %438 = vmatprep.subr.bf16.mxu0 0
        %439 = vmatpush1.bf16.msra.mxu0 0
        %440 = vmatprep.subr.bf16.mxu0 0
        %441 = vmatpush1.bf16.msra.mxu0 0
        %442 = vmatprep.subr.bf16.mxu0 0
        %443 = vmatpush1.bf16.msra.mxu0 0
        %444 = vmatprep.subr.bf16.mxu0 0
        %445 = vmatpush1.bf16.msra.mxu0 %v423
        %446 = vmatprep.subr.bf16.mxu0 0
        %447 = vmatpush1.bf16.msra.mxu0 %v422
        %448 = vmatprep.subr.bf16.mxu0 0
        %449 = vmatpush2.bf16.msra.mxu0 0
        %450 = vmatprep.subr.bf16.mxu0 0
        %451 = vmatpush2.bf16.msra.mxu0 0
        %452 = vmatprep.subr.bf16.mxu0 0
        %453 = vmatpush2.bf16.msra.mxu0 0
        %454 = vmatprep.subr.bf16.mxu0 0
        %455 = vmatpush2.bf16.msra.mxu0 0
        %456 = vmatprep.subr.bf16.mxu0 0
        %457 = vmatpush2.bf16.msra.mxu0 0
        %458 = vmatprep.subr.bf16.mxu0 0
        %459 = vmatpush2.bf16.msra.mxu0 0
        %460 = vmatprep.subr.bf16.mxu0 0
        %461 = vmatpush2.bf16.msra.mxu0 0
        %462 = vmatprep.subr.bf16.mxu0 0
        %463 = vmatpush2.bf16.msra.mxu0 0
        %464 = vmatprep.mubr.bf16.mxu0 0
        %465 = vmatmul.mubr.bf16.gmra.mxu0 %v427
        %v466 = vpop.f32.mrf.mxu0
        %v467 = vadd.f32 %v413, %v466
        %v468 = vpop.f32.mrf.mxu0
        %v469 = vpop.f32.mrf.mxu0
        %v470 = vadd.f32 %v413, %v469
        %v471 = vpop.f32.mrf.mxu0
        %472 = vmatprep.mubr.bf16.mxu0 0
        %473 = vmatmul.mubr.bf16.gmra.mxu0 %v430
        %v474 = vpop.f32.mrf.mxu0
        %v475 = vadd.f32 %v413, %v474
        %v476 = vpop.f32.mrf.mxu0
        %v477 = vpop.f32.mrf.mxu0
        %v478 = vpop.f32.mrf.mxu0
        %479 = vdwg.mxu0
        %v480 = vpack.c.bf16 %v470, %v467
        %v481 = vpack.c.bf16 %v475, %v475
        %484 = vrot.lane.b32.xlu0 %v480, 96
        %v485 = vpop.permute.xlu0 %484
        %486 = vrot.lane.b32.xlu0 %v481, 96
        %v487 = vpop.permute.xlu0 %486
        %vm488 = vcmask 64512
        %v490 = vsel %vm488, %v480, 0
        %v493 = vsel %vm488, %v481, 0
        %v496 = vsel %vm488, %v485, 0
        %v499 = vsel %vm488, %v487, 0
        %501 = vmatprep.subr.bf16.mxu0 0
        %502 = vmatpush1.bf16.xpose.msra.mxu0 0
        %503 = vmatprep.subr.bf16.mxu0 0
        %504 = vmatpush1.bf16.xpose.msra.mxu0 0
        %505 = vmatprep.subr.bf16.mxu0 0
        %506 = vmatpush1.bf16.xpose.msra.mxu0 0
        %507 = vmatprep.subr.bf16.mxu0 0
        %508 = vmatpush1.bf16.xpose.msra.mxu0 0
        %509 = vmatprep.subr.bf16.mxu0 0
        %510 = vmatpush1.bf16.xpose.msra.mxu0 0
        %511 = vmatprep.subr.bf16.mxu0 0
        %512 = vmatpush1.bf16.xpose.msra.mxu0 0
        %513 = vmatprep.subr.bf16.mxu0 0
        %514 = vmatpush1.bf16.xpose.msra.mxu0 %v499
        %515 = vmatprep.subr.bf16.mxu0 0
        %516 = vmatpush1.bf16.xpose.msra.mxu0 %v496
        %517 = vmatprep.subr.bf16.mxu0 0
        %518 = vmatpush2.bf16.xpose.msra.mxu0 0
        %519 = vmatprep.subr.bf16.mxu0 0
        %520 = vmatpush2.bf16.xpose.msra.mxu0 0
        %521 = vmatprep.subr.bf16.mxu0 0
        %522 = vmatpush2.bf16.xpose.msra.mxu0 0
        %523 = vmatprep.subr.bf16.mxu0 0
        %524 = vmatpush2.bf16.xpose.msra.mxu0 0
        %525 = vmatprep.subr.bf16.mxu0 0
        %526 = vmatpush2.bf16.xpose.msra.mxu0 0
        %527 = vmatprep.subr.bf16.mxu0 0
        %528 = vmatpush2.bf16.xpose.msra.mxu0 0
        %529 = vmatprep.subr.bf16.mxu0 0
        %530 = vmatpush2.bf16.xpose.msra.mxu0 0
        %531 = vmatprep.subr.bf16.mxu0 0
        %532 = vmatpush2.bf16.xpose.msra.mxu0 0
        %533 = vmatprep.mubr.bf16.mxu0 0
        %534 = vmatmul.mubr.bf16.gmra.mxu0 %v490
        %v535 = vpop.f32.mrf.mxu0
        %v536 = vadd.f32 0.0, %v535
        %v537 = vpop.f32.mrf.mxu0
        %v538 = vpop.f32.mrf.mxu0
        %v539 = vadd.f32 0.0, %v538
        %v540 = vpop.f32.mrf.mxu0
        %541 = vmatprep.mubr.bf16.mxu0 0
        %542 = vmatmul.mubr.bf16.gmra.mxu0 %v493
        %v543 = vpop.f32.mrf.mxu0
        %v544 = vadd.f32 0.0, %v543
        %v545 = vpop.f32.mrf.mxu0
        %v546 = vpop.f32.mrf.mxu0
        %v547 = vpop.f32.mrf.mxu0
        %548 = vdwg.mxu0
        %v549 = vmul.f32 %v536, 0.35355338
        %v550 = vmul.f32 %v539, 0.35355338
        %v551 = vmul.f32 %v544, 0.35355338
        %vm552 = vcmask 138240
        %v553 = vsel %vm552, %v549, -inf
        %554 = vmax.xlane.f32.xlu0 %v553
        %v555 = vpop.xlane.xlu0 %554
        %v556 = vsel %vm552, %v550, -inf
        %557 = vmax.xlane.f32.xlu0 %v556
        %v558 = vpop.xlane.xlu0 %557
        %vm559 = vcmask 131072
        %v560 = vsel %vm559, %v551, -inf
        %561 = vmax.xlane.f32.xlu0 %v560
        %v562 = vpop.xlane.xlu0 %561
        %v563 = vsub.f32 %v549, %v555
        %v564 = vsub.f32 %v550, %v558
        %v565 = vsub.f32 %v551, %v562
        %v566 = vmul.f32 %v563, 1.442695
        %v567 = vpow.pop %v566
        %v568 = vmul.f32 %v564, 1.442695
        %v569 = vpow.pop %v568
        %v570 = vmul.f32 %v565, 1.442695
        %v571 = vpow.pop %v570
        %v572 = vsel %vm552, %v567, 0.0
        %573 = vadd.xlane.f32.xlu0 %v572
        %v574 = vpop.xlane.xlu0 %573
        %v575 = vsel %vm552, %v569, 0.0
        %576 = vadd.xlane.f32.xlu0 %v575
        %v577 = vpop.xlane.xlu0 %576
        %v578 = vsel %vm559, %v571, 0.0
        %579 = vadd.xlane.f32.xlu0 %v578
        %v580 = vpop.xlane.xlu0 %579
        %v581 = vrcp.pop %v574
        %v582 = vrcp.pop %v577
        %v583 = vrcp.pop %v580
        %v584 = vmul.f32 %v567, %v581
        %v585 = vmul.f32 %v569, %v582
        %v586 = vmul.f32 %v571, %v583
        %v587 = vpack.c.bf16 %v585, %v584
        %v588 = vpack.c.bf16 %v586, %v586
        %589 = vrot.lane.b32.xlu0 %v480, 64
        %v590 = vpop.permute.xlu0 %589
        %591 = vrot.lane.b32.xlu0 %v481, 64
        %v592 = vpop.permute.xlu0 %591
        %v595 = vsel %vm552, %v587, 0
        %v598 = vsel %vm552, %v588, 0
        %vm600 = vcmask 1040384
        %v601 = vsel 0, 4294967295, 65535
        %v602 = vsel %vm600, %v601, 0
        %v604 = vand.u32 %v592, %v602
        %606 = vmatprep.subr.bf16.mxu0 0
        %607 = vmatpush1.bf16.msra.mxu0 0
        %608 = vmatprep.subr.bf16.mxu0 0
        %609 = vmatpush1.bf16.msra.mxu0 0
        %610 = vmatprep.subr.bf16.mxu0 0
        %611 = vmatpush1.bf16.msra.mxu0 0
        %612 = vmatprep.subr.bf16.mxu0 0
        %613 = vmatpush1.bf16.msra.mxu0 0
        %614 = vmatprep.subr.bf16.mxu0 0
        %615 = vmatpush1.bf16.msra.mxu0 0
        %616 = vmatprep.subr.bf16.mxu0 0
        %617 = vmatpush1.bf16.msra.mxu0 0
        %618 = vmatprep.subr.bf16.mxu0 0
        %619 = vmatpush1.bf16.msra.mxu0 %v604
        %620 = vmatprep.subr.bf16.mxu0 0
        %621 = vmatpush1.bf16.msra.mxu0 %v590
        %622 = vmatprep.subr.bf16.mxu0 0
        %623 = vmatpush2.bf16.msra.mxu0 0
        %624 = vmatprep.subr.bf16.mxu0 0
        %625 = vmatpush2.bf16.msra.mxu0 0
        %626 = vmatprep.subr.bf16.mxu0 0
        %627 = vmatpush2.bf16.msra.mxu0 0
        %628 = vmatprep.subr.bf16.mxu0 0
        %629 = vmatpush2.bf16.msra.mxu0 0
        %630 = vmatprep.subr.bf16.mxu0 0
        %631 = vmatpush2.bf16.msra.mxu0 0
        %632 = vmatprep.subr.bf16.mxu0 0
        %633 = vmatpush2.bf16.msra.mxu0 0
        %634 = vmatprep.subr.bf16.mxu0 0
        %635 = vmatpush2.bf16.msra.mxu0 0
        %636 = vmatprep.subr.bf16.mxu0 0
        %637 = vmatpush2.bf16.msra.mxu0 0
        %638 = vmatprep.mubr.bf16.mxu0 0
        %639 = vmatmul.mubr.bf16.gmra.mxu0 %v595
        %v640 = vpop.f32.mrf.mxu0
        %v641 = vadd.f32 0.0, %v640
        %v642 = vpop.f32.mrf.mxu0
        %v643 = vpop.f32.mrf.mxu0
        %v644 = vadd.f32 0.0, %v643
        %v645 = vpop.f32.mrf.mxu0
        %646 = vmatprep.mubr.bf16.mxu0 0
        %647 = vmatmul.mubr.bf16.gmra.mxu0 %v598
        %v648 = vpop.f32.mrf.mxu0
        %v649 = vadd.f32 0.0, %v648
        %v650 = vpop.f32.mrf.mxu0
        %v651 = vpop.f32.mrf.mxu0
        %v652 = vpop.f32.mrf.mxu0
        %653 = vdwg.mxu0
        %654 = vrot.lane.b32.xlu0 %v480, 120
        %v655 = vpop.permute.xlu0 %654
        %656 = vrot.lane.b32.xlu0 %v481, 120
        %v657 = vpop.permute.xlu0 %656
        %658 = vrot.lane.b32.xlu0 %v480, 88
        %v659 = vpop.permute.xlu0 %658
        %660 = vrot.lane.b32.xlu0 %v481, 88
        %v661 = vpop.permute.xlu0 %660
        %v663 = vsel %vm488, %v655, 0
        %v666 = vsel %vm488, %v657, 0
        %v669 = vsel %vm488, %v659, 0
        %v672 = vsel %vm488, %v661, 0
        %674 = vmatprep.subr.bf16.mxu0 0
        %675 = vmatpush1.bf16.xpose.msra.mxu0 0
        %676 = vmatprep.subr.bf16.mxu0 0
        %677 = vmatpush1.bf16.xpose.msra.mxu0 0
        %678 = vmatprep.subr.bf16.mxu0 0
        %679 = vmatpush1.bf16.xpose.msra.mxu0 0
        %680 = vmatprep.subr.bf16.mxu0 0
        %681 = vmatpush1.bf16.xpose.msra.mxu0 0
        %682 = vmatprep.subr.bf16.mxu0 0
        %683 = vmatpush1.bf16.xpose.msra.mxu0 0
        %684 = vmatprep.subr.bf16.mxu0 0
        %685 = vmatpush1.bf16.xpose.msra.mxu0 0
        %686 = vmatprep.subr.bf16.mxu0 0
        %687 = vmatpush1.bf16.xpose.msra.mxu0 %v672
        %688 = vmatprep.subr.bf16.mxu0 0
        %689 = vmatpush1.bf16.xpose.msra.mxu0 %v669
        %690 = vmatprep.subr.bf16.mxu0 0
        %691 = vmatpush2.bf16.xpose.msra.mxu0 0
        %692 = vmatprep.subr.bf16.mxu0 0
        %693 = vmatpush2.bf16.xpose.msra.mxu0 0
        %694 = vmatprep.subr.bf16.mxu0 0
        %695 = vmatpush2.bf16.xpose.msra.mxu0 0
        %696 = vmatprep.subr.bf16.mxu0 0
        %697 = vmatpush2.bf16.xpose.msra.mxu0 0
        %698 = vmatprep.subr.bf16.mxu0 0
        %699 = vmatpush2.bf16.xpose.msra.mxu0 0
        %700 = vmatprep.subr.bf16.mxu0 0
        %701 = vmatpush2.bf16.xpose.msra.mxu0 0
        %702 = vmatprep.subr.bf16.mxu0 0
        %703 = vmatpush2.bf16.xpose.msra.mxu0 0
        %704 = vmatprep.subr.bf16.mxu0 0
        %705 = vmatpush2.bf16.xpose.msra.mxu0 0
        %706 = vmatprep.mubr.bf16.mxu0 0
        %707 = vmatmul.mubr.bf16.gmra.mxu0 %v663
        %v708 = vpop.f32.mrf.mxu0
        %v709 = vadd.f32 0.0, %v708
        %v710 = vpop.f32.mrf.mxu0
        %v711 = vpop.f32.mrf.mxu0
        %v712 = vadd.f32 0.0, %v711
        %v713 = vpop.f32.mrf.mxu0
        %714 = vmatprep.mubr.bf16.mxu0 0
        %715 = vmatmul.mubr.bf16.gmra.mxu0 %v666
        %v716 = vpop.f32.mrf.mxu0
        %v717 = vadd.f32 0.0, %v716
        %v718 = vpop.f32.mrf.mxu0
        %v719 = vpop.f32.mrf.mxu0
        %v720 = vpop.f32.mrf.mxu0
        %721 = vdwg.mxu0
        %v722 = vmul.f32 %v709, 0.35355338
        %v723 = vmul.f32 %v712, 0.35355338
        %v724 = vmul.f32 %v717, 0.35355338
        %v725 = vsel %vm552, %v722, -inf
        %726 = vmax.xlane.f32.xlu0 %v725
        %v727 = vpop.xlane.xlu0 %726
        %v728 = vsel %vm552, %v723, -inf
        %729 = vmax.xlane.f32.xlu0 %v728
        %v730 = vpop.xlane.xlu0 %729
        %v731 = vsel %vm559, %v724, -inf
        %732 = vmax.xlane.f32.xlu0 %v731
        %v733 = vpop.xlane.xlu0 %732
        %v734 = vsub.f32 %v722, %v727
        %v735 = vsub.f32 %v723, %v730
        %v736 = vsub.f32 %v724, %v733
        %v737 = vmul.f32 %v734, 1.442695
        %v738 = vpow.pop %v737
        %v739 = vmul.f32 %v735, 1.442695
        %v740 = vpow.pop %v739
        %v741 = vmul.f32 %v736, 1.442695
        %v742 = vpow.pop %v741
        %v743 = vsel %vm552, %v738, 0.0
        %744 = vadd.xlane.f32.xlu0 %v743
        %v745 = vpop.xlane.xlu0 %744
        %v746 = vsel %vm552, %v740, 0.0
        %747 = vadd.xlane.f32.xlu0 %v746
        %v748 = vpop.xlane.xlu0 %747
        %v749 = vsel %vm559, %v742, 0.0
        %750 = vadd.xlane.f32.xlu0 %v749
        %v751 = vpop.xlane.xlu0 %750
        %v752 = vrcp.pop %v745
        %v753 = vrcp.pop %v748
        %v754 = vrcp.pop %v751
        %v755 = vmul.f32 %v738, %v752
        %v756 = vmul.f32 %v740, %v753
        %v757 = vmul.f32 %v742, %v754
        %v758 = vpack.c.bf16 %v756, %v755
        %v759 = vpack.c.bf16 %v757, %v757
        %760 = vrot.lane.b32.xlu0 %v480, 56
        %v761 = vpop.permute.xlu0 %760
        %762 = vrot.lane.b32.xlu0 %v481, 56
        %v763 = vpop.permute.xlu0 %762
        %v766 = vsel %vm552, %v758, 0
        %v769 = vsel %vm552, %v759, 0
        %v772 = vand.u32 %v763, %v602
        %774 = vmatprep.subr.bf16.mxu0 0
        %775 = vmatpush1.bf16.msra.mxu0 0
        %776 = vmatprep.subr.bf16.mxu0 0
        %777 = vmatpush1.bf16.msra.mxu0 0
        %778 = vmatprep.subr.bf16.mxu0 0
        %779 = vmatpush1.bf16.msra.mxu0 0
        %780 = vmatprep.subr.bf16.mxu0 0
        %781 = vmatpush1.bf16.msra.mxu0 0
        %782 = vmatprep.subr.bf16.mxu0 0
        %783 = vmatpush1.bf16.msra.mxu0 0
        %784 = vmatprep.subr.bf16.mxu0 0
        %785 = vmatpush1.bf16.msra.mxu0 0
        %786 = vmatprep.subr.bf16.mxu0 0
        %787 = vmatpush1.bf16.msra.mxu0 %v772
        %788 = vmatprep.subr.bf16.mxu0 0
        %789 = vmatpush1.bf16.msra.mxu0 %v761
        %790 = vmatprep.subr.bf16.mxu0 0
        %791 = vmatpush2.bf16.msra.mxu0 0
        %792 = vmatprep.subr.bf16.mxu0 0
        %793 = vmatpush2.bf16.msra.mxu0 0
        %794 = vmatprep.subr.bf16.mxu0 0
        %795 = vmatpush2.bf16.msra.mxu0 0
        %796 = vmatprep.subr.bf16.mxu0 0
        %797 = vmatpush2.bf16.msra.mxu0 0
        %798 = vmatprep.subr.bf16.mxu0 0
        %799 = vmatpush2.bf16.msra.mxu0 0
        %800 = vmatprep.subr.bf16.mxu0 0
        %801 = vmatpush2.bf16.msra.mxu0 0
        %802 = vmatprep.subr.bf16.mxu0 0
        %803 = vmatpush2.bf16.msra.mxu0 0
        %804 = vmatprep.subr.bf16.mxu0 0
        %805 = vmatpush2.bf16.msra.mxu0 0
        %806 = vmatprep.mubr.bf16.mxu0 0
        %807 = vmatmul.mubr.bf16.gmra.mxu0 %v766
        %v808 = vpop.f32.mrf.mxu0
        %v809 = vadd.f32 0.0, %v808
        %v810 = vpop.f32.mrf.mxu0
        %v811 = vpop.f32.mrf.mxu0
        %v812 = vadd.f32 0.0, %v811
        %v813 = vpop.f32.mrf.mxu0
        %814 = vmatprep.mubr.bf16.mxu0 0
        %815 = vmatmul.mubr.bf16.gmra.mxu0 %v769
        %v816 = vpop.f32.mrf.mxu0
        %v817 = vadd.f32 0.0, %v816
        %v818 = vpop.f32.mrf.mxu0
        %v819 = vpop.f32.mrf.mxu0
        %v820 = vpop.f32.mrf.mxu0
        %821 = vdwg.mxu0
        %822 = vrot.lane.b32.xlu0 %v480, 112
        %v823 = vpop.permute.xlu0 %822
        %824 = vrot.lane.b32.xlu0 %v481, 112
        %v825 = vpop.permute.xlu0 %824
        %826 = vrot.lane.b32.xlu0 %v480, 80
        %v827 = vpop.permute.xlu0 %826
        %828 = vrot.lane.b32.xlu0 %v481, 80
        %v829 = vpop.permute.xlu0 %828
        %v831 = vsel %vm488, %v823, 0
        %v834 = vsel %vm488, %v825, 0
        %v837 = vsel %vm488, %v827, 0
        %v840 = vsel %vm488, %v829, 0
        %842 = vmatprep.subr.bf16.mxu0 0
        %843 = vmatpush1.bf16.xpose.msra.mxu0 0
        %844 = vmatprep.subr.bf16.mxu0 0
        %845 = vmatpush1.bf16.xpose.msra.mxu0 0
        %846 = vmatprep.subr.bf16.mxu0 0
        %847 = vmatpush1.bf16.xpose.msra.mxu0 0
        %848 = vmatprep.subr.bf16.mxu0 0
        %849 = vmatpush1.bf16.xpose.msra.mxu0 0
        %850 = vmatprep.subr.bf16.mxu0 0
        %851 = vmatpush1.bf16.xpose.msra.mxu0 0
        %852 = vmatprep.subr.bf16.mxu0 0
        %853 = vmatpush1.bf16.xpose.msra.mxu0 0
        %854 = vmatprep.subr.bf16.mxu0 0
        %855 = vmatpush1.bf16.xpose.msra.mxu0 %v840
        %856 = vmatprep.subr.bf16.mxu0 0
        %857 = vmatpush1.bf16.xpose.msra.mxu0 %v837
        %858 = vmatprep.subr.bf16.mxu0 0
        %859 = vmatpush2.bf16.xpose.msra.mxu0 0
        %860 = vmatprep.subr.bf16.mxu0 0
        %861 = vmatpush2.bf16.xpose.msra.mxu0 0
        %862 = vmatprep.subr.bf16.mxu0 0
        %863 = vmatpush2.bf16.xpose.msra.mxu0 0
        %864 = vmatprep.subr.bf16.mxu0 0
        %865 = vmatpush2.bf16.xpose.msra.mxu0 0
        %866 = vmatprep.subr.bf16.mxu0 0
        %867 = vmatpush2.bf16.xpose.msra.mxu0 0
        %868 = vmatprep.subr.bf16.mxu0 0
        %869 = vmatpush2.bf16.xpose.msra.mxu0 0
        %870 = vmatprep.subr.bf16.mxu0 0
        %871 = vmatpush2.bf16.xpose.msra.mxu0 0
        %872 = vmatprep.subr.bf16.mxu0 0
        %873 = vmatpush2.bf16.xpose.msra.mxu0 0
        %874 = vmatprep.mubr.bf16.mxu0 0
        %875 = vmatmul.mubr.bf16.gmra.mxu0 %v831
        %v876 = vpop.f32.mrf.mxu0
        %v877 = vadd.f32 0.0, %v876
        %v878 = vpop.f32.mrf.mxu0
        %v879 = vpop.f32.mrf.mxu0
        %v880 = vadd.f32 0.0, %v879
        %v881 = vpop.f32.mrf.mxu0
        %882 = vmatprep.mubr.bf16.mxu0 0
        %883 = vmatmul.mubr.bf16.gmra.mxu0 %v834
        %v884 = vpop.f32.mrf.mxu0
        %v885 = vadd.f32 0.0, %v884
        %v886 = vpop.f32.mrf.mxu0
        %v887 = vpop.f32.mrf.mxu0
        %v888 = vpop.f32.mrf.mxu0
        %889 = vdwg.mxu0
        %v890 = vmul.f32 %v877, 0.35355338
        %v891 = vmul.f32 %v880, 0.35355338
        %v892 = vmul.f32 %v885, 0.35355338
        %v893 = vsel %vm552, %v890, -inf
        %894 = vmax.xlane.f32.xlu0 %v893
        %v895 = vpop.xlane.xlu0 %894
        %v896 = vsel %vm552, %v891, -inf
        %897 = vmax.xlane.f32.xlu0 %v896
        %v898 = vpop.xlane.xlu0 %897
        %v899 = vsel %vm559, %v892, -inf
        %900 = vmax.xlane.f32.xlu0 %v899
        %v901 = vpop.xlane.xlu0 %900
        %v902 = vsub.f32 %v890, %v895
        %v903 = vsub.f32 %v891, %v898
        %v904 = vsub.f32 %v892, %v901
        %v905 = vmul.f32 %v902, 1.442695
        %v906 = vpow.pop %v905
        %v907 = vmul.f32 %v903, 1.442695
        %v908 = vpow.pop %v907
        %v909 = vmul.f32 %v904, 1.442695
        %v910 = vpow.pop %v909
        %v911 = vsel %vm552, %v906, 0.0
        %912 = vadd.xlane.f32.xlu0 %v911
        %v913 = vpop.xlane.xlu0 %912
        %v914 = vsel %vm552, %v908, 0.0
        %915 = vadd.xlane.f32.xlu0 %v914
        %v916 = vpop.xlane.xlu0 %915
        %v917 = vsel %vm559, %v910, 0.0
        %918 = vadd.xlane.f32.xlu0 %v917
        %v919 = vpop.xlane.xlu0 %918
        %v920 = vrcp.pop %v913
        %v921 = vrcp.pop %v916
        %v922 = vrcp.pop %v919
        %v923 = vmul.f32 %v906, %v920
        %v924 = vmul.f32 %v908, %v921
        %v925 = vmul.f32 %v910, %v922
        %v926 = vpack.c.bf16 %v924, %v923
        %v927 = vpack.c.bf16 %v925, %v925
        %928 = vrot.lane.b32.xlu0 %v480, 48
        %v929 = vpop.permute.xlu0 %928
        %930 = vrot.lane.b32.xlu0 %v481, 48
        %v931 = vpop.permute.xlu0 %930
        %v934 = vsel %vm552, %v926, 0
        %v937 = vsel %vm552, %v927, 0
        %v940 = vand.u32 %v931, %v602
        %942 = vmatprep.subr.bf16.mxu0 0
        %943 = vmatpush1.bf16.msra.mxu0 0
        %944 = vmatprep.subr.bf16.mxu0 0
        %945 = vmatpush1.bf16.msra.mxu0 0
        %946 = vmatprep.subr.bf16.mxu0 0
        %947 = vmatpush1.bf16.msra.mxu0 0
        %948 = vmatprep.subr.bf16.mxu0 0
        %949 = vmatpush1.bf16.msra.mxu0 0
        %950 = vmatprep.subr.bf16.mxu0 0
        %951 = vmatpush1.bf16.msra.mxu0 0
        %952 = vmatprep.subr.bf16.mxu0 0
        %953 = vmatpush1.bf16.msra.mxu0 0
        %954 = vmatprep.subr.bf16.mxu0 0
        %955 = vmatpush1.bf16.msra.mxu0 %v940
        %956 = vmatprep.subr.bf16.mxu0 0
        %957 = vmatpush1.bf16.msra.mxu0 %v929
        %958 = vmatprep.subr.bf16.mxu0 0
        %959 = vmatpush2.bf16.msra.mxu0 0
        %960 = vmatprep.subr.bf16.mxu0 0
        %961 = vmatpush2.bf16.msra.mxu0 0
        %962 = vmatprep.subr.bf16.mxu0 0
        %963 = vmatpush2.bf16.msra.mxu0 0
        %964 = vmatprep.subr.bf16.mxu0 0
        %965 = vmatpush2.bf16.msra.mxu0 0
        %966 = vmatprep.subr.bf16.mxu0 0
        %967 = vmatpush2.bf16.msra.mxu0 0
        %968 = vmatprep.subr.bf16.mxu0 0
        %969 = vmatpush2.bf16.msra.mxu0 0
        %970 = vmatprep.subr.bf16.mxu0 0
        %971 = vmatpush2.bf16.msra.mxu0 0
        %972 = vmatprep.subr.bf16.mxu0 0
        %973 = vmatpush2.bf16.msra.mxu0 0
        %974 = vmatprep.mubr.bf16.mxu0 0
        %975 = vmatmul.mubr.bf16.gmra.mxu0 %v934
        %v976 = vpop.f32.mrf.mxu0
        %v977 = vadd.f32 0.0, %v976
        %v978 = vpop.f32.mrf.mxu0
        %v979 = vpop.f32.mrf.mxu0
        %v980 = vadd.f32 0.0, %v979
        %v981 = vpop.f32.mrf.mxu0
        %982 = vmatprep.mubr.bf16.mxu0 0
        %983 = vmatmul.mubr.bf16.gmra.mxu0 %v937
        %v984 = vpop.f32.mrf.mxu0
        %v985 = vadd.f32 0.0, %v984
        %v986 = vpop.f32.mrf.mxu0
        %v987 = vpop.f32.mrf.mxu0
        %v988 = vpop.f32.mrf.mxu0
        %989 = vdwg.mxu0
        %990 = vrot.lane.b32.xlu0 %v480, 104
        %v991 = vpop.permute.xlu0 %990
        %992 = vrot.lane.b32.xlu0 %v481, 104
        %v993 = vpop.permute.xlu0 %992
        %994 = vrot.lane.b32.xlu0 %v480, 72
        %v995 = vpop.permute.xlu0 %994
        %996 = vrot.lane.b32.xlu0 %v481, 72
        %v997 = vpop.permute.xlu0 %996
        %v999 = vsel %vm488, %v991, 0
        %v1002 = vsel %vm488, %v993, 0
        %v1005 = vsel %vm488, %v995, 0
        %v1008 = vsel %vm488, %v997, 0
        %1010 = vmatprep.subr.bf16.mxu0 0
        %1011 = vmatpush1.bf16.xpose.msra.mxu0 0
        %1012 = vmatprep.subr.bf16.mxu0 0
        %1013 = vmatpush1.bf16.xpose.msra.mxu0 0
        %1014 = vmatprep.subr.bf16.mxu0 0
        %1015 = vmatpush1.bf16.xpose.msra.mxu0 0
        %1016 = vmatprep.subr.bf16.mxu0 0
        %1017 = vmatpush1.bf16.xpose.msra.mxu0 0
        %1018 = vmatprep.subr.bf16.mxu0 0
        %1019 = vmatpush1.bf16.xpose.msra.mxu0 0
        %1020 = vmatprep.subr.bf16.mxu0 0
        %1021 = vmatpush1.bf16.xpose.msra.mxu0 0
        %1022 = vmatprep.subr.bf16.mxu0 0
        %1023 = vmatpush1.bf16.xpose.msra.mxu0 %v1008
        %1024 = vmatprep.subr.bf16.mxu0 0
        %1025 = vmatpush1.bf16.xpose.msra.mxu0 %v1005
        %1026 = vmatprep.subr.bf16.mxu0 0
        %1027 = vmatpush2.bf16.xpose.msra.mxu0 0
        %1028 = vmatprep.subr.bf16.mxu0 0
        %1029 = vmatpush2.bf16.xpose.msra.mxu0 0
        %1030 = vmatprep.subr.bf16.mxu0 0
        %1031 = vmatpush2.bf16.xpose.msra.mxu0 0
        %1032 = vmatprep.subr.bf16.mxu0 0
        %1033 = vmatpush2.bf16.xpose.msra.mxu0 0
        %1034 = vmatprep.subr.bf16.mxu0 0
        %1035 = vmatpush2.bf16.xpose.msra.mxu0 0
        %1036 = vmatprep.subr.bf16.mxu0 0
        %1037 = vmatpush2.bf16.xpose.msra.mxu0 0
        %1038 = vmatprep.subr.bf16.mxu0 0
        %1039 = vmatpush2.bf16.xpose.msra.mxu0 0
        %1040 = vmatprep.subr.bf16.mxu0 0
        %1041 = vmatpush2.bf16.xpose.msra.mxu0 0
        %1042 = vmatprep.mubr.bf16.mxu0 0
        %1043 = vmatmul.mubr.bf16.gmra.mxu0 %v999
        %v1044 = vpop.f32.mrf.mxu0
        %v1045 = vadd.f32 0.0, %v1044
        %v1046 = vpop.f32.mrf.mxu0
        %v1047 = vpop.f32.mrf.mxu0
        %v1048 = vadd.f32 0.0, %v1047
        %v1049 = vpop.f32.mrf.mxu0
        %1050 = vmatprep.mubr.bf16.mxu0 0
        %1051 = vmatmul.mubr.bf16.gmra.mxu0 %v1002
        %v1052 = vpop.f32.mrf.mxu0
        %v1053 = vadd.f32 0.0, %v1052
        %v1054 = vpop.f32.mrf.mxu0
        %v1055 = vpop.f32.mrf.mxu0
        %v1056 = vpop.f32.mrf.mxu0
        %1057 = vdwg.mxu0
        %v1058 = vmul.f32 %v1045, 0.35355338
        %v1059 = vmul.f32 %v1048, 0.35355338
        %v1060 = vmul.f32 %v1053, 0.35355338
        %v1061 = vsel %vm552, %v1058, -inf
        %1062 = vmax.xlane.f32.xlu0 %v1061
        %v1063 = vpop.xlane.xlu0 %1062
        %v1064 = vsel %vm552, %v1059, -inf
        %1065 = vmax.xlane.f32.xlu0 %v1064
        %v1066 = vpop.xlane.xlu0 %1065
        %v1067 = vsel %vm559, %v1060, -inf
        %1068 = vmax.xlane.f32.xlu0 %v1067
        %v1069 = vpop.xlane.xlu0 %1068
        %v1070 = vsub.f32 %v1058, %v1063
        %v1071 = vsub.f32 %v1059, %v1066
        %v1072 = vsub.f32 %v1060, %v1069
        %v1073 = vmul.f32 %v1070, 1.442695
        %v1074 = vpow.pop %v1073
        %v1075 = vmul.f32 %v1071, 1.442695
        %v1076 = vpow.pop %v1075
        %v1077 = vmul.f32 %v1072, 1.442695
        %v1078 = vpow.pop %v1077
        %v1079 = vsel %vm552, %v1074, 0.0
        %1080 = vadd.xlane.f32.xlu0 %v1079
        %v1081 = vpop.xlane.xlu0 %1080
        %v1082 = vsel %vm552, %v1076, 0.0
        %1083 = vadd.xlane.f32.xlu0 %v1082
        %v1084 = vpop.xlane.xlu0 %1083
        %v1085 = vsel %vm559, %v1078, 0.0
        %1086 = vadd.xlane.f32.xlu0 %v1085
        %v1087 = vpop.xlane.xlu0 %1086
        %v1088 = vrcp.pop %v1081
        %v1089 = vrcp.pop %v1084
        %v1090 = vrcp.pop %v1087
        %v1091 = vmul.f32 %v1074, %v1088
        %v1092 = vmul.f32 %v1076, %v1089
        %v1093 = vmul.f32 %v1078, %v1090
        %v1094 = vpack.c.bf16 %v1092, %v1091
        %v1095 = vpack.c.bf16 %v1093, %v1093
        %1096 = vrot.lane.b32.xlu0 %v480, 40
        %v1097 = vpop.permute.xlu0 %1096
        %1098 = vrot.lane.b32.xlu0 %v481, 40
        %v1099 = vpop.permute.xlu0 %1098
        %v1102 = vsel %vm552, %v1094, 0
        %v1105 = vsel %vm552, %v1095, 0
        %v1108 = vand.u32 %v1099, %v602
        %1110 = vmatprep.subr.bf16.mxu0 0
        %1111 = vmatpush1.bf16.msra.mxu0 0
        %1112 = vmatprep.subr.bf16.mxu0 0
        %1113 = vmatpush1.bf16.msra.mxu0 0
        %1114 = vmatprep.subr.bf16.mxu0 0
        %1115 = vmatpush1.bf16.msra.mxu0 0
        %1116 = vmatprep.subr.bf16.mxu0 0
        %1117 = vmatpush1.bf16.msra.mxu0 0
        %1118 = vmatprep.subr.bf16.mxu0 0
        %1119 = vmatpush1.bf16.msra.mxu0 0
        %1120 = vmatprep.subr.bf16.mxu0 0
        %1121 = vmatpush1.bf16.msra.mxu0 0
        %1122 = vmatprep.subr.bf16.mxu0 0
        %1123 = vmatpush1.bf16.msra.mxu0 %v1108
        %1124 = vmatprep.subr.bf16.mxu0 0
        %1125 = vmatpush1.bf16.msra.mxu0 %v1097
        %1126 = vmatprep.subr.bf16.mxu0 0
        %1127 = vmatpush2.bf16.msra.mxu0 0
        %1128 = vmatprep.subr.bf16.mxu0 0
        %1129 = vmatpush2.bf16.msra.mxu0 0
        %1130 = vmatprep.subr.bf16.mxu0 0
        %1131 = vmatpush2.bf16.msra.mxu0 0
        %1132 = vmatprep.subr.bf16.mxu0 0
        %1133 = vmatpush2.bf16.msra.mxu0 0
        %1134 = vmatprep.subr.bf16.mxu0 0
        %1135 = vmatpush2.bf16.msra.mxu0 0
        %1136 = vmatprep.subr.bf16.mxu0 0
        %1137 = vmatpush2.bf16.msra.mxu0 0
        %1138 = vmatprep.subr.bf16.mxu0 0
        %1139 = vmatpush2.bf16.msra.mxu0 0
        %1140 = vmatprep.subr.bf16.mxu0 0
        %1141 = vmatpush2.bf16.msra.mxu0 0
        %1142 = vmatprep.mubr.bf16.mxu0 0
        %1143 = vmatmul.mubr.bf16.gmra.mxu0 %v1102
        %v1144 = vpop.f32.mrf.mxu0
        %v1145 = vadd.f32 0.0, %v1144
        %v1146 = vpop.f32.mrf.mxu0
        %v1147 = vpop.f32.mrf.mxu0
        %v1148 = vadd.f32 0.0, %v1147
        %v1149 = vpop.f32.mrf.mxu0
        %1150 = vmatprep.mubr.bf16.mxu0 0
        %1151 = vmatmul.mubr.bf16.gmra.mxu0 %v1105
        %v1152 = vpop.f32.mrf.mxu0
        %v1153 = vadd.f32 0.0, %v1152
        %v1154 = vpop.f32.mrf.mxu0
        %v1155 = vpop.f32.mrf.mxu0
        %v1156 = vpop.f32.mrf.mxu0
        %1157 = vdwg.mxu0
        %1161 = vrot.lane.b32.xlu0 %v809, 8
        %v1162 = vpop.permute.xlu0 %1161
        %1163 = vrot.lane.b32.xlu0 %v812, 8
        %v1164 = vpop.permute.xlu0 %1163
        %1165 = vrot.lane.b32.xlu0 %v817, 8
        %v1166 = vpop.permute.xlu0 %1165
        %1173 = vrot.lane.b32.xlu0 %v977, 16
        %v1174 = vpop.permute.xlu0 %1173
        %1175 = vrot.lane.b32.xlu0 %v980, 16
        %v1176 = vpop.permute.xlu0 %1175
        %1177 = vrot.lane.b32.xlu0 %v985, 16
        %v1178 = vpop.permute.xlu0 %1177
        %1185 = vrot.lane.b32.xlu0 %v1145, 24
        %v1186 = vpop.permute.xlu0 %1185
        %1187 = vrot.lane.b32.xlu0 %v1148, 24
        %v1188 = vpop.permute.xlu0 %1187
        %1189 = vrot.lane.b32.xlu0 %v1153, 24
        %v1190 = vpop.permute.xlu0 %1189
        %v1194 = vsel %vm488, %v641, %v1162
        %v1195 = vsel %vm488, %v644, %v1164
        %v1196 = vsel %vm488, %v649, %v1166
        %vm1197 = vcmask 130048
        %v1198 = vsel %vm1197, %v1194, %v1174
        %v1199 = vsel %vm1197, %v1195, %v1176
        %v1200 = vsel %vm1197, %v1196, %v1178
        %vm1201 = vcmask 195584
        %v1202 = vsel %vm1201, %v1198, %v1186
        %v1203 = vsel %vm1201, %v1199, %v1188
        %v1204 = vsel %vm1201, %v1200, %v1190
        %v1205 = vpack.c.bf16 %v1203, %v1202
        %v1206 = vpack.c.bf16 %v1204, %v1204
        %v1211 = vunpack.c.l.b16 %v325
        %v1212 = vunpack.c.l.b16 %v326
        %v1213 = vunpack.c.l.b16 %v327
        %v1214 = vunpack.c.l.b16 %v328
        %v1215 = vpack.c.b16 %v1212, %v1211
        %v1216 = vpack.c.b16 %v1214, %v1213
        %v1220 = vsel %vm312, %v1205, 0
        %v1223 = vsel %vm312, %v1206, 0
        %1225 = vmatprep.subr.bf16.mxu0 0
        %1226 = vmatpush1.bf16.msra.mxu0 0
        %1227 = vmatprep.subr.bf16.mxu0 0
        %1228 = vmatpush1.bf16.msra.mxu0 0
        %1229 = vmatprep.subr.bf16.mxu0 0
        %1230 = vmatpush1.bf16.msra.mxu0 0
        %1231 = vmatprep.subr.bf16.mxu0 0
        %1232 = vmatpush1.bf16.msra.mxu0 0
        %1233 = vmatprep.subr.bf16.mxu0 0
        %1234 = vmatpush1.bf16.msra.mxu0 0
        %1235 = vmatprep.subr.bf16.mxu0 0
        %1236 = vmatpush1.bf16.msra.mxu0 0
        %1237 = vmatprep.subr.bf16.mxu0 0
        %1238 = vmatpush1.bf16.msra.mxu0 %v1216
        %1239 = vmatprep.subr.bf16.mxu0 0
        %1240 = vmatpush1.bf16.msra.mxu0 %v1215
        %1241 = vmatprep.subr.bf16.mxu0 0
        %1242 = vmatpush2.bf16.msra.mxu0 0
        %1243 = vmatprep.subr.bf16.mxu0 0
        %1244 = vmatpush2.bf16.msra.mxu0 0
        %1245 = vmatprep.subr.bf16.mxu0 0
        %1246 = vmatpush2.bf16.msra.mxu0 0
        %1247 = vmatprep.subr.bf16.mxu0 0
        %1248 = vmatpush2.bf16.msra.mxu0 0
        %1249 = vmatprep.subr.bf16.mxu0 0
        %1250 = vmatpush2.bf16.msra.mxu0 0
        %1251 = vmatprep.subr.bf16.mxu0 0
        %1252 = vmatpush2.bf16.msra.mxu0 0
        %1253 = vmatprep.subr.bf16.mxu0 0
        %1254 = vmatpush2.bf16.msra.mxu0 0
        %1255 = vmatprep.subr.bf16.mxu0 0
        %1256 = vmatpush2.bf16.msra.mxu0 0
        %1257 = vmatprep.mubr.bf16.mxu0 0
        %1258 = vmatmul.mubr.bf16.gmra.mxu0 %v1220
        %v1259 = vpop.f32.mrf.mxu0
        %v1260 = vadd.f32 0.0, %v1259
        %v1261 = vpop.f32.mrf.mxu0
        %v1262 = vpop.f32.mrf.mxu0
        %v1263 = vadd.f32 0.0, %v1262
        %v1264 = vpop.f32.mrf.mxu0
        %1265 = vmatprep.mubr.bf16.mxu0 0
        %1266 = vmatmul.mubr.bf16.gmra.mxu0 %v1223
        %v1267 = vpop.f32.mrf.mxu0
        %v1268 = vadd.f32 0.0, %v1267
        %v1269 = vpop.f32.mrf.mxu0
        %v1270 = vpop.f32.mrf.mxu0
        %v1271 = vpop.f32.mrf.mxu0
        %1272 = vdwg.mxu0
        %v1273 = vadd.f32 %v318, %v1260
        %v1274 = vadd.f32 %v319, %v1263
        %v1275 = vadd.f32 %v320, %v1268
        %v1276 = vlaneseq
        %v1277 = vshrl.u32 %v1276, 7
        %v1278 = vsub.s32 0, %v1277
        %v1279 = vrot.slane %v346, %v1278
        %v1280 = vadd.f32 %v1273, %v1279
        %v1281 = vadd.f32 %v1274, %v1279
        %v1282 = vadd.f32 %v1275, %v1279
        %v1283 = vsel %vm312, %v1280, 0.0
        %1284 = vadd.xlane.f32.xlu0 %v1283
        %v1285 = vpop.xlane.xlu0 %1284
        %v1286 = vsel %vm312, %v1281, 0.0
        %1287 = vadd.xlane.f32.xlu0 %v1286
        %v1288 = vpop.xlane.xlu0 %1287
        %v1289 = vsel %vm316, %v1282, 0.0
        %1290 = vadd.xlane.f32.xlu0 %v1289
        %v1291 = vpop.xlane.xlu0 %1290
        %v1292 = vmul.f32 %v1280, %v1280
        %v1293 = vmul.f32 %v1281, %v1281
        %v1294 = vmul.f32 %v1282, %v1282
        %v1295 = vsel %vm312, %v1292, 0.0
        %1296 = vadd.xlane.f32.xlu0 %v1295
        %v1297 = vpop.xlane.xlu0 %1296
        %v1298 = vsel %vm312, %v1293, 0.0
        %1299 = vadd.xlane.f32.xlu0 %v1298
        %v1300 = vpop.xlane.xlu0 %1299
        %v1301 = vsel %vm316, %v1294, 0.0
        %1302 = vadd.xlane.f32.xlu0 %v1301
        %v1303 = vpop.xlane.xlu0 %1302
        %v1304 = vmul.f32 %v1285, 0.03125
        %v1305 = vmul.f32 %v1288, 0.03125
        %v1306 = vmul.f32 %v1291, 0.03125
        %v1307 = vmul.f32 %v1297, 0.03125
        %v1308 = vmul.f32 %v1300, 0.03125
        %v1309 = vmul.f32 %v1303, 0.03125
        %v1310 = vmul.f32 %v1304, %v1304
        %v1311 = vmul.f32 %v1305, %v1305
        %v1312 = vmul.f32 %v1306, %v1306
        %v1313 = vsub.f32 %v1307, %v1310
        %v1314 = vsub.f32 %v1308, %v1311
        %v1315 = vsub.f32 %v1309, %v1312
        %v1316 = vsub.f32 %v1280, %v1304
        %v1317 = vsub.f32 %v1281, %v1305
        %v1318 = vsub.f32 %v1282, %v1306
        %v1319 = vadd.f32 %v1313, 1e-06
        %v1320 = vadd.f32 %v1314, 1e-06
        %v1321 = vadd.f32 %v1315, 1e-06
        %v1322 = vrsqrt.pop %v1319
        %v1323 = vrsqrt.pop %v1320
        %v1324 = vrsqrt.pop %v1321
        %v1325 = vmul.f32 %v1316, %v1322
        %v1326 = vmul.f32 %v1317, %v1323
        %v1327 = vmul.f32 %v1318, %v1324
        %v1328 = vlaneseq
        %v1329 = vshrl.u32 %v1328, 7
        %v1330 = vsub.s32 0, %v1329
        %v1331 = vrot.slane %v343, %v1330
        %v1332 = vmul.f32 %v1325, %v1331
        %v1333 = vmul.f32 %v1326, %v1331
        %v1334 = vmul.f32 %v1327, %v1331
        %v1335 = vlaneseq
        %v1336 = vshrl.u32 %v1335, 7
        %v1337 = vsub.s32 0, %v1336
        %v1338 = vrot.slane %v344, %v1337
        %v1339 = vadd.f32 %v1332, %v1338
        %v1340 = vadd.f32 %v1333, %v1338
        %v1341 = vadd.f32 %v1334, %v1338
        %v1342 = vpack.c.bf16 %v1340, %v1339
        %v1343 = vpack.c.bf16 %v1341, %v1341
        %v1344 = vlaneseq
        %v1345 = vshrl.u32 %v1344, 7
        %v1346 = vsub.s32 0, %v1345
        %v1347 = vrot.slane %v347, %v1346
        %v1352 = vunpack.c.l.b16 %v329
        %v1353 = vunpack.c.l.b16 %v330
        %v1354 = vunpack.c.l.b16 %v331
        %v1355 = vunpack.c.l.b16 %v332
        %v1356 = vpack.c.b16 %v1353, %v1352
        %v1357 = vpack.c.b16 %v1355, %v1354
        %v1361 = vsel %vm312, %v1342, 0
        %v1364 = vsel %vm312, %v1343, 0
        %1366 = vmatprep.subr.bf16.mxu0 0
        %1367 = vmatpush1.bf16.msra.mxu0 0
        %1368 = vmatprep.subr.bf16.mxu0 0
        %1369 = vmatpush1.bf16.msra.mxu0 0
        %1370 = vmatprep.subr.bf16.mxu0 0
        %1371 = vmatpush1.bf16.msra.mxu0 0
        %1372 = vmatprep.subr.bf16.mxu0 0
        %1373 = vmatpush1.bf16.msra.mxu0 0
        %1374 = vmatprep.subr.bf16.mxu0 0
        %1375 = vmatpush1.bf16.msra.mxu0 0
        %1376 = vmatprep.subr.bf16.mxu0 0
        %1377 = vmatpush1.bf16.msra.mxu0 0
        %1378 = vmatprep.subr.bf16.mxu0 0
        %1379 = vmatpush1.bf16.msra.mxu0 %v1357
        %1380 = vmatprep.subr.bf16.mxu0 0
        %1381 = vmatpush1.bf16.msra.mxu0 %v1356
        %1382 = vmatprep.subr.bf16.mxu0 0
        %1383 = vmatpush2.bf16.msra.mxu0 0
        %1384 = vmatprep.subr.bf16.mxu0 0
        %1385 = vmatpush2.bf16.msra.mxu0 0
        %1386 = vmatprep.subr.bf16.mxu0 0
        %1387 = vmatpush2.bf16.msra.mxu0 0
        %1388 = vmatprep.subr.bf16.mxu0 0
        %1389 = vmatpush2.bf16.msra.mxu0 0
        %1390 = vmatprep.subr.bf16.mxu0 0
        %1391 = vmatpush2.bf16.msra.mxu0 0
        %1392 = vmatprep.subr.bf16.mxu0 0
        %1393 = vmatpush2.bf16.msra.mxu0 0
        %1394 = vmatprep.subr.bf16.mxu0 0
        %1395 = vmatpush2.bf16.msra.mxu0 0
        %1396 = vmatprep.subr.bf16.mxu0 0
        %1397 = vmatpush2.bf16.msra.mxu0 0
        %1398 = vmatprep.mubr.bf16.mxu0 0
        %1399 = vmatmul.mubr.bf16.gmra.mxu0 %v1361
        %v1400 = vpop.f32.mrf.mxu0
        %v1401 = vadd.f32 %v1347, %v1400
        %v1402 = vpop.f32.mrf.mxu0
        %v1403 = vpop.f32.mrf.mxu0
        %v1404 = vadd.f32 %v1347, %v1403
        %v1405 = vpop.f32.mrf.mxu0
        %1406 = vmatprep.mubr.bf16.mxu0 0
        %1407 = vmatmul.mubr.bf16.gmra.mxu0 %v1364
        %v1408 = vpop.f32.mrf.mxu0
        %v1409 = vadd.f32 %v1347, %v1408
        %v1410 = vpop.f32.mrf.mxu0
        %v1411 = vpop.f32.mrf.mxu0
        %v1412 = vpop.f32.mrf.mxu0
        %1413 = vdwg.mxu0
        %v1414 = vmul.f32 %v1401, 0.5
        %v1415 = vmul.f32 %v1404, 0.5
        %v1416 = vmul.f32 %v1409, 0.5
        %v1417 = vmul.f32 %v1401, 0.044715
        %v1418 = vmul.f32 %v1404, 0.044715
        %v1419 = vmul.f32 %v1409, 0.044715
        %v1420 = vmul.f32 %v1417, %v1401
        %v1421 = vmul.f32 %v1418, %v1404
        %v1422 = vmul.f32 %v1419, %v1409
        %v1423 = vmul.f32 %v1420, %v1401
        %v1424 = vmul.f32 %v1421, %v1404
        %v1425 = vmul.f32 %v1422, %v1409
        %v1426 = vadd.f32 %v1401, %v1423
        %v1427 = vadd.f32 %v1404, %v1424
        %v1428 = vadd.f32 %v1409, %v1425
        %v1429 = vmul.f32 %v1426, 0.7978846
        %v1430 = vmul.f32 %v1427, 0.7978846
        %v1431 = vmul.f32 %v1428, 0.7978846
        %v1432 = vtanh.pop %v1429
        %v1433 = vtanh.pop %v1430
        %v1434 = vtanh.pop %v1431
        %v1435 = vadd.f32 %v1432, 1.0
        %v1436 = vadd.f32 %v1433, 1.0
        %v1437 = vadd.f32 %v1434, 1.0
        %v1438 = vmul.f32 %v1414, %v1435
        %v1439 = vmul.f32 %v1415, %v1436
        %v1440 = vmul.f32 %v1416, %v1437
        %v1441 = vpack.c.bf16 %v1439, %v1438
        %v1442 = vpack.c.bf16 %v1440, %v1440
        %v1443 = vlaneseq
        %v1444 = vshrl.u32 %v1443, 7
        %v1445 = vsub.s32 0, %v1444
        %v1446 = vrot.slane %v348, %v1445
        %v1455 = vunpack.c.l.b16 %v333
        %v1456 = vunpack.c.l.b16 %v334
        %v1457 = vunpack.c.l.b16 %v335
        %v1458 = vunpack.c.l.b16 %v336
        %v1459 = vunpack.c.l.b16 %v337
        %v1460 = vunpack.c.l.b16 %v338
        %v1461 = vunpack.c.l.b16 %v339
        %v1462 = vunpack.c.l.b16 %v340
        %v1463 = vpack.c.b16 %v1456, %v1455
        %v1464 = vpack.c.b16 %v1458, %v1457
        %v1465 = vpack.c.b16 %v1460, %v1459
        %v1466 = vpack.c.b16 %v1462, %v1461
        %v1472 = vsel %vm263, %v1441, 0
        %v1475 = vsel %vm263, %v1442, 0
        %1477 = vmatprep.subr.bf16.mxu0 0
        %1478 = vmatpush1.bf16.msra.mxu0 0
        %1479 = vmatprep.subr.bf16.mxu0 0
        %1480 = vmatpush1.bf16.msra.mxu0 0
        %1481 = vmatprep.subr.bf16.mxu0 0
        %1482 = vmatpush1.bf16.msra.mxu0 0
        %1483 = vmatprep.subr.bf16.mxu0 0
        %1484 = vmatpush1.bf16.msra.mxu0 0
        %1485 = vmatprep.subr.bf16.mxu0 0
        %1486 = vmatpush1.bf16.msra.mxu0 %v1466
        %1487 = vmatprep.subr.bf16.mxu0 0
        %1488 = vmatpush1.bf16.msra.mxu0 %v1465
        %1489 = vmatprep.subr.bf16.mxu0 0
        %1490 = vmatpush1.bf16.msra.mxu0 %v1464
        %1491 = vmatprep.subr.bf16.mxu0 0
        %1492 = vmatpush1.bf16.msra.mxu0 %v1463
        %1493 = vmatprep.subr.bf16.mxu0 0
        %1494 = vmatpush2.bf16.msra.mxu0 0
        %1495 = vmatprep.subr.bf16.mxu0 0
        %1496 = vmatpush2.bf16.msra.mxu0 0
        %1497 = vmatprep.subr.bf16.mxu0 0
        %1498 = vmatpush2.bf16.msra.mxu0 0
        %1499 = vmatprep.subr.bf16.mxu0 0
        %1500 = vmatpush2.bf16.msra.mxu0 0
        %1501 = vmatprep.subr.bf16.mxu0 0
        %1502 = vmatpush2.bf16.msra.mxu0 0
        %1503 = vmatprep.subr.bf16.mxu0 0
        %1504 = vmatpush2.bf16.msra.mxu0 0
        %1505 = vmatprep.subr.bf16.mxu0 0
        %1506 = vmatpush2.bf16.msra.mxu0 0
        %1507 = vmatprep.subr.bf16.mxu0 0
        %1508 = vmatpush2.bf16.msra.mxu0 0
        %1509 = vmatprep.mubr.bf16.mxu0 0
        %1510 = vmatmul.mubr.bf16.gmra.mxu0 %v1472
        %v1511 = vpop.f32.mrf.mxu0
        %v1512 = vadd.f32 %v1446, %v1511
        %v1513 = vpop.f32.mrf.mxu0
        %v1514 = vpop.f32.mrf.mxu0
        %v1515 = vadd.f32 %v1446, %v1514
        %v1516 = vpop.f32.mrf.mxu0
        %1517 = vmatprep.mubr.bf16.mxu0 0
        %1518 = vmatmul.mubr.bf16.gmra.mxu0 %v1475
        %v1519 = vpop.f32.mrf.mxu0
        %v1520 = vadd.f32 %v1446, %v1519
        %v1521 = vpop.f32.mrf.mxu0
        %v1522 = vpop.f32.mrf.mxu0
        %v1523 = vpop.f32.mrf.mxu0
        %1524 = vdwg.mxu0
        %v1525 = vadd.f32 %v1280, %v1512
        %v1526 = vadd.f32 %v1281, %v1515
        %v1527 = vadd.f32 %v1282, %v1520
        %s1528 = scalar_lea.vmem %s1, 80
        %v1529 = vld [vmem:[%s1528] sm:$0xf]
        %v1530 = vld [vmem:[%s1528 + $0x4] sm:$0xf]
        %v1531 = vld [vmem:[%s1528 + $0x8] sm:$0xf]
        %v1532 = vld [vmem:[%s1528 + $0xc] sm:$0xf]
        %v1533 = vld [vmem:[%s1528 + $0x10] sm:$0xf]
        %v1534 = vld [vmem:[%s1528 + $0x14] sm:$0xf]
        %v1535 = vld [vmem:[%s1528 + $0x18] sm:$0xf]
        %v1536 = vld [vmem:[%s1528 + $0x1c] sm:$0xf]
        %v1537 = vld [vmem:[%s1528 + $0x20] sm:$0xf]
        %v1538 = vld [vmem:[%s1528 + $0x24] sm:$0xf]
        %v1539 = vld [vmem:[%s1528 + $0x28] sm:$0xf]
        %v1540 = vld [vmem:[%s1528 + $0x2c] sm:$0xf]
        %v1541 = vld [vmem:[%s1528 + $0x30] sm:$0xf]
        %v1542 = vld [vmem:[%s1528 + $0x34] sm:$0xf]
        %v1543 = vld [vmem:[%s1528 + $0x38] sm:$0xf]
        %v1544 = vld [vmem:[%s1528 + $0x3c] sm:$0xf]
        %v1545 = vld [vmem:[%s1528 + $0x40] sm:$0xf]
        %v1546 = vld [vmem:[%s1528 + $0x44] sm:$0xf]
        %v1547 = vld [vmem:[%s1528 + $0x48] sm:$0xf]
        %v1548 = vld [vmem:[%s1528 + $0x4c] sm:$0xf]
        %s1549 = scalar_lea.vmem %s2, 8
        %v1550 = vld [vmem:[%s1549] sm:$0x1]
        %v1551 = vld [vmem:[%s1549 + $0x1] sm:$0x1]
        %v1552 = vld [vmem:[%s1549 + $0x2] sm:$0x1]
        %v1553 = vld [vmem:[%s1549 + $0x3] sm:$0x1]
        %v1554 = vld [vmem:[%s1549 + $0x4] sm:$0x1]
        %v1555 = vld [vmem:[%s1549 + $0x5] sm:$0x1]
        %v1556 = vld [vmem:[%s1549 + $0x6] sm:$0x1]
        %v1557 = vld [vmem:[%s1549 + $0x7] sm:$0x1]
        %v1558 = vsel %vm312, %v1525, 0.0
        %1559 = vadd.xlane.f32.xlu0 %v1558
        %v1560 = vpop.xlane.xlu0 %1559
        %v1561 = vsel %vm312, %v1526, 0.0
        %1562 = vadd.xlane.f32.xlu0 %v1561
        %v1563 = vpop.xlane.xlu0 %1562
        %v1564 = vsel %vm316, %v1527, 0.0
        %1565 = vadd.xlane.f32.xlu0 %v1564
        %v1566 = vpop.xlane.xlu0 %1565
        %v1567 = vmul.f32 %v1525, %v1525
        %v1568 = vmul.f32 %v1526, %v1526
        %v1569 = vmul.f32 %v1527, %v1527
        %v1570 = vsel %vm312, %v1567, 0.0
        %1571 = vadd.xlane.f32.xlu0 %v1570
        %v1572 = vpop.xlane.xlu0 %1571
        %v1573 = vsel %vm312, %v1568, 0.0
        %1574 = vadd.xlane.f32.xlu0 %v1573
        %v1575 = vpop.xlane.xlu0 %1574
        %v1576 = vsel %vm316, %v1569, 0.0
        %1577 = vadd.xlane.f32.xlu0 %v1576
        %v1578 = vpop.xlane.xlu0 %1577
        %v1579 = vmul.f32 %v1560, 0.03125
        %v1580 = vmul.f32 %v1563, 0.03125
        %v1581 = vmul.f32 %v1566, 0.03125
        %v1582 = vmul.f32 %v1572, 0.03125
        %v1583 = vmul.f32 %v1575, 0.03125
        %v1584 = vmul.f32 %v1578, 0.03125
        %v1585 = vmul.f32 %v1579, %v1579
        %v1586 = vmul.f32 %v1580, %v1580
        %v1587 = vmul.f32 %v1581, %v1581
        %v1588 = vsub.f32 %v1582, %v1585
        %v1589 = vsub.f32 %v1583, %v1586
        %v1590 = vsub.f32 %v1584, %v1587
        %v1591 = vsub.f32 %v1525, %v1579
        %v1592 = vsub.f32 %v1526, %v1580
        %v1593 = vsub.f32 %v1527, %v1581
        %v1594 = vadd.f32 %v1588, 1e-06
        %v1595 = vadd.f32 %v1589, 1e-06
        %v1596 = vadd.f32 %v1590, 1e-06
        %v1597 = vrsqrt.pop %v1594
        %v1598 = vrsqrt.pop %v1595
        %v1599 = vrsqrt.pop %v1596
        %v1600 = vmul.f32 %v1591, %v1597
        %v1601 = vmul.f32 %v1592, %v1598
        %v1602 = vmul.f32 %v1593, %v1599
        %v1603 = vlaneseq
        %v1604 = vshrl.u32 %v1603, 7
        %v1605 = vsub.s32 0, %v1604
        %v1606 = vrot.slane %v1550, %v1605
        %v1607 = vmul.f32 %v1600, %v1606
        %v1608 = vmul.f32 %v1601, %v1606
        %v1609 = vmul.f32 %v1602, %v1606
        %v1610 = vlaneseq
        %v1611 = vshrl.u32 %v1610, 7
        %v1612 = vsub.s32 0, %v1611
        %v1613 = vrot.slane %v1551, %v1612
        %v1614 = vadd.f32 %v1607, %v1613
        %v1615 = vadd.f32 %v1608, %v1613
        %v1616 = vadd.f32 %v1609, %v1613
        %v1617 = vpack.c.bf16 %v1615, %v1614
        %v1618 = vpack.c.bf16 %v1616, %v1616
        %v1619 = vlaneseq
        %v1620 = vshrl.u32 %v1619, 7
        %v1621 = vsub.s32 0, %v1620
        %v1622 = vrot.slane %v1554, %v1621
        %v1627 = vunpack.c.l.b16 %v1529
        %v1628 = vunpack.c.l.b16 %v1530
        %v1629 = vunpack.c.l.b16 %v1531
        %v1630 = vunpack.c.l.b16 %v1532
        %v1631 = vpack.c.b16 %v1628, %v1627
        %v1632 = vpack.c.b16 %v1630, %v1629
        %v1636 = vsel %vm312, %v1617, 0
        %v1639 = vsel %vm312, %v1618, 0
        %1641 = vmatprep.subr.bf16.mxu0 0
        %1642 = vmatpush1.bf16.msra.mxu0 0
        %1643 = vmatprep.subr.bf16.mxu0 0
        %1644 = vmatpush1.bf16.msra.mxu0 0
        %1645 = vmatprep.subr.bf16.mxu0 0
        %1646 = vmatpush1.bf16.msra.mxu0 0
        %1647 = vmatprep.subr.bf16.mxu0 0
        %1648 = vmatpush1.bf16.msra.mxu0 0
        %1649 = vmatprep.subr.bf16.mxu0 0
        %1650 = vmatpush1.bf16.msra.mxu0 0
        %1651 = vmatprep.subr.bf16.mxu0 0
        %1652 = vmatpush1.bf16.msra.mxu0 0
        %1653 = vmatprep.subr.bf16.mxu0 0
        %1654 = vmatpush1.bf16.msra.mxu0 %v1632
        %1655 = vmatprep.subr.bf16.mxu0 0
        %1656 = vmatpush1.bf16.msra.mxu0 %v1631
        %1657 = vmatprep.subr.bf16.mxu0 0
        %1658 = vmatpush2.bf16.msra.mxu0 0
        %1659 = vmatprep.subr.bf16.mxu0 0
        %1660 = vmatpush2.bf16.msra.mxu0 0
        %1661 = vmatprep.subr.bf16.mxu0 0
        %1662 = vmatpush2.bf16.msra.mxu0 0
        %1663 = vmatprep.subr.bf16.mxu0 0
        %1664 = vmatpush2.bf16.msra.mxu0 0
        %1665 = vmatprep.subr.bf16.mxu0 0
        %1666 = vmatpush2.bf16.msra.mxu0 0
        %1667 = vmatprep.subr.bf16.mxu0 0
        %1668 = vmatpush2.bf16.msra.mxu0 0
        %1669 = vmatprep.subr.bf16.mxu0 0
        %1670 = vmatpush2.bf16.msra.mxu0 0
        %1671 = vmatprep.subr.bf16.mxu0 0
        %1672 = vmatpush2.bf16.msra.mxu0 0
        %1673 = vmatprep.mubr.bf16.mxu0 0
        %1674 = vmatmul.mubr.bf16.gmra.mxu0 %v1636
        %v1675 = vpop.f32.mrf.mxu0
        %v1676 = vadd.f32 %v1622, %v1675
        %v1677 = vpop.f32.mrf.mxu0
        %v1678 = vpop.f32.mrf.mxu0
        %v1679 = vadd.f32 %v1622, %v1678
        %v1680 = vpop.f32.mrf.mxu0
        %1681 = vmatprep.mubr.bf16.mxu0 0
        %1682 = vmatmul.mubr.bf16.gmra.mxu0 %v1639
        %v1683 = vpop.f32.mrf.mxu0
        %v1684 = vadd.f32 %v1622, %v1683
        %v1685 = vpop.f32.mrf.mxu0
        %v1686 = vpop.f32.mrf.mxu0
        %v1687 = vpop.f32.mrf.mxu0
        %1688 = vdwg.mxu0
        %v1689 = vpack.c.bf16 %v1679, %v1676
        %v1690 = vpack.c.bf16 %v1684, %v1684
        %1693 = vrot.lane.b32.xlu0 %v1689, 96
        %v1694 = vpop.permute.xlu0 %1693
        %1695 = vrot.lane.b32.xlu0 %v1690, 96
        %v1696 = vpop.permute.xlu0 %1695
        %v1698 = vsel %vm488, %v1689, 0
        %v1701 = vsel %vm488, %v1690, 0
        %v1704 = vsel %vm488, %v1694, 0
        %v1707 = vsel %vm488, %v1696, 0
        %1709 = vmatprep.subr.bf16.mxu0 0
        %1710 = vmatpush1.bf16.xpose.msra.mxu0 0
        %1711 = vmatprep.subr.bf16.mxu0 0
        %1712 = vmatpush1.bf16.xpose.msra.mxu0 0
        %1713 = vmatprep.subr.bf16.mxu0 0
        %1714 = vmatpush1.bf16.xpose.msra.mxu0 0
        %1715 = vmatprep.subr.bf16.mxu0 0
        %1716 = vmatpush1.bf16.xpose.msra.mxu0 0
        %1717 = vmatprep.subr.bf16.mxu0 0
        %1718 = vmatpush1.bf16.xpose.msra.mxu0 0
        %1719 = vmatprep.subr.bf16.mxu0 0
        %1720 = vmatpush1.bf16.xpose.msra.mxu0 0
        %1721 = vmatprep.subr.bf16.mxu0 0
        %1722 = vmatpush1.bf16.xpose.msra.mxu0 %v1707
        %1723 = vmatprep.subr.bf16.mxu0 0
        %1724 = vmatpush1.bf16.xpose.msra.mxu0 %v1704
        %1725 = vmatprep.subr.bf16.mxu0 0
        %1726 = vmatpush2.bf16.xpose.msra.mxu0 0
        %1727 = vmatprep.subr.bf16.mxu0 0
        %1728 = vmatpush2.bf16.xpose.msra.mxu0 0
        %1729 = vmatprep.subr.bf16.mxu0 0
        %1730 = vmatpush2.bf16.xpose.msra.mxu0 0
        %1731 = vmatprep.subr.bf16.mxu0 0
        %1732 = vmatpush2.bf16.xpose.msra.mxu0 0
        %1733 = vmatprep.subr.bf16.mxu0 0
        %1734 = vmatpush2.bf16.xpose.msra.mxu0 0
        %1735 = vmatprep.subr.bf16.mxu0 0
        %1736 = vmatpush2.bf16.xpose.msra.mxu0 0
        %1737 = vmatprep.subr.bf16.mxu0 0
        %1738 = vmatpush2.bf16.xpose.msra.mxu0 0
        %1739 = vmatprep.subr.bf16.mxu0 0
        %1740 = vmatpush2.bf16.xpose.msra.mxu0 0
        %1741 = vmatprep.mubr.bf16.mxu0 0
        %1742 = vmatmul.mubr.bf16.gmra.mxu0 %v1698
        %v1743 = vpop.f32.mrf.mxu0
        %v1744 = vadd.f32 0.0, %v1743
        %v1745 = vpop.f32.mrf.mxu0
        %v1746 = vpop.f32.mrf.mxu0
        %v1747 = vadd.f32 0.0, %v1746
        %v1748 = vpop.f32.mrf.mxu0
        %1749 = vmatprep.mubr.bf16.mxu0 0
        %1750 = vmatmul.mubr.bf16.gmra.mxu0 %v1701
        %v1751 = vpop.f32.mrf.mxu0
        %v1752 = vadd.f32 0.0, %v1751
        %v1753 = vpop.f32.mrf.mxu0
        %v1754 = vpop.f32.mrf.mxu0
        %v1755 = vpop.f32.mrf.mxu0
        %1756 = vdwg.mxu0
        %v1757 = vmul.f32 %v1744, 0.35355338
        %v1758 = vmul.f32 %v1747, 0.35355338
        %v1759 = vmul.f32 %v1752, 0.35355338
        %v1760 = vsel %vm552, %v1757, -inf
        %1761 = vmax.xlane.f32.xlu0 %v1760
        %v1762 = vpop.xlane.xlu0 %1761
        %v1763 = vsel %vm552, %v1758, -inf
        %1764 = vmax.xlane.f32.xlu0 %v1763
        %v1765 = vpop.xlane.xlu0 %1764
        %v1766 = vsel %vm559, %v1759, -inf
        %1767 = vmax.xlane.f32.xlu0 %v1766
        %v1768 = vpop.xlane.xlu0 %1767
        %v1769 = vsub.f32 %v1757, %v1762
        %v1770 = vsub.f32 %v1758, %v1765
        %v1771 = vsub.f32 %v1759, %v1768
        %v1772 = vmul.f32 %v1769, 1.442695
        %v1773 = vpow.pop %v1772
        %v1774 = vmul.f32 %v1770, 1.442695
        %v1775 = vpow.pop %v1774
        %v1776 = vmul.f32 %v1771, 1.442695
        %v1777 = vpow.pop %v1776
        %v1778 = vsel %vm552, %v1773, 0.0
        %1779 = vadd.xlane.f32.xlu0 %v1778
        %v1780 = vpop.xlane.xlu0 %1779
        %v1781 = vsel %vm552, %v1775, 0.0
        %1782 = vadd.xlane.f32.xlu0 %v1781
        %v1783 = vpop.xlane.xlu0 %1782
        %v1784 = vsel %vm559, %v1777, 0.0
        %1785 = vadd.xlane.f32.xlu0 %v1784
        %v1786 = vpop.xlane.xlu0 %1785
        %v1787 = vrcp.pop %v1780
        %v1788 = vrcp.pop %v1783
        %v1789 = vrcp.pop %v1786
        %v1790 = vmul.f32 %v1773, %v1787
        %v1791 = vmul.f32 %v1775, %v1788
        %v1792 = vmul.f32 %v1777, %v1789
        %v1793 = vpack.c.bf16 %v1791, %v1790
        %v1794 = vpack.c.bf16 %v1792, %v1792
        %1795 = vrot.lane.b32.xlu0 %v1689, 64
        %v1796 = vpop.permute.xlu0 %1795
        %1797 = vrot.lane.b32.xlu0 %v1690, 64
        %v1798 = vpop.permute.xlu0 %1797
        %v1801 = vsel %vm552, %v1793, 0
        %v1804 = vsel %vm552, %v1794, 0
        %v1807 = vand.u32 %v1798, %v602
        %1809 = vmatprep.subr.bf16.mxu0 0
        %1810 = vmatpush1.bf16.msra.mxu0 0
        %1811 = vmatprep.subr.bf16.mxu0 0
        %1812 = vmatpush1.bf16.msra.mxu0 0
        %1813 = vmatprep.subr.bf16.mxu0 0
        %1814 = vmatpush1.bf16.msra.mxu0 0
        %1815 = vmatprep.subr.bf16.mxu0 0
        %1816 = vmatpush1.bf16.msra.mxu0 0
        %1817 = vmatprep.subr.bf16.mxu0 0
        %1818 = vmatpush1.bf16.msra.mxu0 0
        %1819 = vmatprep.subr.bf16.mxu0 0
        %1820 = vmatpush1.bf16.msra.mxu0 0
        %1821 = vmatprep.subr.bf16.mxu0 0
        %1822 = vmatpush1.bf16.msra.mxu0 %v1807
        %1823 = vmatprep.subr.bf16.mxu0 0
        %1824 = vmatpush1.bf16.msra.mxu0 %v1796
        %1825 = vmatprep.subr.bf16.mxu0 0
        %1826 = vmatpush2.bf16.msra.mxu0 0
        %1827 = vmatprep.subr.bf16.mxu0 0
        %1828 = vmatpush2.bf16.msra.mxu0 0
        %1829 = vmatprep.subr.bf16.mxu0 0
        %1830 = vmatpush2.bf16.msra.mxu0 0
        %1831 = vmatprep.subr.bf16.mxu0 0
        %1832 = vmatpush2.bf16.msra.mxu0 0
        %1833 = vmatprep.subr.bf16.mxu0 0
        %1834 = vmatpush2.bf16.msra.mxu0 0
        %1835 = vmatprep.subr.bf16.mxu0 0
        %1836 = vmatpush2.bf16.msra.mxu0 0
        %1837 = vmatprep.subr.bf16.mxu0 0
        %1838 = vmatpush2.bf16.msra.mxu0 0
        %1839 = vmatprep.subr.bf16.mxu0 0
        %1840 = vmatpush2.bf16.msra.mxu0 0
        %1841 = vmatprep.mubr.bf16.mxu0 0
        %1842 = vmatmul.mubr.bf16.gmra.mxu0 %v1801
        %v1843 = vpop.f32.mrf.mxu0
        %v1844 = vadd.f32 0.0, %v1843
        %v1845 = vpop.f32.mrf.mxu0
        %v1846 = vpop.f32.mrf.mxu0
        %v1847 = vadd.f32 0.0, %v1846
        %v1848 = vpop.f32.mrf.mxu0
        %1849 = vmatprep.mubr.bf16.mxu0 0
        %1850 = vmatmul.mubr.bf16.gmra.mxu0 %v1804
        %v1851 = vpop.f32.mrf.mxu0
        %v1852 = vadd.f32 0.0, %v1851
        %v1853 = vpop.f32.mrf.mxu0
        %v1854 = vpop.f32.mrf.mxu0
        %v1855 = vpop.f32.mrf.mxu0
        %1856 = vdwg.mxu0
        %1857 = vrot.lane.b32.xlu0 %v1689, 120
        %v1858 = vpop.permute.xlu0 %1857
        %1859 = vrot.lane.b32.xlu0 %v1690, 120
        %v1860 = vpop.permute.xlu0 %1859
        %1861 = vrot.lane.b32.xlu0 %v1689, 88
        %v1862 = vpop.permute.xlu0 %1861
        %1863 = vrot.lane.b32.xlu0 %v1690, 88
        %v1864 = vpop.permute.xlu0 %1863
        %v1866 = vsel %vm488, %v1858, 0
        %v1869 = vsel %vm488, %v1860, 0
        %v1872 = vsel %vm488, %v1862, 0
        %v1875 = vsel %vm488, %v1864, 0
        %1877 = vmatprep.subr.bf16.mxu0 0
        %1878 = vmatpush1.bf16.xpose.msra.mxu0 0
        %1879 = vmatprep.subr.bf16.mxu0 0
        %1880 = vmatpush1.bf16.xpose.msra.mxu0 0
        %1881 = vmatprep.subr.bf16.mxu0 0
        %1882 = vmatpush1.bf16.xpose.msra.mxu0 0
        %1883 = vmatprep.subr.bf16.mxu0 0
        %1884 = vmatpush1.bf16.xpose.msra.mxu0 0
        %1885 = vmatprep.subr.bf16.mxu0 0
        %1886 = vmatpush1.bf16.xpose.msra.mxu0 0
        %1887 = vmatprep.subr.bf16.mxu0 0
        %1888 = vmatpush1.bf16.xpose.msra.mxu0 0
        %1889 = vmatprep.subr.bf16.mxu0 0
        %1890 = vmatpush1.bf16.xpose.msra.mxu0 %v1875
        %1891 = vmatprep.subr.bf16.mxu0 0
        %1892 = vmatpush1.bf16.xpose.msra.mxu0 %v1872
        %1893 = vmatprep.subr.bf16.mxu0 0
        %1894 = vmatpush2.bf16.xpose.msra.mxu0 0
        %1895 = vmatprep.subr.bf16.mxu0 0
        %1896 = vmatpush2.bf16.xpose.msra.mxu0 0
        %1897 = vmatprep.subr.bf16.mxu0 0
        %1898 = vmatpush2.bf16.xpose.msra.mxu0 0
        %1899 = vmatprep.subr.bf16.mxu0 0
        %1900 = vmatpush2.bf16.xpose.msra.mxu0 0
        %1901 = vmatprep.subr.bf16.mxu0 0
        %1902 = vmatpush2.bf16.xpose.msra.mxu0 0
        %1903 = vmatprep.subr.bf16.mxu0 0
        %1904 = vmatpush2.bf16.xpose.msra.mxu0 0
        %1905 = vmatprep.subr.bf16.mxu0 0
        %1906 = vmatpush2.bf16.xpose.msra.mxu0 0
        %1907 = vmatprep.subr.bf16.mxu0 0
        %1908 = vmatpush2.bf16.xpose.msra.mxu0 0
        %1909 = vmatprep.mubr.bf16.mxu0 0
        %1910 = vmatmul.mubr.bf16.gmra.mxu0 %v1866
        %v1911 = vpop.f32.mrf.mxu0
        %v1912 = vadd.f32 0.0, %v1911
        %v1913 = vpop.f32.mrf.mxu0
        %v1914 = vpop.f32.mrf.mxu0
        %v1915 = vadd.f32 0.0, %v1914
        %v1916 = vpop.f32.mrf.mxu0
        %1917 = vmatprep.mubr.bf16.mxu0 0
        %1918 = vmatmul.mubr.bf16.gmra.mxu0 %v1869
        %v1919 = vpop.f32.mrf.mxu0
        %v1920 = vadd.f32 0.0, %v1919
        %v1921 = vpop.f32.mrf.mxu0
        %v1922 = vpop.f32.mrf.mxu0
        %v1923 = vpop.f32.mrf.mxu0
        %1924 = vdwg.mxu0
        %v1925 = vmul.f32 %v1912, 0.35355338
        %v1926 = vmul.f32 %v1915, 0.35355338
        %v1927 = vmul.f32 %v1920, 0.35355338
        %v1928 = vsel %vm552, %v1925, -inf
        %1929 = vmax.xlane.f32.xlu0 %v1928
        %v1930 = vpop.xlane.xlu0 %1929
        %v1931 = vsel %vm552, %v1926, -inf
        %1932 = vmax.xlane.f32.xlu0 %v1931
        %v1933 = vpop.xlane.xlu0 %1932
        %v1934 = vsel %vm559, %v1927, -inf
        %1935 = vmax.xlane.f32.xlu0 %v1934
        %v1936 = vpop.xlane.xlu0 %1935
        %v1937 = vsub.f32 %v1925, %v1930
        %v1938 = vsub.f32 %v1926, %v1933
        %v1939 = vsub.f32 %v1927, %v1936
        %v1940 = vmul.f32 %v1937, 1.442695
        %v1941 = vpow.pop %v1940
        %v1942 = vmul.f32 %v1938, 1.442695
        %v1943 = vpow.pop %v1942
        %v1944 = vmul.f32 %v1939, 1.442695
        %v1945 = vpow.pop %v1944
        %v1946 = vsel %vm552, %v1941, 0.0
        %1947 = vadd.xlane.f32.xlu0 %v1946
        %v1948 = vpop.xlane.xlu0 %1947
        %v1949 = vsel %vm552, %v1943, 0.0
        %1950 = vadd.xlane.f32.xlu0 %v1949
        %v1951 = vpop.xlane.xlu0 %1950
        %v1952 = vsel %vm559, %v1945, 0.0
        %1953 = vadd.xlane.f32.xlu0 %v1952
        %v1954 = vpop.xlane.xlu0 %1953
        %v1955 = vrcp.pop %v1948
        %v1956 = vrcp.pop %v1951
        %v1957 = vrcp.pop %v1954
        %v1958 = vmul.f32 %v1941, %v1955
        %v1959 = vmul.f32 %v1943, %v1956
        %v1960 = vmul.f32 %v1945, %v1957
        %v1961 = vpack.c.bf16 %v1959, %v1958
        %v1962 = vpack.c.bf16 %v1960, %v1960
        %1963 = vrot.lane.b32.xlu0 %v1689, 56
        %v1964 = vpop.permute.xlu0 %1963
        %1965 = vrot.lane.b32.xlu0 %v1690, 56
        %v1966 = vpop.permute.xlu0 %1965
        %v1969 = vsel %vm552, %v1961, 0
        %v1972 = vsel %vm552, %v1962, 0
        %v1975 = vand.u32 %v1966, %v602
        %1977 = vmatprep.subr.bf16.mxu0 0
        %1978 = vmatpush1.bf16.msra.mxu0 0
        %1979 = vmatprep.subr.bf16.mxu0 0
        %1980 = vmatpush1.bf16.msra.mxu0 0
        %1981 = vmatprep.subr.bf16.mxu0 0
        %1982 = vmatpush1.bf16.msra.mxu0 0
        %1983 = vmatprep.subr.bf16.mxu0 0
        %1984 = vmatpush1.bf16.msra.mxu0 0
        %1985 = vmatprep.subr.bf16.mxu0 0
        %1986 = vmatpush1.bf16.msra.mxu0 0
        %1987 = vmatprep.subr.bf16.mxu0 0
        %1988 = vmatpush1.bf16.msra.mxu0 0
        %1989 = vmatprep.subr.bf16.mxu0 0
        %1990 = vmatpush1.bf16.msra.mxu0 %v1975
        %1991 = vmatprep.subr.bf16.mxu0 0
        %1992 = vmatpush1.bf16.msra.mxu0 %v1964
        %1993 = vmatprep.subr.bf16.mxu0 0
        %1994 = vmatpush2.bf16.msra.mxu0 0
        %1995 = vmatprep.subr.bf16.mxu0 0
        %1996 = vmatpush2.bf16.msra.mxu0 0
        %1997 = vmatprep.subr.bf16.mxu0 0
        %1998 = vmatpush2.bf16.msra.mxu0 0
        %1999 = vmatprep.subr.bf16.mxu0 0
        %2000 = vmatpush2.bf16.msra.mxu0 0
        %2001 = vmatprep.subr.bf16.mxu0 0
        %2002 = vmatpush2.bf16.msra.mxu0 0
        %2003 = vmatprep.subr.bf16.mxu0 0
        %2004 = vmatpush2.bf16.msra.mxu0 0
        %2005 = vmatprep.subr.bf16.mxu0 0
        %2006 = vmatpush2.bf16.msra.mxu0 0
        %2007 = vmatprep.subr.bf16.mxu0 0
        %2008 = vmatpush2.bf16.msra.mxu0 0
        %2009 = vmatprep.mubr.bf16.mxu0 0
        %2010 = vmatmul.mubr.bf16.gmra.mxu0 %v1969
        %v2011 = vpop.f32.mrf.mxu0
        %v2012 = vadd.f32 0.0, %v2011
        %v2013 = vpop.f32.mrf.mxu0
        %v2014 = vpop.f32.mrf.mxu0
        %v2015 = vadd.f32 0.0, %v2014
        %v2016 = vpop.f32.mrf.mxu0
        %2017 = vmatprep.mubr.bf16.mxu0 0
        %2018 = vmatmul.mubr.bf16.gmra.mxu0 %v1972
        %v2019 = vpop.f32.mrf.mxu0
        %v2020 = vadd.f32 0.0, %v2019
        %v2021 = vpop.f32.mrf.mxu0
        %v2022 = vpop.f32.mrf.mxu0
        %v2023 = vpop.f32.mrf.mxu0
        %2024 = vdwg.mxu0
        %2025 = vrot.lane.b32.xlu0 %v1689, 112
        %v2026 = vpop.permute.xlu0 %2025
        %2027 = vrot.lane.b32.xlu0 %v1690, 112
        %v2028 = vpop.permute.xlu0 %2027
        %2029 = vrot.lane.b32.xlu0 %v1689, 80
        %v2030 = vpop.permute.xlu0 %2029
        %2031 = vrot.lane.b32.xlu0 %v1690, 80
        %v2032 = vpop.permute.xlu0 %2031
        %v2034 = vsel %vm488, %v2026, 0
        %v2037 = vsel %vm488, %v2028, 0
        %v2040 = vsel %vm488, %v2030, 0
        %v2043 = vsel %vm488, %v2032, 0
        %2045 = vmatprep.subr.bf16.mxu0 0
        %2046 = vmatpush1.bf16.xpose.msra.mxu0 0
        %2047 = vmatprep.subr.bf16.mxu0 0
        %2048 = vmatpush1.bf16.xpose.msra.mxu0 0
        %2049 = vmatprep.subr.bf16.mxu0 0
        %2050 = vmatpush1.bf16.xpose.msra.mxu0 0
        %2051 = vmatprep.subr.bf16.mxu0 0
        %2052 = vmatpush1.bf16.xpose.msra.mxu0 0
        %2053 = vmatprep.subr.bf16.mxu0 0
        %2054 = vmatpush1.bf16.xpose.msra.mxu0 0
        %2055 = vmatprep.subr.bf16.mxu0 0
        %2056 = vmatpush1.bf16.xpose.msra.mxu0 0
        %2057 = vmatprep.subr.bf16.mxu0 0
        %2058 = vmatpush1.bf16.xpose.msra.mxu0 %v2043
        %2059 = vmatprep.subr.bf16.mxu0 0
        %2060 = vmatpush1.bf16.xpose.msra.mxu0 %v2040
        %2061 = vmatprep.subr.bf16.mxu0 0
        %2062 = vmatpush2.bf16.xpose.msra.mxu0 0
        %2063 = vmatprep.subr.bf16.mxu0 0
        %2064 = vmatpush2.bf16.xpose.msra.mxu0 0
        %2065 = vmatprep.subr.bf16.mxu0 0
        %2066 = vmatpush2.bf16.xpose.msra.mxu0 0
        %2067 = vmatprep.subr.bf16.mxu0 0
        %2068 = vmatpush2.bf16.xpose.msra.mxu0 0
        %2069 = vmatprep.subr.bf16.mxu0 0
        %2070 = vmatpush2.bf16.xpose.msra.mxu0 0
        %2071 = vmatprep.subr.bf16.mxu0 0
        %2072 = vmatpush2.bf16.xpose.msra.mxu0 0
        %2073 = vmatprep.subr.bf16.mxu0 0
        %2074 = vmatpush2.bf16.xpose.msra.mxu0 0
        %2075 = vmatprep.subr.bf16.mxu0 0
        %2076 = vmatpush2.bf16.xpose.msra.mxu0 0
        %2077 = vmatprep.mubr.bf16.mxu0 0
        %2078 = vmatmul.mubr.bf16.gmra.mxu0 %v2034
        %v2079 = vpop.f32.mrf.mxu0
        %v2080 = vadd.f32 0.0, %v2079
        %v2081 = vpop.f32.mrf.mxu0
        %v2082 = vpop.f32.mrf.mxu0
        %v2083 = vadd.f32 0.0, %v2082
        %v2084 = vpop.f32.mrf.mxu0
        %2085 = vmatprep.mubr.bf16.mxu0 0
        %2086 = vmatmul.mubr.bf16.gmra.mxu0 %v2037
        %v2087 = vpop.f32.mrf.mxu0
        %v2088 = vadd.f32 0.0, %v2087
        %v2089 = vpop.f32.mrf.mxu0
        %v2090 = vpop.f32.mrf.mxu0
        %v2091 = vpop.f32.mrf.mxu0
        %2092 = vdwg.mxu0
        %v2093 = vmul.f32 %v2080, 0.35355338
        %v2094 = vmul.f32 %v2083, 0.35355338
        %v2095 = vmul.f32 %v2088, 0.35355338
        %v2096 = vsel %vm552, %v2093, -inf
        %2097 = vmax.xlane.f32.xlu0 %v2096
        %v2098 = vpop.xlane.xlu0 %2097
        %v2099 = vsel %vm552, %v2094, -inf
        %2100 = vmax.xlane.f32.xlu0 %v2099
        %v2101 = vpop.xlane.xlu0 %2100
        %v2102 = vsel %vm559, %v2095, -inf
        %2103 = vmax.xlane.f32.xlu0 %v2102
        %v2104 = vpop.xlane.xlu0 %2103
        %v2105 = vsub.f32 %v2093, %v2098
        %v2106 = vsub.f32 %v2094, %v2101
        %v2107 = vsub.f32 %v2095, %v2104
        %v2108 = vmul.f32 %v2105, 1.442695
        %v2109 = vpow.pop %v2108
        %v2110 = vmul.f32 %v2106, 1.442695
        %v2111 = vpow.pop %v2110
        %v2112 = vmul.f32 %v2107, 1.442695
        %v2113 = vpow.pop %v2112
        %v2114 = vsel %vm552, %v2109, 0.0
        %2115 = vadd.xlane.f32.xlu0 %v2114
        %v2116 = vpop.xlane.xlu0 %2115
        %v2117 = vsel %vm552, %v2111, 0.0
        %2118 = vadd.xlane.f32.xlu0 %v2117
        %v2119 = vpop.xlane.xlu0 %2118
        %v2120 = vsel %vm559, %v2113, 0.0
        %2121 = vadd.xlane.f32.xlu0 %v2120
        %v2122 = vpop.xlane.xlu0 %2121
        %v2123 = vrcp.pop %v2116
        %v2124 = vrcp.pop %v2119
        %v2125 = vrcp.pop %v2122
        %v2126 = vmul.f32 %v2109, %v2123
        %v2127 = vmul.f32 %v2111, %v2124
        %v2128 = vmul.f32 %v2113, %v2125
        %v2129 = vpack.c.bf16 %v2127, %v2126
        %v2130 = vpack.c.bf16 %v2128, %v2128
        %2131 = vrot.lane.b32.xlu0 %v1689, 48
        %v2132 = vpop.permute.xlu0 %2131
        %2133 = vrot.lane.b32.xlu0 %v1690, 48
        %v2134 = vpop.permute.xlu0 %2133
        %v2137 = vsel %vm552, %v2129, 0
        %v2140 = vsel %vm552, %v2130, 0
        %v2143 = vand.u32 %v2134, %v602
        %2145 = vmatprep.subr.bf16.mxu0 0
        %2146 = vmatpush1.bf16.msra.mxu0 0
        %2147 = vmatprep.subr.bf16.mxu0 0
        %2148 = vmatpush1.bf16.msra.mxu0 0
        %2149 = vmatprep.subr.bf16.mxu0 0
        %2150 = vmatpush1.bf16.msra.mxu0 0
        %2151 = vmatprep.subr.bf16.mxu0 0
        %2152 = vmatpush1.bf16.msra.mxu0 0
        %2153 = vmatprep.subr.bf16.mxu0 0
        %2154 = vmatpush1.bf16.msra.mxu0 0
        %2155 = vmatprep.subr.bf16.mxu0 0
        %2156 = vmatpush1.bf16.msra.mxu0 0
        %2157 = vmatprep.subr.bf16.mxu0 0
        %2158 = vmatpush1.bf16.msra.mxu0 %v2143
        %2159 = vmatprep.subr.bf16.mxu0 0
        %2160 = vmatpush1.bf16.msra.mxu0 %v2132
        %2161 = vmatprep.subr.bf16.mxu0 0
        %2162 = vmatpush2.bf16.msra.mxu0 0
        %2163 = vmatprep.subr.bf16.mxu0 0
        %2164 = vmatpush2.bf16.msra.mxu0 0
        %2165 = vmatprep.subr.bf16.mxu0 0
        %2166 = vmatpush2.bf16.msra.mxu0 0
        %2167 = vmatprep.subr.bf16.mxu0 0
        %2168 = vmatpush2.bf16.msra.mxu0 0
        %2169 = vmatprep.subr.bf16.mxu0 0
        %2170 = vmatpush2.bf16.msra.mxu0 0
        %2171 = vmatprep.subr.bf16.mxu0 0
        %2172 = vmatpush2.bf16.msra.mxu0 0
        %2173 = vmatprep.subr.bf16.mxu0 0
        %2174 = vmatpush2.bf16.msra.mxu0 0
        %2175 = vmatprep.subr.bf16.mxu0 0
        %2176 = vmatpush2.bf16.msra.mxu0 0
        %2177 = vmatprep.mubr.bf16.mxu0 0
        %2178 = vmatmul.mubr.bf16.gmra.mxu0 %v2137
        %v2179 = vpop.f32.mrf.mxu0
        %v2180 = vadd.f32 0.0, %v2179
        %v2181 = vpop.f32.mrf.mxu0
        %v2182 = vpop.f32.mrf.mxu0
        %v2183 = vadd.f32 0.0, %v2182
        %v2184 = vpop.f32.mrf.mxu0
        %2185 = vmatprep.mubr.bf16.mxu0 0
        %2186 = vmatmul.mubr.bf16.gmra.mxu0 %v2140
        %v2187 = vpop.f32.mrf.mxu0
        %v2188 = vadd.f32 0.0, %v2187
        %v2189 = vpop.f32.mrf.mxu0
        %v2190 = vpop.f32.mrf.mxu0
        %v2191 = vpop.f32.mrf.mxu0
        %2192 = vdwg.mxu0
        %2193 = vrot.lane.b32.xlu0 %v1689, 104
        %v2194 = vpop.permute.xlu0 %2193
        %2195 = vrot.lane.b32.xlu0 %v1690, 104
        %v2196 = vpop.permute.xlu0 %2195
        %2197 = vrot.lane.b32.xlu0 %v1689, 72
        %v2198 = vpop.permute.xlu0 %2197
        %2199 = vrot.lane.b32.xlu0 %v1690, 72
        %v2200 = vpop.permute.xlu0 %2199
        %v2202 = vsel %vm488, %v2194, 0
        %v2205 = vsel %vm488, %v2196, 0
        %v2208 = vsel %vm488, %v2198, 0
        %v2211 = vsel %vm488, %v2200, 0
        %2213 = vmatprep.subr.bf16.mxu0 0
        %2214 = vmatpush1.bf16.xpose.msra.mxu0 0
        %2215 = vmatprep.subr.bf16.mxu0 0
        %2216 = vmatpush1.bf16.xpose.msra.mxu0 0
        %2217 = vmatprep.subr.bf16.mxu0 0
        %2218 = vmatpush1.bf16.xpose.msra.mxu0 0
        %2219 = vmatprep.subr.bf16.mxu0 0
        %2220 = vmatpush1.bf16.xpose.msra.mxu0 0
        %2221 = vmatprep.subr.bf16.mxu0 0
        %2222 = vmatpush1.bf16.xpose.msra.mxu0 0
        %2223 = vmatprep.subr.bf16.mxu0 0
        %2224 = vmatpush1.bf16.xpose.msra.mxu0 0
        %2225 = vmatprep.subr.bf16.mxu0 0
        %2226 = vmatpush1.bf16.xpose.msra.mxu0 %v2211
        %2227 = vmatprep.subr.bf16.mxu0 0
        %2228 = vmatpush1.bf16.xpose.msra.mxu0 %v2208
        %2229 = vmatprep.subr.bf16.mxu0 0
        %2230 = vmatpush2.bf16.xpose.msra.mxu0 0
        %2231 = vmatprep.subr.bf16.mxu0 0
        %2232 = vmatpush2.bf16.xpose.msra.mxu0 0
        %2233 = vmatprep.subr.bf16.mxu0 0
        %2234 = vmatpush2.bf16.xpose.msra.mxu0 0
        %2235 = vmatprep.subr.bf16.mxu0 0
        %2236 = vmatpush2.bf16.xpose.msra.mxu0 0
        %2237 = vmatprep.subr.bf16.mxu0 0
        %2238 = vmatpush2.bf16.xpose.msra.mxu0 0
        %2239 = vmatprep.subr.bf16.mxu0 0
        %2240 = vmatpush2.bf16.xpose.msra.mxu0 0
        %2241 = vmatprep.subr.bf16.mxu0 0
        %2242 = vmatpush2.bf16.xpose.msra.mxu0 0
        %2243 = vmatprep.subr.bf16.mxu0 0
        %2244 = vmatpush2.bf16.xpose.msra.mxu0 0
        %2245 = vmatprep.mubr.bf16.mxu0 0
        %2246 = vmatmul.mubr.bf16.gmra.mxu0 %v2202
        %v2247 = vpop.f32.mrf.mxu0
        %v2248 = vadd.f32 0.0, %v2247
        %v2249 = vpop.f32.mrf.mxu0
        %v2250 = vpop.f32.mrf.mxu0
        %v2251 = vadd.f32 0.0, %v2250
        %v2252 = vpop.f32.mrf.mxu0
        %2253 = vmatprep.mubr.bf16.mxu0 0
        %2254 = vmatmul.mubr.bf16.gmra.mxu0 %v2205
        %v2255 = vpop.f32.mrf.mxu0
        %v2256 = vadd.f32 0.0, %v2255
        %v2257 = vpop.f32.mrf.mxu0
        %v2258 = vpop.f32.mrf.mxu0
        %v2259 = vpop.f32.mrf.mxu0
        %2260 = vdwg.mxu0
        %v2261 = vmul.f32 %v2248, 0.35355338
        %v2262 = vmul.f32 %v2251, 0.35355338
        %v2263 = vmul.f32 %v2256, 0.35355338
        %v2264 = vsel %vm552, %v2261, -inf
        %2265 = vmax.xlane.f32.xlu0 %v2264
        %v2266 = vpop.xlane.xlu0 %2265
        %v2267 = vsel %vm552, %v2262, -inf
        %2268 = vmax.xlane.f32.xlu0 %v2267
        %v2269 = vpop.xlane.xlu0 %2268
        %v2270 = vsel %vm559, %v2263, -inf
        %2271 = vmax.xlane.f32.xlu0 %v2270
        %v2272 = vpop.xlane.xlu0 %2271
        %v2273 = vsub.f32 %v2261, %v2266
        %v2274 = vsub.f32 %v2262, %v2269
        %v2275 = vsub.f32 %v2263, %v2272
        %v2276 = vmul.f32 %v2273, 1.442695
        %v2277 = vpow.pop %v2276
        %v2278 = vmul.f32 %v2274, 1.442695
        %v2279 = vpow.pop %v2278
        %v2280 = vmul.f32 %v2275, 1.442695
        %v2281 = vpow.pop %v2280
        %v2282 = vsel %vm552, %v2277, 0.0
        %2283 = vadd.xlane.f32.xlu0 %v2282
        %v2284 = vpop.xlane.xlu0 %2283
        %v2285 = vsel %vm552, %v2279, 0.0
        %2286 = vadd.xlane.f32.xlu0 %v2285
        %v2287 = vpop.xlane.xlu0 %2286
        %v2288 = vsel %vm559, %v2281, 0.0
        %2289 = vadd.xlane.f32.xlu0 %v2288
        %v2290 = vpop.xlane.xlu0 %2289
        %v2291 = vrcp.pop %v2284
        %v2292 = vrcp.pop %v2287
        %v2293 = vrcp.pop %v2290
        %v2294 = vmul.f32 %v2277, %v2291
        %v2295 = vmul.f32 %v2279, %v2292
        %v2296 = vmul.f32 %v2281, %v2293
        %v2297 = vpack.c.bf16 %v2295, %v2294
        %v2298 = vpack.c.bf16 %v2296, %v2296
        %2299 = vrot.lane.b32.xlu0 %v1689, 40
        %v2300 = vpop.permute.xlu0 %2299
        %2301 = vrot.lane.b32.xlu0 %v1690, 40
        %v2302 = vpop.permute.xlu0 %2301
        %v2305 = vsel %vm552, %v2297, 0
        %v2308 = vsel %vm552, %v2298, 0
        %v2311 = vand.u32 %v2302, %v602
        %2313 = vmatprep.subr.bf16.mxu0 0
        %2314 = vmatpush1.bf16.msra.mxu0 0
        %2315 = vmatprep.subr.bf16.mxu0 0
        %2316 = vmatpush1.bf16.msra.mxu0 0
        %2317 = vmatprep.subr.bf16.mxu0 0
        %2318 = vmatpush1.bf16.msra.mxu0 0
        %2319 = vmatprep.subr.bf16.mxu0 0
        %2320 = vmatpush1.bf16.msra.mxu0 0
        %2321 = vmatprep.subr.bf16.mxu0 0
        %2322 = vmatpush1.bf16.msra.mxu0 0
        %2323 = vmatprep.subr.bf16.mxu0 0
        %2324 = vmatpush1.bf16.msra.mxu0 0
        %2325 = vmatprep.subr.bf16.mxu0 0
        %2326 = vmatpush1.bf16.msra.mxu0 %v2311
        %2327 = vmatprep.subr.bf16.mxu0 0
        %2328 = vmatpush1.bf16.msra.mxu0 %v2300
        %2329 = vmatprep.subr.bf16.mxu0 0
        %2330 = vmatpush2.bf16.msra.mxu0 0
        %2331 = vmatprep.subr.bf16.mxu0 0
        %2332 = vmatpush2.bf16.msra.mxu0 0
        %2333 = vmatprep.subr.bf16.mxu0 0
        %2334 = vmatpush2.bf16.msra.mxu0 0
        %2335 = vmatprep.subr.bf16.mxu0 0
        %2336 = vmatpush2.bf16.msra.mxu0 0
        %2337 = vmatprep.subr.bf16.mxu0 0
        %2338 = vmatpush2.bf16.msra.mxu0 0
        %2339 = vmatprep.subr.bf16.mxu0 0
        %2340 = vmatpush2.bf16.msra.mxu0 0
        %2341 = vmatprep.subr.bf16.mxu0 0
        %2342 = vmatpush2.bf16.msra.mxu0 0
        %2343 = vmatprep.subr.bf16.mxu0 0
        %2344 = vmatpush2.bf16.msra.mxu0 0
        %2345 = vmatprep.mubr.bf16.mxu0 0
        %2346 = vmatmul.mubr.bf16.gmra.mxu0 %v2305
        %v2347 = vpop.f32.mrf.mxu0
        %v2348 = vadd.f32 0.0, %v2347
        %v2349 = vpop.f32.mrf.mxu0
        %v2350 = vpop.f32.mrf.mxu0
        %v2351 = vadd.f32 0.0, %v2350
        %v2352 = vpop.f32.mrf.mxu0
        %2353 = vmatprep.mubr.bf16.mxu0 0
        %2354 = vmatmul.mubr.bf16.gmra.mxu0 %v2308
        %v2355 = vpop.f32.mrf.mxu0
        %v2356 = vadd.f32 0.0, %v2355
        %v2357 = vpop.f32.mrf.mxu0
        %v2358 = vpop.f32.mrf.mxu0
        %v2359 = vpop.f32.mrf.mxu0
        %2360 = vdwg.mxu0
        %2364 = vrot.lane.b32.xlu0 %v2012, 8
        %v2365 = vpop.permute.xlu0 %2364
        %2366 = vrot.lane.b32.xlu0 %v2015, 8
        %v2367 = vpop.permute.xlu0 %2366
        %2368 = vrot.lane.b32.xlu0 %v2020, 8
        %v2369 = vpop.permute.xlu0 %2368
        %2376 = vrot.lane.b32.xlu0 %v2180, 16
        %v2377 = vpop.permute.xlu0 %2376
        %2378 = vrot.lane.b32.xlu0 %v2183, 16
        %v2379 = vpop.permute.xlu0 %2378
        %2380 = vrot.lane.b32.xlu0 %v2188, 16
        %v2381 = vpop.permute.xlu0 %2380
        %2388 = vrot.lane.b32.xlu0 %v2348, 24
        %v2389 = vpop.permute.xlu0 %2388
        %2390 = vrot.lane.b32.xlu0 %v2351, 24
        %v2391 = vpop.permute.xlu0 %2390
        %2392 = vrot.lane.b32.xlu0 %v2356, 24
        %v2393 = vpop.permute.xlu0 %2392
        %v2397 = vsel %vm488, %v1844, %v2365
        %v2398 = vsel %vm488, %v1847, %v2367
        %v2399 = vsel %vm488, %v1852, %v2369
        %v2400 = vsel %vm1197, %v2397, %v2377
        %v2401 = vsel %vm1197, %v2398, %v2379
        %v2402 = vsel %vm1197, %v2399, %v2381
        %v2403 = vsel %vm1201, %v2400, %v2389
        %v2404 = vsel %vm1201, %v2401, %v2391
        %v2405 = vsel %vm1201, %v2402, %v2393
        %v2406 = vpack.c.bf16 %v2404, %v2403
        %v2407 = vpack.c.bf16 %v2405, %v2405
        %v2412 = vunpack.c.l.b16 %v1533
        %v2413 = vunpack.c.l.b16 %v1534
        %v2414 = vunpack.c.l.b16 %v1535
        %v2415 = vunpack.c.l.b16 %v1536
        %v2416 = vpack.c.b16 %v2413, %v2412
        %v2417 = vpack.c.b16 %v2415, %v2414
        %v2421 = vsel %vm312, %v2406, 0
        %v2424 = vsel %vm312, %v2407, 0
        %2426 = vmatprep.subr.bf16.mxu0 0
        %2427 = vmatpush1.bf16.msra.mxu0 0
        %2428 = vmatprep.subr.bf16.mxu0 0
        %2429 = vmatpush1.bf16.msra.mxu0 0
        %2430 = vmatprep.subr.bf16.mxu0 0
        %2431 = vmatpush1.bf16.msra.mxu0 0
        %2432 = vmatprep.subr.bf16.mxu0 0
        %2433 = vmatpush1.bf16.msra.mxu0 0
        %2434 = vmatprep.subr.bf16.mxu0 0
        %2435 = vmatpush1.bf16.msra.mxu0 0
        %2436 = vmatprep.subr.bf16.mxu0 0
        %2437 = vmatpush1.bf16.msra.mxu0 0
        %2438 = vmatprep.subr.bf16.mxu0 0
        %2439 = vmatpush1.bf16.msra.mxu0 %v2417
        %2440 = vmatprep.subr.bf16.mxu0 0
        %2441 = vmatpush1.bf16.msra.mxu0 %v2416
        %2442 = vmatprep.subr.bf16.mxu0 0
        %2443 = vmatpush2.bf16.msra.mxu0 0
        %2444 = vmatprep.subr.bf16.mxu0 0
        %2445 = vmatpush2.bf16.msra.mxu0 0
        %2446 = vmatprep.subr.bf16.mxu0 0
        %2447 = vmatpush2.bf16.msra.mxu0 0
        %2448 = vmatprep.subr.bf16.mxu0 0
        %2449 = vmatpush2.bf16.msra.mxu0 0
        %2450 = vmatprep.subr.bf16.mxu0 0
        %2451 = vmatpush2.bf16.msra.mxu0 0
        %2452 = vmatprep.subr.bf16.mxu0 0
        %2453 = vmatpush2.bf16.msra.mxu0 0
        %2454 = vmatprep.subr.bf16.mxu0 0
        %2455 = vmatpush2.bf16.msra.mxu0 0
        %2456 = vmatprep.subr.bf16.mxu0 0
        %2457 = vmatpush2.bf16.msra.mxu0 0
        %2458 = vmatprep.mubr.bf16.mxu0 0
        %2459 = vmatmul.mubr.bf16.gmra.mxu0 %v2421
        %v2460 = vpop.f32.mrf.mxu0
        %v2461 = vadd.f32 0.0, %v2460
        %v2462 = vpop.f32.mrf.mxu0
        %v2463 = vpop.f32.mrf.mxu0
        %v2464 = vadd.f32 0.0, %v2463
        %v2465 = vpop.f32.mrf.mxu0
        %2466 = vmatprep.mubr.bf16.mxu0 0
        %2467 = vmatmul.mubr.bf16.gmra.mxu0 %v2424
        %v2468 = vpop.f32.mrf.mxu0
        %v2469 = vadd.f32 0.0, %v2468
        %v2470 = vpop.f32.mrf.mxu0
        %v2471 = vpop.f32.mrf.mxu0
        %v2472 = vpop.f32.mrf.mxu0
        %2473 = vdwg.mxu0
        %v2474 = vadd.f32 %v1525, %v2461
        %v2475 = vadd.f32 %v1526, %v2464
        %v2476 = vadd.f32 %v1527, %v2469
        %v2477 = vlaneseq
        %v2478 = vshrl.u32 %v2477, 7
        %v2479 = vsub.s32 0, %v2478
        %v2480 = vrot.slane %v1555, %v2479
        %v2481 = vadd.f32 %v2474, %v2480
        %v2482 = vadd.f32 %v2475, %v2480
        %v2483 = vadd.f32 %v2476, %v2480
        %v2484 = vsel %vm312, %v2481, 0.0
        %2485 = vadd.xlane.f32.xlu0 %v2484
        %v2486 = vpop.xlane.xlu0 %2485
        %v2487 = vsel %vm312, %v2482, 0.0
        %2488 = vadd.xlane.f32.xlu0 %v2487
        %v2489 = vpop.xlane.xlu0 %2488
        %v2490 = vsel %vm316, %v2483, 0.0
        %2491 = vadd.xlane.f32.xlu0 %v2490
        %v2492 = vpop.xlane.xlu0 %2491
        %v2493 = vmul.f32 %v2481, %v2481
        %v2494 = vmul.f32 %v2482, %v2482
        %v2495 = vmul.f32 %v2483, %v2483
        %v2496 = vsel %vm312, %v2493, 0.0
        %2497 = vadd.xlane.f32.xlu0 %v2496
        %v2498 = vpop.xlane.xlu0 %2497
        %v2499 = vsel %vm312, %v2494, 0.0
        %2500 = vadd.xlane.f32.xlu0 %v2499
        %v2501 = vpop.xlane.xlu0 %2500
        %v2502 = vsel %vm316, %v2495, 0.0
        %2503 = vadd.xlane.f32.xlu0 %v2502
        %v2504 = vpop.xlane.xlu0 %2503
        %v2505 = vmul.f32 %v2486, 0.03125
        %v2506 = vmul.f32 %v2489, 0.03125
        %v2507 = vmul.f32 %v2492, 0.03125
        %v2508 = vmul.f32 %v2498, 0.03125
        %v2509 = vmul.f32 %v2501, 0.03125
        %v2510 = vmul.f32 %v2504, 0.03125
        %v2511 = vmul.f32 %v2505, %v2505
        %v2512 = vmul.f32 %v2506, %v2506
        %v2513 = vmul.f32 %v2507, %v2507
        %v2514 = vsub.f32 %v2508, %v2511
        %v2515 = vsub.f32 %v2509, %v2512
        %v2516 = vsub.f32 %v2510, %v2513
        %v2517 = vsub.f32 %v2481, %v2505
        %v2518 = vsub.f32 %v2482, %v2506
        %v2519 = vsub.f32 %v2483, %v2507
        %v2520 = vadd.f32 %v2514, 1e-06
        %v2521 = vadd.f32 %v2515, 1e-06
        %v2522 = vadd.f32 %v2516, 1e-06
        %v2523 = vrsqrt.pop %v2520
        %v2524 = vrsqrt.pop %v2521
        %v2525 = vrsqrt.pop %v2522
        %v2526 = vmul.f32 %v2517, %v2523
        %v2527 = vmul.f32 %v2518, %v2524
        %v2528 = vmul.f32 %v2519, %v2525
        %v2529 = vlaneseq
        %v2530 = vshrl.u32 %v2529, 7
        %v2531 = vsub.s32 0, %v2530
        %v2532 = vrot.slane %v1552, %v2531
        %v2533 = vmul.f32 %v2526, %v2532
        %v2534 = vmul.f32 %v2527, %v2532
        %v2535 = vmul.f32 %v2528, %v2532
        %v2536 = vlaneseq
        %v2537 = vshrl.u32 %v2536, 7
        %v2538 = vsub.s32 0, %v2537
        %v2539 = vrot.slane %v1553, %v2538
        %v2540 = vadd.f32 %v2533, %v2539
        %v2541 = vadd.f32 %v2534, %v2539
        %v2542 = vadd.f32 %v2535, %v2539
        %v2543 = vpack.c.bf16 %v2541, %v2540
        %v2544 = vpack.c.bf16 %v2542, %v2542
        %v2545 = vlaneseq
        %v2546 = vshrl.u32 %v2545, 7
        %v2547 = vsub.s32 0, %v2546
        %v2548 = vrot.slane %v1556, %v2547
        %v2553 = vunpack.c.l.b16 %v1537
        %v2554 = vunpack.c.l.b16 %v1538
        %v2555 = vunpack.c.l.b16 %v1539
        %v2556 = vunpack.c.l.b16 %v1540
        %v2557 = vpack.c.b16 %v2554, %v2553
        %v2558 = vpack.c.b16 %v2556, %v2555
        %v2562 = vsel %vm312, %v2543, 0
        %v2565 = vsel %vm312, %v2544, 0
        %2567 = vmatprep.subr.bf16.mxu0 0
        %2568 = vmatpush1.bf16.msra.mxu0 0
        %2569 = vmatprep.subr.bf16.mxu0 0
        %2570 = vmatpush1.bf16.msra.mxu0 0
        %2571 = vmatprep.subr.bf16.mxu0 0
        %2572 = vmatpush1.bf16.msra.mxu0 0
        %2573 = vmatprep.subr.bf16.mxu0 0
        %2574 = vmatpush1.bf16.msra.mxu0 0
        %2575 = vmatprep.subr.bf16.mxu0 0
        %2576 = vmatpush1.bf16.msra.mxu0 0
        %2577 = vmatprep.subr.bf16.mxu0 0
        %2578 = vmatpush1.bf16.msra.mxu0 0
        %2579 = vmatprep.subr.bf16.mxu0 0
        %2580 = vmatpush1.bf16.msra.mxu0 %v2558
        %2581 = vmatprep.subr.bf16.mxu0 0
        %2582 = vmatpush1.bf16.msra.mxu0 %v2557
        %2583 = vmatprep.subr.bf16.mxu0 0
        %2584 = vmatpush2.bf16.msra.mxu0 0
        %2585 = vmatprep.subr.bf16.mxu0 0
        %2586 = vmatpush2.bf16.msra.mxu0 0
        %2587 = vmatprep.subr.bf16.mxu0 0
        %2588 = vmatpush2.bf16.msra.mxu0 0
        %2589 = vmatprep.subr.bf16.mxu0 0
        %2590 = vmatpush2.bf16.msra.mxu0 0
        %2591 = vmatprep.subr.bf16.mxu0 0
        %2592 = vmatpush2.bf16.msra.mxu0 0
        %2593 = vmatprep.subr.bf16.mxu0 0
        %2594 = vmatpush2.bf16.msra.mxu0 0
        %2595 = vmatprep.subr.bf16.mxu0 0
        %2596 = vmatpush2.bf16.msra.mxu0 0
        %2597 = vmatprep.subr.bf16.mxu0 0
        %2598 = vmatpush2.bf16.msra.mxu0 0
        %2599 = vmatprep.mubr.bf16.mxu0 0
        %2600 = vmatmul.mubr.bf16.gmra.mxu0 %v2562
        %v2601 = vpop.f32.mrf.mxu0
        %v2602 = vadd.f32 %v2548, %v2601
        %v2603 = vpop.f32.mrf.mxu0
        %v2604 = vpop.f32.mrf.mxu0
        %v2605 = vadd.f32 %v2548, %v2604
        %v2606 = vpop.f32.mrf.mxu0
        %2607 = vmatprep.mubr.bf16.mxu0 0
        %2608 = vmatmul.mubr.bf16.gmra.mxu0 %v2565
        %v2609 = vpop.f32.mrf.mxu0
        %v2610 = vadd.f32 %v2548, %v2609
        %v2611 = vpop.f32.mrf.mxu0
        %v2612 = vpop.f32.mrf.mxu0
        %v2613 = vpop.f32.mrf.mxu0
        %2614 = vdwg.mxu0
        %v2615 = vmul.f32 %v2602, 0.5
        %v2616 = vmul.f32 %v2605, 0.5
        %v2617 = vmul.f32 %v2610, 0.5
        %v2618 = vmul.f32 %v2602, 0.044715
        %v2619 = vmul.f32 %v2605, 0.044715
        %v2620 = vmul.f32 %v2610, 0.044715
        %v2621 = vmul.f32 %v2618, %v2602
        %v2622 = vmul.f32 %v2619, %v2605
        %v2623 = vmul.f32 %v2620, %v2610
        %v2624 = vmul.f32 %v2621, %v2602
        %v2625 = vmul.f32 %v2622, %v2605
        %v2626 = vmul.f32 %v2623, %v2610
        %v2627 = vadd.f32 %v2602, %v2624
        %v2628 = vadd.f32 %v2605, %v2625
        %v2629 = vadd.f32 %v2610, %v2626
        %v2630 = vmul.f32 %v2627, 0.7978846
        %v2631 = vmul.f32 %v2628, 0.7978846
        %v2632 = vmul.f32 %v2629, 0.7978846
        %v2633 = vtanh.pop %v2630
        %v2634 = vtanh.pop %v2631
        %v2635 = vtanh.pop %v2632
        %v2636 = vadd.f32 %v2633, 1.0
        %v2637 = vadd.f32 %v2634, 1.0
        %v2638 = vadd.f32 %v2635, 1.0
        %v2639 = vmul.f32 %v2615, %v2636
        %v2640 = vmul.f32 %v2616, %v2637
        %v2641 = vmul.f32 %v2617, %v2638
        %v2642 = vpack.c.bf16 %v2640, %v2639
        %v2643 = vpack.c.bf16 %v2641, %v2641
        %v2644 = vlaneseq
        %v2645 = vshrl.u32 %v2644, 7
        %v2646 = vsub.s32 0, %v2645
        %v2647 = vrot.slane %v1557, %v2646
        %v2656 = vunpack.c.l.b16 %v1541
        %v2657 = vunpack.c.l.b16 %v1542
        %v2658 = vunpack.c.l.b16 %v1543
        %v2659 = vunpack.c.l.b16 %v1544
        %v2660 = vunpack.c.l.b16 %v1545
        %v2661 = vunpack.c.l.b16 %v1546
        %v2662 = vunpack.c.l.b16 %v1547
        %v2663 = vunpack.c.l.b16 %v1548
        %v2664 = vpack.c.b16 %v2657, %v2656
        %v2665 = vpack.c.b16 %v2659, %v2658
        %v2666 = vpack.c.b16 %v2661, %v2660
        %v2667 = vpack.c.b16 %v2663, %v2662
        %v2673 = vsel %vm263, %v2642, 0
        %v2676 = vsel %vm263, %v2643, 0
        %2678 = vmatprep.subr.bf16.mxu0 0
        %2679 = vmatpush1.bf16.msra.mxu0 0
        %2680 = vmatprep.subr.bf16.mxu0 0
        %2681 = vmatpush1.bf16.msra.mxu0 0
        %2682 = vmatprep.subr.bf16.mxu0 0
        %2683 = vmatpush1.bf16.msra.mxu0 0
        %2684 = vmatprep.subr.bf16.mxu0 0
        %2685 = vmatpush1.bf16.msra.mxu0 0
        %2686 = vmatprep.subr.bf16.mxu0 0
        %2687 = vmatpush1.bf16.msra.mxu0 %v2667
        %2688 = vmatprep.subr.bf16.mxu0 0
        %2689 = vmatpush1.bf16.msra.mxu0 %v2666
        %2690 = vmatprep.subr.bf16.mxu0 0
        %2691 = vmatpush1.bf16.msra.mxu0 %v2665
        %2692 = vmatprep.subr.bf16.mxu0 0
        %2693 = vmatpush1.bf16.msra.mxu0 %v2664
        %2694 = vmatprep.subr.bf16.mxu0 0
        %2695 = vmatpush2.bf16.msra.mxu0 0
        %2696 = vmatprep.subr.bf16.mxu0 0
        %2697 = vmatpush2.bf16.msra.mxu0 0
        %2698 = vmatprep.subr.bf16.mxu0 0
        %2699 = vmatpush2.bf16.msra.mxu0 0
        %2700 = vmatprep.subr.bf16.mxu0 0
        %2701 = vmatpush2.bf16.msra.mxu0 0
        %2702 = vmatprep.subr.bf16.mxu0 0
        %2703 = vmatpush2.bf16.msra.mxu0 0
        %2704 = vmatprep.subr.bf16.mxu0 0
        %2705 = vmatpush2.bf16.msra.mxu0 0
        %2706 = vmatprep.subr.bf16.mxu0 0
        %2707 = vmatpush2.bf16.msra.mxu0 0
        %2708 = vmatprep.subr.bf16.mxu0 0
        %2709 = vmatpush2.bf16.msra.mxu0 0
        %2710 = vmatprep.mubr.bf16.mxu0 0
        %2711 = vmatmul.mubr.bf16.gmra.mxu0 %v2673
        %v2712 = vpop.f32.mrf.mxu0
        %v2713 = vpop.f32.mrf.mxu0
        %v2714 = vpop.f32.mrf.mxu0
        %v2715 = vpop.f32.mrf.mxu0
        %2716 = vmatprep.mubr.bf16.mxu0 0
        %2717 = vmatmul.mubr.bf16.gmra.mxu0 %v2676
        %v2718 = vpop.f32.mrf.mxu0
        %v2719 = vadd.f32 %v2647, %v2718
        %v2720 = vpop.f32.mrf.mxu0
        %v2721 = vpop.f32.mrf.mxu0
        %v2722 = vpop.f32.mrf.mxu0
        %2723 = vdwg.mxu0
        %v2724 = vadd.f32 %v2483, %v2719
        %v2725 = vld [vmem:[%s4 + $0x12] sm:$0x1]
        %v2726 = vld [vmem:[%s4 + $0x13] sm:$0x1]
        %v2727 = vsel %vm316, %v2724, 0.0
        %2728 = vadd.xlane.f32.xlu0 %v2727
        %v2729 = vpop.xlane.xlu0 %2728
        %v2730 = vmul.f32 %v2724, %v2724
        %v2731 = vsel %vm316, %v2730, 0.0
        %2732 = vadd.xlane.f32.xlu0 %v2731
        %v2733 = vpop.xlane.xlu0 %2732
        %v2734 = vmul.f32 %v2729, 0.03125
        %v2735 = vmul.f32 %v2733, 0.03125
        %v2736 = vmul.f32 %v2734, %v2734
        %v2737 = vsub.f32 %v2735, %v2736
        %v2738 = vsub.f32 %v2724, %v2734
        %v2739 = vadd.f32 %v2737, 1e-06
        %v2740 = vrsqrt.pop %v2739
        %v2741 = vmul.f32 %v2738, %v2740
        %v2742 = vmul.f32 %v2741, %v2725
        %v2743 = vadd.f32 %v2742, %v2726
        %v2744 = vpack.c.bf16 %v2743, %v2743
        %v2745 = vld [vmem:[%s3 + $0x20] sm:$0xf]
        %v2746 = vld [vmem:[%s3 + $0x24] sm:$0xf]
        %v2747 = vld [vmem:[%s3 + $0x28] sm:$0xf]
        %v2748 = vld [vmem:[%s3 + $0x2c] sm:$0xf]
        %v2749 = vld [vmem:[%s4 + $0x14] sm:$0x1]
        %v2754 = vunpack.c.l.b16 %v2745
        %v2755 = vunpack.c.l.b16 %v2746
        %v2756 = vunpack.c.l.b16 %v2747
        %v2757 = vunpack.c.l.b16 %v2748
        %v2758 = vpack.c.b16 %v2755, %v2754
        %v2759 = vpack.c.b16 %v2757, %v2756
        %v2763 = vsel %vm312, %v2744, 0
        %2765 = vmatprep.subr.bf16.mxu0 0
        %2766 = vmatpush1.bf16.msra.mxu0 0
        %2767 = vmatprep.subr.bf16.mxu0 0
        %2768 = vmatpush1.bf16.msra.mxu0 0
        %2769 = vmatprep.subr.bf16.mxu0 0
        %2770 = vmatpush1.bf16.msra.mxu0 0
        %2771 = vmatprep.subr.bf16.mxu0 0
        %2772 = vmatpush1.bf16.msra.mxu0 0
        %2773 = vmatprep.subr.bf16.mxu0 0
        %2774 = vmatpush1.bf16.msra.mxu0 0
        %2775 = vmatprep.subr.bf16.mxu0 0
        %2776 = vmatpush1.bf16.msra.mxu0 0
        %2777 = vmatprep.subr.bf16.mxu0 0
        %2778 = vmatpush1.bf16.msra.mxu0 %v2759
        %2779 = vmatprep.subr.bf16.mxu0 0
        %2780 = vmatpush1.bf16.msra.mxu0 %v2758
        %2781 = vmatprep.subr.bf16.mxu0 0
        %2782 = vmatpush2.bf16.msra.mxu0 0
        %2783 = vmatprep.subr.bf16.mxu0 0
        %2784 = vmatpush2.bf16.msra.mxu0 0
        %2785 = vmatprep.subr.bf16.mxu0 0
        %2786 = vmatpush2.bf16.msra.mxu0 0
        %2787 = vmatprep.subr.bf16.mxu0 0
        %2788 = vmatpush2.bf16.msra.mxu0 0
        %2789 = vmatprep.subr.bf16.mxu0 0
        %2790 = vmatpush2.bf16.msra.mxu0 0
        %2791 = vmatprep.subr.bf16.mxu0 0
        %2792 = vmatpush2.bf16.msra.mxu0 0
        %2793 = vmatprep.subr.bf16.mxu0 0
        %2794 = vmatpush2.bf16.msra.mxu0 0
        %2795 = vmatprep.subr.bf16.mxu0 0
        %2796 = vmatpush2.bf16.msra.mxu0 0
        %2797 = vmatprep.mubr.bf16.mxu0 0
        %2798 = vmatmul.mubr.bf16.gmra.mxu0 %v2763
        %v2799 = vpop.f32.mrf.mxu0
        %v2800 = vadd.f32 %v2749, %v2799
        %v2801 = vpop.f32.mrf.mxu0
        %v2802 = vpop.f32.mrf.mxu0
        %v2803 = vpop.f32.mrf.mxu0
        %2804 = vdwg.mxu0
        %2805 = vst [vmem:[%s216] sm:$0x1] %v2800
        %s2806 = sand.u32 %s137, 1
        %s2807 = scalar_lea.sflag [#allocation4], %s2806
        %s2808 = sand.u32 %s137, 1
        %s2809 = scalar_lea.vmem [#allocation3], %s2808
        // Predicated region
        $region41: #{vit_forward.1} parent=39 // pred_check
          %p2810 = pneg %p147
        $region42: #{vit_forward.1} parent=39 // pred_check_branch
          %2812 = sbr.rel (%p2810) target = $region44
        $region43: #{vit_forward.1} parent=39 // pred_region
          %s2814 = ssub.s32 16, 16
          %2815 = vsyncadd %s2807, %s2814
          %s2816 = smul.addr %s19, 16
          %s2817 = scalar_lea.hbm %s5, %s2816
          %s2819 = sshll.u32 %s2809, 4
          %s2820 = int_to_ptr.vmem [resolvable:$true] %s2819
          %2822 = dma.vmem_to_hbm [thread:$0]  %s2820, 16, %s2817, %s2807
        $region44: #{vit_forward.1} parent=39 // pred_fallthru
          _
      $region40: #{vit_forward.1} parent=5 // pred_fallthru
        _
      %p2823 = scmp.le.s32.totalorder 2, %s14
      // Predicated region
      $region45: #{vit_forward.1} parent=5 // pred_check
        %p2824 = pneg %p2823
      $region46: #{vit_forward.1} parent=5 // pred_check_branch
        %2826 = sbr.rel (%p2824) target = $region48
      $region47: #{vit_forward.1} parent=5 // pred_region
        %s2827 = ssub.s32 %s14, 2
        // Predicated region
        $region49: #{vit_forward.1} parent=47 // pred_check
          %p2828 = pneg %p153
        $region50: #{vit_forward.1} parent=47 // pred_check_branch
          %2830 = sbr.rel (%p2828) target = $region52
        $region51: #{vit_forward.1} parent=47 // pred_region
          %s2831 = sand.u32 %s138, 1
          %s2832 = scalar_lea.sflag [#allocation4], %s2831
          %s2833 = sand.u32 %s138, 1
          %s2834 = scalar_lea.vmem [#allocation3], %s2833
          %2835 = dma.done %s2832, 16
        $region52: #{vit_forward.1} parent=47 // pred_fallthru
          _
      $region48: #{vit_forward.1} parent=5 // pred_fallthru
        _
    $region6: #{vit_forward.1} parent=1 // loop_footer
      %s18 = sadd.s32 1, %s14
    $region7: #{vit_forward.1} parent=1 // loop_footer_branch
      %13 = sbr.rel target = $region3
    $region8: #{vit_forward.1} parent=1 // loop_exit
      _
    %2836 = vsyncpa [#allocation4], 1
    %s2837 = scalar_lea.sflag [#allocation4], 1
    %2838 = vsyncpa %s2837, 1

</llo_original>
